<compile_context>
chip_gen: v7x
topology: tpu7x:2x2x1
jax: 0.10.0
libtpu: 0.0.40
codegen_flags: <defaults>
</compile_context>

<pallas_src>
import functools

import jax
import jax.numpy as jnp
import numpy as np
from jax.experimental import pallas as pl
from jax.experimental.pallas import tpu as pltpu

SLAB = 40          # per-sample slab rows: 2 zero pad + 36 data + 2 zero pad
NF = 5             # number of classes


# --------------------- pltpu.roll support probe (cached) -----------------------
_ROLL_OK = None


def _roll_ok():
    """Verify pltpu.roll on the sublane axis lowers and matches jnp.roll semantics."""
    global _ROLL_OK
    if _ROLL_OK is None:
        try:
            x = jnp.arange(40 * 256, dtype=jnp.float32).reshape(40, 256)

            def mk(shift):
                def k(x_ref, o_ref):
                    o_ref[...] = pltpu.roll(x_ref[...], shift=shift, axis=0)
                return pl.pallas_call(k, out_shape=jax.ShapeDtypeStruct(x.shape, x.dtype))

            ok = True
            for s in (1, -1):
                y = jax.block_until_ready(mk(s)(x))
                ok = ok and bool(jnp.array_equal(y, jnp.roll(x, s, axis=0)))
            _ROLL_OK = ok
        except Exception:
            _ROLL_OK = False
    return _ROLL_OK


# ----------------------------- Pallas kernel ---------------------------------
def net_kernel(x_ref,
               w123_ref, b123_ref, maska_ref, maskb_ref,
               wt2_ref, bt2_ref, wt3_ref, bt3_ref,
               ws2_ref, bs2_ref, ws3_ref, bs3_ref,
               w4_ref, b4_ref, avgm_ref,
               w5_ref, b5_ref, sele_ref,
               wcw_ref, selm_ref, sumcol_ref, rowsum_ref, bc_ref,
               o_ref, *, use_roll):
    f32, bf16 = jnp.float32, jnp.bfloat16
    xA = x_ref[0]                        # (RG, CINP) f32, guard+slab row layout
    RG = xA.shape[0]
    RB = RG - 4                          # nb * SLAB slab rows of this tile

    def bdot(a, b):                      # bf16 MXU operands, f32 accumulation
        return jnp.dot(a.astype(bf16), b.astype(bf16), preferred_element_type=f32)

    def relu(v):
        return jnp.maximum(v, 0.0)

    def shift_down1(a):                  # out[j] = a[j-1]; the row fed into slot 0 is zero
        if use_roll:
            return pltpu.roll(a, shift=1, axis=0)
        return jnp.concatenate([jnp.zeros((1, a.shape[1]), a.dtype), a[:-1]], axis=0)

    def shift_up1(a):                    # out[j] = a[j+1]; last slot gets a zero/ignored row
        if use_roll:
            return pltpu.roll(a, shift=-1, axis=0)
        return jnp.concatenate([a[1:], jnp.zeros((1, a.shape[1]), a.dtype)], axis=0)

    # --- three input 1x1 convs (+folded BN) fused into ONE K=CINP matmul ---------
    fused = relu(bdot(xA, w123_ref[...]) + b123_ref[...])        # (RG, 384)
    maskA = maska_ref[...]                                       # (RG,1): 1 on data rows
    y1 = fused[:, 0:128]                 # pad-row relu(bias) garbage killed at the merge
    t1 = fused[:, 128:256] * maskA       # k-tap conv consumers need exact zeros on pad rows
    s1 = fused[:, 256:384] * maskA

    # --- temporal branch: k=5 / pad=2 conv as ONE im2col matmul (K = 5*128) -------
    T1 = jnp.concatenate([t1[t:t + RB] for t in range(5)], axis=-1)          # (RB, 640)
    t2 = relu(bdot(T1, wt2_ref[...]) + bt2_ref[...])
    t3 = relu(bdot(t2, wt3_ref[...]) + bt3_ref[...])                         # (RB, 128)

    # --- spatial branch: k=3 / pad=1 conv as ONE im2col matmul (K = 3*128) --------
    S1 = jnp.concatenate([s1[1 + t:1 + t + RB] for t in range(3)], axis=-1)  # (RB, 384)
    s2 = relu(bdot(S1, ws2_ref[...]) + bs2_ref[...])
    s3 = relu(bdot(s2, ws3_ref[...]) + bs3_ref[...])                         # (RB, 128)

    # --- branch merge; one mask multiply zeroes the per-sample pad rows -----------
    h = (y1[2:2 + RB] + t3 + s3) * maskb_ref[...]                            # (RB, 128)

    # --- confluence4: k=2/pad=1 conv paired into ONE K=256 matmul -----------------
    # Invariant: the last slab row of every sample (and of the tile) is zeroed by
    # maskB, so the roll wrap-around row is zero and shift_down1(h)[j] == h[j-1].
    hm1 = shift_down1(h)
    c4 = relu(bdot(jnp.concatenate([hm1, h], axis=-1), w4_ref[...]) + b4_ref[...])   # (RB, 256)

    # --- AvgPool(2,2) + junk-row mask as ONE selector matmul (avgs matmul deleted) -
    p4 = bdot(avgm_ref[...], c4)                                             # (RC, 256)

    # --- confluence5: k=2/pad=1 conv paired into ONE K=512 matmul -----------------
    # Invariant: p4 row (mmod == 0) of every sample is zeroed by the avgm mask, so the
    # wrap-around row of shift_up1(p4) is zero.
    p4n = shift_up1(p4)
    c5 = relu(bdot(jnp.concatenate([p4, p4n], axis=-1), w5_ref[...]) + b5_ref[...])  # (RC, 256)

    # --- MaxPool(2,2): pairwise max via one row shift + ONE even-row selector ------
    # (the shifted wrap row only feeds odd rows / the per-slab junk row, dropped below)
    p5 = bdot(sele_ref[...], jnp.maximum(c5, shift_up1(c5)))                 # (RD, 256)

    # --- classifier: one wide matmul + diagonal select + per-sample fold -----------
    part = bdot(p5, wcw_ref[...]) * selm_ref[...]                            # (RD, 45)
    cl = bdot(part, sumcol_ref[...])                                         # (RD, 5)
    o_ref[0] = bdot(rowsum_ref[...], cl) + bc_ref[...]                       # (nb, 5)


# ------------------------------ wrapper ---------------------------------------
def multiconv_confluence_forward(x_nlc, params, samples_per_tile=4):
    """x_nlc: (N, L, 7*axis) float32, channels last.  Requires L == 36."""
    (w1, b1, wt1, bt1, wt2, bt2, wt3, bt3,
     ws1, bs1, ws2, bs2, ws3, bs3, w4, b4, w5, b5, wc9, bc) = params
    N, L, CIN = x_nlc.shape
    assert L == 36, "classifier Linear(256*9, 5) requires L == 36"

    # --- batch tile: largest divisor of N that is <= samples_per_tile -------------
    nb = 1
    for d in range(1, min(samples_per_tile, N) + 1):
        if N % d == 0:
            nb = d
    num_tiles = N // nb

    RB = nb * SLAB                       # per-tile slab rows
    RG = RB + 4                          # + 2 guard rows on each side
    RC = RB // 2                         # rows after AvgPool
    RD = RC // 2                         # rows after MaxPool
    CINP = max(16, ((CIN + 15) // 16) * 16)   # pad contraction dim (bf16 packing friendly)
    f32, bf16 = jnp.float32, jnp.bfloat16

    # --- input: channels padded, per-sample slab layout + per-tile guard rows -----
    xs = jnp.pad(x_nlc.astype(f32), ((0, 0), (0, 0), (0, CINP - CIN)))   # (N, L, CINP)
    xs = jnp.pad(xs, ((0, 0), (2, 2), (0, 0)))                           # (N, SLAB, CINP)
    xs = xs.reshape(num_tiles, RB, CINP)
    xs = jnp.pad(xs, ((0, 0), (2, 2), (0, 0)))                           # (T, RG, CINP)

    # --- fused / im2col-stacked weights (matmul operands stored in bf16) ----------
    def pad_cin(w):
        return jnp.pad(w, ((0, CINP - CIN), (0, 0)))
    w123 = jnp.concatenate([pad_cin(w1), pad_cin(wt1), pad_cin(ws1)], axis=1)   # (CINP, 384)
    b123 = jnp.concatenate([b1, bt1, bs1], axis=1)                              # (1, 384)
    wt2s = wt2.reshape(5 * 128, 128)
    ws2s = ws2.reshape(3 * 128, 128)
    w4s = w4.reshape(2 * 128, 256)
    w5s = w5.reshape(2 * 256, 256)
    # wcw[c, l*5+f] = wc9[l, c, f]  (preserves PyTorch flatten index c*9 + l)
    wcw = jnp.transpose(wc9, (1, 0, 2)).reshape(256, 9 * NF)                    # (256, 45)

    # --- row masks & pooling/selection matrices (tile-local, trace-time constants) -
    jmod = np.arange(RB) % SLAB
    maskB = ((jmod >= 2) & (jmod < 2 + L)).astype(np.float32)[:, None]          # (RB, 1)
    maskA = np.zeros((RG, 1), np.float32)
    maskA[2:2 + RB] = maskB

    HS = SLAB // 2                                                              # 20
    mmod = np.arange(RC) % HS
    maskC = ((mmod != 0) & (mmod != HS - 1)).astype(np.float32)
    avgm = np.zeros((RC, RB), np.float32)                                       # masked AvgPool(2,2)
    avgm[np.arange(RC), 2 * np.arange(RC)] = 0.5 * maskC
    avgm[np.arange(RC), 2 * np.arange(RC) + 1] = 0.5 * maskC

    sele = np.zeros((RD, RC), np.float32)                                       # even-row selector
    sele[np.arange(RD), 2 * np.arange(RD)] = 1.0

    QS = SLAB // 4                                                              # 10 rows/sample after pooling
    selm = np.zeros((RD, 9 * NF), np.float32)
    for d in range(RD):
        l = d % QS
        if l < 9:
            selm[d, l * NF:(l + 1) * NF] = 1.0
    sumcol = np.zeros((9 * NF, NF), np.float32)
    for l in range(9):
        sumcol[l * NF:(l + 1) * NF] += np.eye(NF, dtype=np.float32)
    rowsum = np.zeros((nb, RD), np.float32)
    for n in range(nb):
        rowsum[n, n * QS:(n + 1) * QS] = 1.0

    consts = [
        w123.astype(bf16), b123,
        jnp.asarray(maskA), jnp.asarray(maskB),
        wt2s.astype(bf16), bt2, wt3.astype(bf16), bt3,
        ws2s.astype(bf16), bs2, ws3.astype(bf16), bs3,
        w4s.astype(bf16), b4, jnp.asarray(avgm, dtype=bf16),
        w5s.astype(bf16), b5, jnp.asarray(sele, dtype=bf16),
        wcw.astype(bf16), jnp.asarray(selm),
        jnp.asarray(sumcol, dtype=bf16), jnp.asarray(rowsum, dtype=bf16), bc,
    ]

    def const_spec(a):
        nd = a.ndim
        return pl.BlockSpec(a.shape, lambda i, _nd=nd: (0,) * _nd)

    in_specs = [pl.BlockSpec((1, RG, CINP), lambda i: (i, 0, 0))]
    in_specs += [const_spec(a) for a in consts]

    out = pl.pallas_call(
        functools.partial(net_kernel, use_roll=_roll_ok()),
        out_shape=jax.ShapeDtypeStruct((num_tiles, nb, NF), f32),
        grid=(num_tiles,),
        in_specs=in_specs,
        out_specs=pl.BlockSpec((1, nb, NF), lambda i: (i, 0, 0)),
        compiler_params=pltpu.CompilerParams(
            dimension_semantics=("parallel",),        # v7x: tiles shard across both TCs
            vmem_limit_bytes=32 * 1024 * 1024),       # per-tile footprint is a few MiB
    )(xs, *consts)
    return out.reshape(N, NF)


# --------------------------- parameter setup (glue) ----------------------------
def make_params(key, axis):
    cin = 7 * axis
    keys = iter(jax.random.split(key, 64))

    def conv_w(cout, cin_, k):
        return 0.08 * jax.random.normal(next(keys), (cout, cin_, k), jnp.float32)

    def conv_b(cout):
        return 0.05 * jax.random.normal(next(keys), (cout,), jnp.float32)

    def bn(c):
        gamma = 1.0 + 0.1 * jax.random.normal(next(keys), (c,), jnp.float32)
        beta = 0.1 * jax.random.normal(next(keys), (c,), jnp.float32)
        mean = 0.1 * jax.random.normal(next(keys), (c,), jnp.float32)
        var = 0.5 + jax.random.uniform(next(keys), (c,), jnp.float32)
        return gamma, beta, mean, var

    def fold(w, b, bn_params, eps=1e-5):
        # Fold eval-mode BatchNorm1d into the conv. Returns (k, Cin, Cout), (1, Cout).
        g, be, m, v = bn_params
        s = g / jnp.sqrt(v + eps)
        wf = w * s[:, None, None]
        bf = (b - m) * s + be
        return jnp.transpose(wf, (2, 1, 0)), bf.reshape(1, -1)

    # conv1_layer
    w1, b1 = fold(conv_w(128, cin, 1), conv_b(128), bn(128)); w1 = w1[0]
    # temporal2_layer
    wt1, bt1 = fold(conv_w(128, cin, 1), conv_b(128), bn(128)); wt1 = wt1[0]
    wt2, bt2 = fold(conv_w(128, 128, 5), conv_b(128), bn(128))     # (5,128,128)
    wt3, bt3 = fold(conv_w(128, 128, 1), conv_b(128), bn(128)); wt3 = wt3[0]
    # spatial3_layer
    ws1, bs1 = fold(conv_w(128, cin, 1), conv_b(128), bn(128)); ws1 = ws1[0]
    ws2, bs2 = fold(conv_w(128, 128, 3), conv_b(128), bn(128))     # (3,128,128)
    ws3, bs3 = fold(conv_w(128, 128, 1), conv_b(128), bn(128)); ws3 = ws3[0]
    # confluence layers
    w4, b4 = fold(conv_w(256, 128, 2), conv_b(256), bn(256))       # (2,128,256)
    w5, b5 = fold(conv_w(256, 256, 2), conv_b(256), bn(256))       # (2,256,256)
    # classifier Linear(256*9, 5); PyTorch flatten index = c*9 + l
    wl = 0.05 * jax.random.normal(next(keys), (5, 256 * 9), jnp.float32)
    bl = 0.05 * jax.random.normal(next(keys), (5,), jnp.float32)
    wc9 = jnp.transpose(wl.reshape(5, 256, 9), (2, 1, 0))           # (9, 256, 5)
    bc = bl.reshape(1, 5)

    return (w1, b1, wt1, bt1, wt2, bt2, wt3, bt3,
            ws1, bs1, ws2, bs2, ws3, bs3, w4, b4, w5, b5, wc9, bc)


# --------------------------- plain-JAX reference (f32) -------------------------
def reference_forward(x_nlc, params):
    (w1, b1, wt1, bt1, wt2, bt2, wt3, bt3,
     ws1, bs1, ws2, bs2, ws3, bs3, w4, b4, w5, b5, wc9, bc) = params

    def lin(h, w, b):
        return jax.nn.relu(jnp.einsum('nlc,cd->nld', h, w) + b)

    def conv(h, w, b, pad):
        k = w.shape[0]
        hp = jnp.pad(h, ((0, 0), (pad, pad), (0, 0)))
        lout = h.shape[1] + 2 * pad - k + 1
        out = sum(jnp.einsum('nlc,cd->nld', hp[:, t:t + lout], w[t]) for t in range(k))
        return jax.nn.relu(out + b)

    y1 = lin(x_nlc, w1, b1)
    t = lin(x_nlc, wt1, bt1); t = conv(t, wt2, bt2, 2); t = lin(t, wt3, bt3)
    s = lin(x_nlc, ws1, bs1); s = conv(s, ws2, bs2, 1); s = lin(s, ws3, bs3)
    h = y1 + t + s
    c4 = conv(h, w4, b4, 1)
    n4 = (c4.shape[1] // 2) * 2
    p4 = c4[:, :n4].reshape(c4.shape[0], n4 // 2, 2, c4.shape[2]).mean(axis=2)
    c5 = conv(p4, w5, b5, 1)
    n5 = (c5.shape[1] // 2) * 2
    p5 = c5[:, :n5].reshape(c5.shape[0], n5 // 2, 2, c5.shape[2]).max(axis=2)
    return jnp.einsum('nlc,lcf->nf', p5, wc9) + bc


# ----------------------------------- main --------------------------------------
if __name__ == "__main__":
    axis = 3                     # module arg -> Cin = 7*axis = 21
    N, L = 8, 36                 # L=36 so the flattened size is 256*9 (classifier)
    cin = 7 * axis

    key = jax.random.PRNGKey(0)
    kx, kp = jax.random.split(key)
    x_ncl = jax.random.normal(kx, (N, cin, L), jnp.float32)   # PyTorch NCL input
    x_nlc = jnp.transpose(x_ncl, (0, 2, 1))                   # kernel layout (N, L, C)

    params = make_params(kp, axis)

    out = multiconv_confluence_forward(x_nlc, params, samples_per_tile=4)
    out = jax.block_until_ready(out)

    ref = reference_forward(x_nlc, params)
    assert out.shape == (N, 5)
    # Tolerance accounts for bf16 MXU operands (f32 accumulate) vs. the f32 reference;
    # structural/wiring errors would be O(1) and still fail this check.
    np.testing.assert_allclose(np.asarray(out), np.asarray(ref), rtol=5e-2, atol=5e-2)

    print("KERNEL_OK")
</pallas_src>

<mosaic_0001>
module attributes {stable_mosaic.version = 11 : i64} {
  func.func @k(%arg0: memref<40x256xf32, #tpu.memory_space<vmem>>, %arg1: memref<40x256xf32, #tpu.memory_space<vmem>>) attributes {dimension_semantics = [], scalar_prefetch = 0 : i64, scratch_operands = 0 : i64, tpu.core_type = #tpu.core_type<tc>} {
    %c0 = arith.constant 0 : index
    %c0_0 = arith.constant 0 : index
    %0 = vector.load %arg0[%c0, %c0_0] : memref<40x256xf32, #tpu.memory_space<vmem>>, vector<40x256xf32>
    %c1_i32 = arith.constant 1 : i32
    %1 = tpu.dynamic_rotate %0 by %c1_i32 dim 0 : vector<40x256xf32>, i32 -> vector<40x256xf32>
    %c0_1 = arith.constant 0 : index
    %c0_2 = arith.constant 0 : index
    %2 = vector.load %arg1[%c0_1, %c0_2] : memref<40x256xf32, #tpu.memory_space<vmem>>, vector<40x256xf32>
    tpu.vector_store %arg1[%c0_1, %c0_2], %1 {strides = array<i32>} : memref<40x256xf32, #tpu.memory_space<vmem>>, vector<40x256xf32>,
    return
  }
}

module attributes {stable_mosaic.version = 11 : i64} {
  func.func @net_kernel(%arg0: i32, %arg1: memref<1x164x32xf32, #tpu.memory_space<vmem>>, %arg2: memref<32x384xbf16, #tpu.memory_space<vmem>>, %arg3: memref<1x384xf32, #tpu.memory_space<vmem>>, %arg4: memref<164x1xf32, #tpu.memory_space<vmem>>, %arg5: memref<160x1xf32, #tpu.memory_space<vmem>>, %arg6: memref<640x128xbf16, #tpu.memory_space<vmem>>, %arg7: memref<1x128xf32, #tpu.memory_space<vmem>>, %arg8: memref<128x128xbf16, #tpu.memory_space<vmem>>, %arg9: memref<1x128xf32, #tpu.memory_space<vmem>>, %arg10: memref<384x128xbf16, #tpu.memory_space<vmem>>, %arg11: memref<1x128xf32, #tpu.memory_space<vmem>>, %arg12: memref<128x128xbf16, #tpu.memory_space<vmem>>, %arg13: memref<1x128xf32, #tpu.memory_space<vmem>>, %arg14: memref<256x256xbf16, #tpu.memory_space<vmem>>, %arg15: memref<1x256xf32, #tpu.memory_space<vmem>>, %arg16: memref<80x160xbf16, #tpu.memory_space<vmem>>, %arg17: memref<512x256xbf16, #tpu.memory_space<vmem>>, %arg18: memref<1x256xf32, #tpu.memory_space<vmem>>, %arg19: memref<40x80xbf16, #tpu.memory_space<vmem>>, %arg20: memref<256x45xbf16, #tpu.memory_space<vmem>>, %arg21: memref<40x45xf32, #tpu.memory_space<vmem>>, %arg22: memref<45x5xbf16, #tpu.memory_space<vmem>>, %arg23: memref<4x40xbf16, #tpu.memory_space<vmem>>, %arg24: memref<1x5xf32, #tpu.memory_space<vmem>>, %arg25: memref<1x4x5xf32, #tpu.memory_space<vmem>>) attributes {dimension_semantics = [#tpu.dimension_semantics<parallel>], iteration_bounds = array<i64: 2>, scalar_prefetch = 0 : i64, scratch_operands = 0 : i64, tpu.core_type = #tpu.core_type<tc>, window_params = [{transform_indices = @transform_0, window_bounds = array<i64: 1, 164, 32>}, {pipeline_mode = #tpu.pipeline_mode<synchronous>, transform_indices = @transform_1, window_bounds = array<i64: 32, 384>}, {pipeline_mode = #tpu.pipeline_mode<synchronous>, transform_indices = @transform_2, window_bounds = array<i64: 1, 384>}, {pipeline_mode = #tpu.pipeline_mode<synchronous>, transform_indices = @transform_3, window_bounds = array<i64: 164, 1>}, {pipeline_mode = #tpu.pipeline_mode<synchronous>, transform_indices = @transform_4, window_bounds = array<i64: 160, 1>}, {pipeline_mode = #tpu.pipeline_mode<synchronous>, transform_indices = @transform_5, window_bounds = array<i64: 640, 128>}, {pipeline_mode = #tpu.pipeline_mode<synchronous>, transform_indices = @transform_6, window_bounds = array<i64: 1, 128>}, {pipeline_mode = #tpu.pipeline_mode<synchronous>, transform_indices = @transform_7, window_bounds = array<i64: 128, 128>}, {pipeline_mode = #tpu.pipeline_mode<synchronous>, transform_indices = @transform_8, window_bounds = array<i64: 1, 128>}, {pipeline_mode = #tpu.pipeline_mode<synchronous>, transform_indices = @transform_9, window_bounds = array<i64: 384, 128>}, {pipeline_mode = #tpu.pipeline_mode<synchronous>, transform_indices = @transform_10, window_bounds = array<i64: 1, 128>}, {pipeline_mode = #tpu.pipeline_mode<synchronous>, transform_indices = @transform_11, window_bounds = array<i64: 128, 128>}, {pipeline_mode = #tpu.pipeline_mode<synchronous>, transform_indices = @transform_12, window_bounds = array<i64: 1, 128>}, {pipeline_mode = #tpu.pipeline_mode<synchronous>, transform_indices = @transform_13, window_bounds = array<i64: 256, 256>}, {pipeline_mode = #tpu.pipeline_mode<synchronous>, transform_indices = @transform_14, window_bounds = array<i64: 1, 256>}, {pipeline_mode = #tpu.pipeline_mode<synchronous>, transform_indices = @transform_15, window_bounds = array<i64: 80, 160>}, {pipeline_mode = #tpu.pipeline_mode<synchronous>, transform_indices = @transform_16, window_bounds = array<i64: 512, 256>}, {pipeline_mode = #tpu.pipeline_mode<synchronous>, transform_indices = @transform_17, window_bounds = array<i64: 1, 256>}, {pipeline_mode = #tpu.pipeline_mode<synchronous>, transform_indices = @transform_18, window_bounds = array<i64: 40, 80>}, {pipeline_mode = #tpu.pipeline_mode<synchronous>, transform_indices = @transform_19, window_bounds = array<i64: 256, 45>}, {pipeline_mode = #tpu.pipeline_mode<synchronous>, transform_indices = @transform_20, window_bounds = array<i64: 40, 45>}, {pipeline_mode = #tpu.pipeline_mode<synchronous>, transform_indices = @transform_21, window_bounds = array<i64: 45, 5>}, {pipeline_mode = #tpu.pipeline_mode<synchronous>, transform_indices = @transform_22, window_bounds = array<i64: 4, 40>}, {pipeline_mode = #tpu.pipeline_mode<synchronous>, transform_indices = @transform_23, window_bounds = array<i64: 1, 5>}, {transform_indices = @transform_24, window_bounds = array<i64: 1, 4, 5>}]} {
    %c0 = arith.constant 0 : index
    %c0_0 = arith.constant 0 : index
    %c0_1 = arith.constant 0 : index
    %0 = vector.load %arg1[%c0, %c0_0, %c0_1] : memref<1x164x32xf32, #tpu.memory_space<vmem>>, vector<1x164x32xf32>
    %1 = vector.shape_cast %0 : vector<1x164x32xf32> to vector<164x32xf32>
    %c0_2 = arith.constant 0 : index
    %c0_3 = arith.constant 0 : index
    %2 = vector.load %arg2[%c0_2, %c0_3] : memref<32x384xbf16, #tpu.memory_space<vmem>>, vector<32x384xbf16>
    %3 = arith.truncf %1 : vector<164x32xf32> to vector<164x32xbf16>
    %cst = arith.constant dense<0.000000e+00> : vector<164x384xf32>
    %4 = tpu.matmul %3, %2, %cst {dimension_numbers = #tpu.dot_dimension_numbers<[1], [0], [0], [1], [0, 0, 1, 1], [], []>} : vector<164x32xbf16>, vector<32x384xbf16>, vector<164x384xf32> -> vector<164x384xf32>
    %c0_4 = arith.constant 0 : index
    %c0_5 = arith.constant 0 : index
    %5 = vector.load %arg3[%c0_4, %c0_5] : memref<1x384xf32, #tpu.memory_space<vmem>>, vector<1x384xf32>
    %6 = vector.broadcast %5 : vector<1x384xf32> to vector<164x384xf32>
    %7 = arith.addf %4, %6 : vector<164x384xf32>
    %cst_6 = arith.constant 0.000000e+00 : f32
    %8 = vector.broadcast %cst_6 : f32 to vector<164x384xf32>
    %9 = arith.maximumf %7, %8 : vector<164x384xf32>
    %c0_7 = arith.constant 0 : index
    %c0_8 = arith.constant 0 : index
    %10 = vector.load %arg4[%c0_7, %c0_8] : memref<164x1xf32, #tpu.memory_space<vmem>>, vector<164x1xf32>
    %11 = vector.extract_strided_slice %9 {offsets = [0, 0], sizes = [164, 128], strides = [1, 1]} : vector<164x384xf32> to vector<164x128xf32>
    %12 = vector.extract_strided_slice %9 {offsets = [0, 128], sizes = [164, 128], strides = [1, 1]} : vector<164x384xf32> to vector<164x128xf32>
    %13 = vector.broadcast %10 : vector<164x1xf32> to vector<164x128xf32>
    %14 = arith.mulf %12, %13 : vector<164x128xf32>
    %15 = vector.extract_strided_slice %9 {offsets = [0, 256], sizes = [164, 128], strides = [1, 1]} : vector<164x384xf32> to vector<164x128xf32>
    %16 = vector.broadcast %10 : vector<164x1xf32> to vector<164x128xf32>
    %17 = arith.mulf %15, %16 : vector<164x128xf32>
    %18 = vector.extract_strided_slice %14 {offsets = [0, 0], sizes = [160, 128], strides = [1, 1]} : vector<164x128xf32> to vector<160x128xf32>
    %19 = vector.extract_strided_slice %14 {offsets = [1, 0], sizes = [160, 128], strides = [1, 1]} : vector<164x128xf32> to vector<160x128xf32>
    %20 = vector.extract_strided_slice %14 {offsets = [2, 0], sizes = [160, 128], strides = [1, 1]} : vector<164x128xf32> to vector<160x128xf32>
    %21 = vector.extract_strided_slice %14 {offsets = [3, 0], sizes = [160, 128], strides = [1, 1]} : vector<164x128xf32> to vector<160x128xf32>
    %22 = vector.extract_strided_slice %14 {offsets = [4, 0], sizes = [160, 128], strides = [1, 1]} : vector<164x128xf32> to vector<160x128xf32>
    %23 = tpu.concatenate %18, %19, %20, %21, %22 in 1 : vector<160x128xf32>, vector<160x128xf32>, vector<160x128xf32>, vector<160x128xf32>, vector<160x128xf32> -> vector<160x640xf32>
    %c0_9 = arith.constant 0 : index
    %c0_10 = arith.constant 0 : index
    %24 = vector.load %arg6[%c0_9, %c0_10] : memref<640x128xbf16, #tpu.memory_space<vmem>>, vector<640x128xbf16>
    %25 = arith.truncf %23 : vector<160x640xf32> to vector<160x640xbf16>
    %cst_11 = arith.constant dense<0.000000e+00> : vector<160x128xf32>
    %26 = tpu.matmul %25, %24, %cst_11 {dimension_numbers = #tpu.dot_dimension_numbers<[1], [0], [0], [1], [0, 0, 1, 1], [], []>} : vector<160x640xbf16>, vector<640x128xbf16>, vector<160x128xf32> -> vector<160x128xf32>
    %c0_12 = arith.constant 0 : index
    %c0_13 = arith.constant 0 : index
    %27 = vector.load %arg7[%c0_12, %c0_13] : memref<1x128xf32, #tpu.memory_space<vmem>>, vector<1x128xf32>
    %28 = vector.broadcast %27 : vector<1x128xf32> to vector<160x128xf32>
    %29 = arith.addf %26, %28 : vector<160x128xf32>
    %cst_14 = arith.constant 0.000000e+00 : f32
    %30 = vector.broadcast %cst_14 : f32 to vector<160x128xf32>
    %31 = arith.maximumf %29, %30 : vector<160x128xf32>
    %c0_15 = arith.constant 0 : index
    %c0_16 = arith.constant 0 : index
    %32 = vector.load %arg8[%c0_15, %c0_16] : memref<128x128xbf16, #tpu.memory_space<vmem>>, vector<128x128xbf16>
    %33 = arith.truncf %31 : vector<160x128xf32> to vector<160x128xbf16>
    %cst_17 = arith.constant dense<0.000000e+00> : vector<160x128xf32>
    %34 = tpu.matmul %33, %32, %cst_17 {dimension_numbers = #tpu.dot_dimension_numbers<[1], [0], [0], [1], [0, 0, 1, 1], [], []>} : vector<160x128xbf16>, vector<128x128xbf16>, vector<160x128xf32> -> vector<160x128xf32>
    %c0_18 = arith.constant 0 : index
    %c0_19 = arith.constant 0 : index
    %35 = vector.load %arg9[%c0_18, %c0_19] : memref<1x128xf32, #tpu.memory_space<vmem>>, vector<1x128xf32>
    %36 = vector.broadcast %35 : vector<1x128xf32> to vector<160x128xf32>
    %37 = arith.addf %34, %36 : vector<160x128xf32>
    %cst_20 = arith.constant 0.000000e+00 : f32
    %38 = vector.broadcast %cst_20 : f32 to vector<160x128xf32>
    %39 = arith.maximumf %37, %38 : vector<160x128xf32>
    %40 = vector.extract_strided_slice %17 {offsets = [1, 0], sizes = [160, 128], strides = [1, 1]} : vector<164x128xf32> to vector<160x128xf32>
    %41 = vector.extract_strided_slice %17 {offsets = [2, 0], sizes = [160, 128], strides = [1, 1]} : vector<164x128xf32> to vector<160x128xf32>
    %42 = vector.extract_strided_slice %17 {offsets = [3, 0], sizes = [160, 128], strides = [1, 1]} : vector<164x128xf32> to vector<160x128xf32>
    %43 = tpu.concatenate %40, %41, %42 in 1 : vector<160x128xf32>, vector<160x128xf32>, vector<160x128xf32> -> vector<160x384xf32>
    %c0_21 = arith.constant 0 : index
    %c0_22 = arith.constant 0 : index
    %44 = vector.load %arg10[%c0_21, %c0_22] : memref<384x128xbf16, #tpu.memory_space<vmem>>, vector<384x128xbf16>
    %45 = arith.truncf %43 : vector<160x384xf32> to vector<160x384xbf16>
    %cst_23 = arith.constant dense<0.000000e+00> : vector<160x128xf32>
    %46 = tpu.matmul %45, %44, %cst_23 {dimension_numbers = #tpu.dot_dimension_numbers<[1], [0], [0], [1], [0, 0, 1, 1], [], []>} : vector<160x384xbf16>, vector<384x128xbf16>, vector<160x128xf32> -> vector<160x128xf32>
    %c0_24 = arith.constant 0 : index
    %c0_25 = arith.constant 0 : index
    %47 = vector.load %arg11[%c0_24, %c0_25] : memref<1x128xf32, #tpu.memory_space<vmem>>, vector<1x128xf32>
    %48 = vector.broadcast %47 : vector<1x128xf32> to vector<160x128xf32>
    %49 = arith.addf %46, %48 : vector<160x128xf32>
    %cst_26 = arith.constant 0.000000e+00 : f32
    %50 = vector.broadcast %cst_26 : f32 to vector<160x128xf32>
    %51 = arith.maximumf %49, %50 : vector<160x128xf32>
    %c0_27 = arith.constant 0 : index
    %c0_28 = arith.constant 0 : index
    %52 = vector.load %arg12[%c0_27, %c0_28] : memref<128x128xbf16, #tpu.memory_space<vmem>>, vector<128x128xbf16>
    %53 = arith.truncf %51 : vector<160x128xf32> to vector<160x128xbf16>
    %cst_29 = arith.constant dense<0.000000e+00> : vector<160x128xf32>
    %54 = tpu.matmul %53, %52, %cst_29 {dimension_numbers = #tpu.dot_dimension_numbers<[1], [0], [0], [1], [0, 0, 1, 1], [], []>} : vector<160x128xbf16>, vector<128x128xbf16>, vector<160x128xf32> -> vector<160x128xf32>
    %c0_30 = arith.constant 0 : index
    %c0_31 = arith.constant 0 : index
    %55 = vector.load %arg13[%c0_30, %c0_31] : memref<1x128xf32, #tpu.memory_space<vmem>>, vector<1x128xf32>
    %56 = vector.broadcast %55 : vector<1x128xf32> to vector<160x128xf32>
    %57 = arith.addf %54, %56 : vector<160x128xf32>
    %cst_32 = arith.constant 0.000000e+00 : f32
    %58 = vector.broadcast %cst_32 : f32 to vector<160x128xf32>
    %59 = arith.maximumf %57, %58 : vector<160x128xf32>
    %60 = vector.extract_strided_slice %11 {offsets = [2, 0], sizes = [160, 128], strides = [1, 1]} : vector<164x128xf32> to vector<160x128xf32>
    %61 = arith.addf %60, %39 : vector<160x128xf32>
    %62 = arith.addf %61, %59 : vector<160x128xf32>
    %c0_33 = arith.constant 0 : index
    %c0_34 = arith.constant 0 : index
    %63 = vector.load %arg5[%c0_33, %c0_34] : memref<160x1xf32, #tpu.memory_space<vmem>>, vector<160x1xf32>
    %64 = vector.broadcast %63 : vector<160x1xf32> to vector<160x128xf32>
    %65 = arith.mulf %62, %64 : vector<160x128xf32>
    %cst_35 = arith.constant 0.000000e+00 : f32
    %66 = vector.broadcast %cst_35 : f32 to vector<1x128xf32>
    %67 = vector.extract_strided_slice %65 {offsets = [0, 0], sizes = [159, 128], strides = [1, 1]} : vector<160x128xf32> to vector<159x128xf32>
    %68 = tpu.concatenate %66, %67 in 0 : vector<1x128xf32>, vector<159x128xf32> -> vector<160x128xf32>
    %69 = tpu.concatenate %68, %65 in 1 : vector<160x128xf32>, vector<160x128xf32> -> vector<160x256xf32>
    %c0_36 = arith.constant 0 : index
    %c0_37 = arith.constant 0 : index
    %70 = vector.load %arg14[%c0_36, %c0_37] : memref<256x256xbf16, #tpu.memory_space<vmem>>, vector<256x256xbf16>
    %71 = arith.truncf %69 : vector<160x256xf32> to vector<160x256xbf16>
    %cst_38 = arith.constant dense<0.000000e+00> : vector<160x256xf32>
    %72 = tpu.matmul %71, %70, %cst_38 {dimension_numbers = #tpu.dot_dimension_numbers<[1], [0], [0], [1], [0, 0, 1, 1], [], []>} : vector<160x256xbf16>, vector<256x256xbf16>, vector<160x256xf32> -> vector<160x256xf32>
    %c0_39 = arith.constant 0 : index
    %c0_40 = arith.constant 0 : index
    %73 = vector.load %arg15[%c0_39, %c0_40] : memref<1x256xf32, #tpu.memory_space<vmem>>, vector<1x256xf32>
    %74 = vector.broadcast %73 : vector<1x256xf32> to vector<160x256xf32>
    %75 = arith.addf %72, %74 : vector<160x256xf32>
    %cst_41 = arith.constant 0.000000e+00 : f32
    %76 = vector.broadcast %cst_41 : f32 to vector<160x256xf32>
    %77 = arith.maximumf %75, %76 : vector<160x256xf32>
    %c0_42 = arith.constant 0 : index
    %c0_43 = arith.constant 0 : index
    %78 = vector.load %arg16[%c0_42, %c0_43] : memref<80x160xbf16, #tpu.memory_space<vmem>>, vector<80x160xbf16>
    %79 = arith.truncf %77 : vector<160x256xf32> to vector<160x256xbf16>
    %cst_44 = arith.constant dense<0.000000e+00> : vector<80x256xf32>
    %80 = tpu.matmul %78, %79, %cst_44 {dimension_numbers = #tpu.dot_dimension_numbers<[1], [0], [0], [1], [0, 0, 1, 1], [], []>} : vector<80x160xbf16>, vector<160x256xbf16>, vector<80x256xf32> -> vector<80x256xf32>
    %81 = vector.extract_strided_slice %80 {offsets = [1, 0], sizes = [79, 256], strides = [1, 1]} : vector<80x256xf32> to vector<79x256xf32>
    %cst_45 = arith.constant 0.000000e+00 : f32
    %82 = vector.broadcast %cst_45 : f32 to vector<1x256xf32>
    %83 = tpu.concatenate %81, %82 in 0 : vector<79x256xf32>, vector<1x256xf32> -> vector<80x256xf32>
    %84 = tpu.concatenate %80, %83 in 1 : vector<80x256xf32>, vector<80x256xf32> -> vector<80x512xf32>
    %c0_46 = arith.constant 0 : index
    %c0_47 = arith.constant 0 : index
    %85 = vector.load %arg17[%c0_46, %c0_47] : memref<512x256xbf16, #tpu.memory_space<vmem>>, vector<512x256xbf16>
    %86 = arith.truncf %84 : vector<80x512xf32> to vector<80x512xbf16>
    %cst_48 = arith.constant dense<0.000000e+00> : vector<80x256xf32>
    %87 = tpu.matmul %86, %85, %cst_48 {dimension_numbers = #tpu.dot_dimension_numbers<[1], [0], [0], [1], [0, 0, 1, 1], [], []>} : vector<80x512xbf16>, vector<512x256xbf16>, vector<80x256xf32> -> vector<80x256xf32>
    %c0_49 = arith.constant 0 : index
    %c0_50 = arith.constant 0 : index
    %88 = vector.load %arg18[%c0_49, %c0_50] : memref<1x256xf32, #tpu.memory_space<vmem>>, vector<1x256xf32>
    %89 = vector.broadcast %88 : vector<1x256xf32> to vector<80x256xf32>
    %90 = arith.addf %87, %89 : vector<80x256xf32>
    %cst_51 = arith.constant 0.000000e+00 : f32
    %91 = vector.broadcast %cst_51 : f32 to vector<80x256xf32>
    %92 = arith.maximumf %90, %91 : vector<80x256xf32>
    %c0_52 = arith.constant 0 : index
    %c0_53 = arith.constant 0 : index
    %93 = vector.load %arg19[%c0_52, %c0_53] : memref<40x80xbf16, #tpu.memory_space<vmem>>, vector<40x80xbf16>
    %94 = vector.extract_strided_slice %92 {offsets = [1, 0], sizes = [79, 256], strides = [1, 1]} : vector<80x256xf32> to vector<79x256xf32>
    %cst_54 = arith.constant 0.000000e+00 : f32
    %95 = vector.broadcast %cst_54 : f32 to vector<1x256xf32>
    %96 = tpu.concatenate %94, %95 in 0 : vector<79x256xf32>, vector<1x256xf32> -> vector<80x256xf32>
    %97 = arith.maximumf %92, %96 : vector<80x256xf32>
    %98 = arith.truncf %97 : vector<80x256xf32> to vector<80x256xbf16>
    %cst_55 = arith.constant dense<0.000000e+00> : vector<40x256xf32>
    %99 = tpu.matmul %93, %98, %cst_55 {dimension_numbers = #tpu.dot_dimension_numbers<[1], [0], [0], [1], [0, 0, 1, 1], [], []>} : vector<40x80xbf16>, vector<80x256xbf16>, vector<40x256xf32> -> vector<40x256xf32>
    %c0_56 = arith.constant 0 : index
    %c0_57 = arith.constant 0 : index
    %100 = vector.load %arg20[%c0_56, %c0_57] : memref<256x45xbf16, #tpu.memory_space<vmem>>, vector<256x45xbf16>
    %101 = arith.truncf %99 : vector<40x256xf32> to vector<40x256xbf16>
    %cst_58 = arith.constant dense<0.000000e+00> : vector<40x45xf32>
    %102 = tpu.matmul %101, %100, %cst_58 {dimension_numbers = #tpu.dot_dimension_numbers<[1], [0], [0], [1], [0, 0, 1, 1], [], []>} : vector<40x256xbf16>, vector<256x45xbf16>, vector<40x45xf32> -> vector<40x45xf32>
    %c0_59 = arith.constant 0 : index
    %c0_60 = arith.constant 0 : index
    %103 = vector.load %arg21[%c0_59, %c0_60] : memref<40x45xf32, #tpu.memory_space<vmem>>, vector<40x45xf32>
    %104 = arith.mulf %102, %103 : vector<40x45xf32>
    %c0_61 = arith.constant 0 : index
    %c0_62 = arith.constant 0 : index
    %105 = vector.load %arg22[%c0_61, %c0_62] : memref<45x5xbf16, #tpu.memory_space<vmem>>, vector<45x5xbf16>
    %106 = arith.truncf %104 : vector<40x45xf32> to vector<40x45xbf16>
    %cst_63 = arith.constant dense<0.000000e+00> : vector<40x5xf32>
    %107 = tpu.matmul %106, %105, %cst_63 {dimension_numbers = #tpu.dot_dimension_numbers<[1], [0], [0], [1], [0, 0, 1, 1], [], []>} : vector<40x45xbf16>, vector<45x5xbf16>, vector<40x5xf32> -> vector<40x5xf32>
    %c0_64 = arith.constant 0 : index
    %c0_65 = arith.constant 0 : index
    %108 = vector.load %arg23[%c0_64, %c0_65] : memref<4x40xbf16, #tpu.memory_space<vmem>>, vector<4x40xbf16>
    %109 = arith.truncf %107 : vector<40x5xf32> to vector<40x5xbf16>
    %cst_66 = arith.constant dense<0.000000e+00> : vector<4x5xf32>
    %110 = tpu.matmul %108, %109, %cst_66 {dimension_numbers = #tpu.dot_dimension_numbers<[1], [0], [0], [1], [0, 0, 1, 1], [], []>} : vector<4x40xbf16>, vector<40x5xbf16>, vector<4x5xf32> -> vector<4x5xf32>
    %c0_67 = arith.constant 0 : index
    %c0_68 = arith.constant 0 : index
    %111 = vector.load %arg24[%c0_67, %c0_68] : memref<1x5xf32, #tpu.memory_space<vmem>>, vector<1x5xf32>
    %112 = vector.broadcast %111 : vector<1x5xf32> to vector<4x5xf32>
    %113 = arith.addf %110, %112 : vector<4x5xf32>
    %c0_69 = arith.constant 0 : index
    %c0_70 = arith.constant 0 : index
    %c0_71 = arith.constant 0 : index
    %114 = vector.load %arg25[%c0_69, %c0_70, %c0_71] : memref<1x4x5xf32, #tpu.memory_space<vmem>>, vector<1x4x5xf32>
    %115 = vector.shape_cast %114 : vector<1x4x5xf32> to vector<4x5xf32>
    %116 = vector.shape_cast %113 : vector<4x5xf32> to vector<1x4x5xf32>
    tpu.vector_store %arg25[%c0_69, %c0_70, %c0_71], %116 {strides = array<i32>} : memref<1x4x5xf32, #tpu.memory_space<vmem>>, vector<1x4x5xf32>,
    return
  }
  func.func @transform_0(%arg0: i32) -> (i32, i32, i32) {
    %c0_i32 = arith.constant 0 : i32
    %c0_i32_0 = arith.constant 0 : i32
    %c0_i32_1 = arith.constant 0 : i32
    return %arg0, %c0_i32, %c0_i32_0 : i32, i32, i32
  }
  func.func @transform_1(%arg0: i32) -> (i32, i32) {
    %c0_i32 = arith.constant 0 : i32
    %c0_i32_0 = arith.constant 0 : i32
    %c0_i32_1 = arith.constant 0 : i32
    return %c0_i32, %c0_i32_0 : i32, i32
  }
  func.func @transform_2(%arg0: i32) -> (i32, i32) {
    %c0_i32 = arith.constant 0 : i32
    %c0_i32_0 = arith.constant 0 : i32
    %c0_i32_1 = arith.constant 0 : i32
    return %c0_i32, %c0_i32_0 : i32, i32
  }
  func.func @transform_3(%arg0: i32) -> (i32, i32) {
    %c0_i32 = arith.constant 0 : i32
    %c0_i32_0 = arith.constant 0 : i32
    %c0_i32_1 = arith.constant 0 : i32
    return %c0_i32, %c0_i32_0 : i32, i32
  }
  func.func @transform_4(%arg0: i32) -> (i32, i32) {
    %c0_i32 = arith.constant 0 : i32
    %c0_i32_0 = arith.constant 0 : i32
    %c0_i32_1 = arith.constant 0 : i32
    return %c0_i32, %c0_i32_0 : i32, i32
  }
  func.func @transform_5(%arg0: i32) -> (i32, i32) {
    %c0_i32 = arith.constant 0 : i32
    %c0_i32_0 = arith.constant 0 : i32
    %c0_i32_1 = arith.constant 0 : i32
    return %c0_i32, %c0_i32_0 : i32, i32
  }
  func.func @transform_6(%arg0: i32) -> (i32, i32) {
    %c0_i32 = arith.constant 0 : i32
    %c0_i32_0 = arith.constant 0 : i32
    %c0_i32_1 = arith.constant 0 : i32
    return %c0_i32, %c0_i32_0 : i32, i32
  }
  func.func @transform_7(%arg0: i32) -> (i32, i32) {
    %c0_i32 = arith.constant 0 : i32
    %c0_i32_0 = arith.constant 0 : i32
    %c0_i32_1 = arith.constant 0 : i32
    return %c0_i32, %c0_i32_0 : i32, i32
  }
  func.func @transform_8(%arg0: i32) -> (i32, i32) {
    %c0_i32 = arith.constant 0 : i32
    %c0_i32_0 = arith.constant 0 : i32
    %c0_i32_1 = arith.constant 0 : i32
    return %c0_i32, %c0_i32_0 : i32, i32
  }
  func.func @transform_9(%arg0: i32) -> (i32, i32) {
    %c0_i32 = arith.constant 0 : i32
    %c0_i32_0 = arith.constant 0 : i32
    %c0_i32_1 = arith.constant 0 : i32
    return %c0_i32, %c0_i32_0 : i32, i32
  }
  func.func @transform_10(%arg0: i32) -> (i32, i32) {
    %c0_i32 = arith.constant 0 : i32
    %c0_i32_0 = arith.constant 0 : i32
    %c0_i32_1 = arith.constant 0 : i32
    return %c0_i32, %c0_i32_0 : i32, i32
  }
  func.func @transform_11(%arg0: i32) -> (i32, i32) {
    %c0_i32 = arith.constant 0 : i32
    %c0_i32_0 = arith.constant 0 : i32
    %c0_i32_1 = arith.constant 0 : i32
    return %c0_i32, %c0_i32_0 : i32, i32
  }
  func.func @transform_12(%arg0: i32) -> (i32, i32) {
    %c0_i32 = arith.constant 0 : i32
    %c0_i32_0 = arith.constant 0 : i32
    %c0_i32_1 = arith.constant 0 : i32
    return %c0_i32, %c0_i32_0 : i32, i32
  }
  func.func @transform_13(%arg0: i32) -> (i32, i32) {
    %c0_i32 = arith.constant 0 : i32
    %c0_i32_0 = arith.constant 0 : i32
    %c0_i32_1 = arith.constant 0 : i32
    return %c0_i32, %c0_i32_0 : i32, i32
  }
  func.func @transform_14(%arg0: i32) -> (i32, i32) {
    %c0_i32 = arith.constant 0 : i32
    %c0_i32_0 = arith.constant 0 : i32
    %c0_i32_1 = arith.constant 0 : i32
    return %c0_i32, %c0_i32_0 : i32, i32
  }
  func.func @transform_15(%arg0: i32) -> (i32, i32) {
    %c0_i32 = arith.constant 0 : i32
    %c0_i32_0 = arith.constant 0 : i32
    %c0_i32_1 = arith.constant 0 : i32
    return %c0_i32, %c0_i32_0 : i32, i32
  }
  func.func @transform_16(%arg0: i32) -> (i32, i32) {
    %c0_i32 = arith.constant 0 : i32
    %c0_i32_0 = arith.constant 0 : i32
    %c0_i32_1 = arith.constant 0 : i32
    return %c0_i32, %c0_i32_0 : i32, i32
  }
  func.func @transform_17(%arg0: i32) -> (i32, i32) {
    %c0_i32 = arith.constant 0 : i32
    %c0_i32_0 = arith.constant 0 : i32
    %c0_i32_1 = arith.constant 0 : i32
    return %c0_i32, %c0_i32_0 : i32, i32
  }
  func.func @transform_18(%arg0: i32) -> (i32, i32) {
    %c0_i32 = arith.constant 0 : i32
    %c0_i32_0 = arith.constant 0 : i32
    %c0_i32_1 = arith.constant 0 : i32
    return %c0_i32, %c0_i32_0 : i32, i32
  }
  func.func @transform_19(%arg0: i32) -> (i32, i32) {
    %c0_i32 = arith.constant 0 : i32
    %c0_i32_0 = arith.constant 0 : i32
    %c0_i32_1 = arith.constant 0 : i32
    return %c0_i32, %c0_i32_0 : i32, i32
  }
  func.func @transform_20(%arg0: i32) -> (i32, i32) {
    %c0_i32 = arith.constant 0 : i32
    %c0_i32_0 = arith.constant 0 : i32
    %c0_i32_1 = arith.constant 0 : i32
    return %c0_i32, %c0_i32_0 : i32, i32
  }
  func.func @transform_21(%arg0: i32) -> (i32, i32) {
    %c0_i32 = arith.constant 0 : i32
    %c0_i32_0 = arith.constant 0 : i32
    %c0_i32_1 = arith.constant 0 : i32
    return %c0_i32, %c0_i32_0 : i32, i32
  }
  func.func @transform_22(%arg0: i32) -> (i32, i32) {
    %c0_i32 = arith.constant 0 : i32
    %c0_i32_0 = arith.constant 0 : i32
    %c0_i32_1 = arith.constant 0 : i32
    return %c0_i32, %c0_i32_0 : i32, i32
  }
  func.func @transform_23(%arg0: i32) -> (i32, i32) {
    %c0_i32 = arith.constant 0 : i32
    %c0_i32_0 = arith.constant 0 : i32
    %c0_i32_1 = arith.constant 0 : i32
    return %c0_i32, %c0_i32_0 : i32, i32
  }
  func.func @transform_24(%arg0: i32) -> (i32, i32, i32) {
    %c0_i32 = arith.constant 0 : i32
    %c0_i32_0 = arith.constant 0 : i32
    %c0_i32_1 = arith.constant 0 : i32
    return %arg0, %c0_i32, %c0_i32_0 : i32, i32, i32
  }
}

</mosaic_0001>

<llo_original>
// kernel: tpu_custom_call.1
$region0: #{tpu_custom_call.1}
  #allocation0 [shape = 'u32[]', space=smem, size = 0x4, offset = 0x4, fixed_abs, tag = 'smem constant byte address 0x4 - core index']
  #allocation1 [shape = 'u32[144,128]{1,0:T(1,128)}', space=vmem, size = 0x12000, scoped, tag = 'internal scratch']
  %s0 = inlined_call_operand.hbm [shape: f32[40,256], index: 0, kind: input, shape index: {}]
  %s1 = inlined_call_operand.hbm [shape: f32[40,256], index: 1, kind: output, shape index: {}]
  %s2 = sld [smem:[#allocation0]]
  $region18: #{tpu_custom_call.1} parent=0
    _
  %s4 = ssub.s32 1, %s2
  %s5 = scalar_select 0, %s4, %s2
  $region1: #{tpu_custom_call.1} parent=0
    #allocation2 [shape = 'u8[40960]{0}', space=vmem, size = 0xa000, scoped, tag = 'input window, operand 0, single buffered']
    #allocation3 [shape = 's32[1]{0}', space=sflag, size = 0x4, scoped, tag = 'scoped memory for tpu_custom_call.1']
    #allocation4 [shape = 's32[1]{0}', space=sflag, size = 0x4, scoped, tag = 'scoped memory for tpu_custom_call.1']
    #allocation5 [shape = 'u8[40960]{0}', space=vmem, size = 0xa000, scoped, tag = 'output window, operand 0, single buffered']
    %6 = vsyncpa [#allocation3], 0
    %7 = vsyncpa [#allocation4], 0
    // Predicated region
    $region2: #{tpu_custom_call.1} parent=1 // pred_check
      _
    $region3: #{tpu_custom_call.1} parent=1 // pred_check_branch
      %9 = sbr.rel (0) target = $region5
    $region4: #{tpu_custom_call.1} parent=1 // pred_region
      %s11 = ssub.s32 1280, 1280
      %12 = vsyncadd [#allocation3], %s11
      %s13 = sshll.u32 [#allocation2], 4
      %s14 = int_to_ptr.vmem [resolvable:$true] %s13
      %19 = dma.hbm_to_vmem [thread:$0]  %s0, 1280, %s14, [#allocation3], 256, 256, 16
    $region5: #{tpu_custom_call.1} parent=1 // pred_fallthru
      _
    // Predicated region
    $region6: #{tpu_custom_call.1} parent=1 // pred_check
      _
    $region7: #{tpu_custom_call.1} parent=1 // pred_check_branch
      %21 = sbr.rel (0) target = $region9
    $region8: #{tpu_custom_call.1} parent=1 // pred_region
      %22 = dma.done [#allocation3], 1280
    $region9: #{tpu_custom_call.1} parent=1 // pred_fallthru
      _
    %v23 = vld [vmem:[#allocation2] sm:$0xff]
    %v24 = vld [vmem:[#allocation2 + $0x8] sm:$0xff]
    %v25 = vld [vmem:[#allocation2 + $0x10] sm:$0xff]
    %v26 = vld [vmem:[#allocation2 + $0x18] sm:$0xff]
    %v27 = vld [vmem:[#allocation2 + $0x20] sm:$0xff]
    %v28 = vld [vmem:[#allocation2 + $0x28] sm:$0xff]
    %v29 = vld [vmem:[#allocation2 + $0x30] sm:$0xff]
    %v30 = vld [vmem:[#allocation2 + $0x38] sm:$0xff]
    %v31 = vld [vmem:[#allocation2 + $0x40] sm:$0xff]
    %v32 = vld [vmem:[#allocation2 + $0x48] sm:$0xff]
    %v33 = vrot.slane %v23, 7
    %v34 = vrot.slane %v24, 7
    %v35 = vrot.slane %v25, 7
    %v36 = vrot.slane %v26, 7
    %v37 = vrot.slane %v27, 7
    %v38 = vrot.slane %v28, 7
    %v39 = vrot.slane %v29, 7
    %v40 = vrot.slane %v30, 7
    %v41 = vrot.slane %v31, 7
    %v42 = vrot.slane %v32, 7
    %v43 = vlaneseq
    %v44 = vshrl.u32 %v43, 7
    %vm45 = vcmp.lt.s32.totalorder %v44, 1
    %v46 = vsel %vm45, %v39, %v41
    %v47 = vsel %vm45, %v40, %v42
    %v48 = vsel %vm45, %v37, %v39
    %v49 = vsel %vm45, %v38, %v40
    %v50 = vsel %vm45, %v35, %v37
    %v51 = vsel %vm45, %v36, %v38
    %v52 = vsel %vm45, %v33, %v35
    %v53 = vsel %vm45, %v34, %v36
    %v54 = vsel %vm45, %v41, %v33
    %v55 = vsel %vm45, %v42, %v34
    %56 = vst [vmem:[#allocation5] sm:$0xff] %v54
    %57 = vst [vmem:[#allocation5 + $0x8] sm:$0xff] %v55
    %58 = vst [vmem:[#allocation5 + $0x10] sm:$0xff] %v52
    %59 = vst [vmem:[#allocation5 + $0x18] sm:$0xff] %v53
    %60 = vst [vmem:[#allocation5 + $0x20] sm:$0xff] %v50
    %61 = vst [vmem:[#allocation5 + $0x28] sm:$0xff] %v51
    %62 = vst [vmem:[#allocation5 + $0x30] sm:$0xff] %v48
    %63 = vst [vmem:[#allocation5 + $0x38] sm:$0xff] %v49
    %64 = vst [vmem:[#allocation5 + $0x40] sm:$0xff] %v46
    %65 = vst [vmem:[#allocation5 + $0x48] sm:$0xff] %v47
    // Predicated region
    $region10: #{tpu_custom_call.1} parent=1 // pred_check
      _
    $region11: #{tpu_custom_call.1} parent=1 // pred_check_branch
      %67 = sbr.rel (0) target = $region13
    $region12: #{tpu_custom_call.1} parent=1 // pred_region
      %s69 = ssub.s32 1280, 1280
      %70 = vsyncadd [#allocation4], %s69
      %s71 = sshll.u32 [#allocation5], 4
      %s72 = int_to_ptr.vmem [resolvable:$true] %s71
      %77 = dma.vmem_to_hbm [thread:$0]  %s72, 1280, %s1, [#allocation4], 256, 256, 16
    $region13: #{tpu_custom_call.1} parent=1 // pred_fallthru
      _
    // Predicated region
    $region14: #{tpu_custom_call.1} parent=1 // pred_check
      _
    $region15: #{tpu_custom_call.1} parent=1 // pred_check_branch
      %79 = sbr.rel (0) target = $region17
    $region16: #{tpu_custom_call.1} parent=1 // pred_region
      %80 = dma.done [#allocation4], 1280
    $region17: #{tpu_custom_call.1} parent=1 // pred_fallthru
      _
    %81 = vsyncpa [#allocation3], 1
    %82 = vsyncpa [#allocation4], 1

// kernel: tpu_custom_call.1
$region0: #{tpu_custom_call.1}
  #allocation0 [shape = 'u32[]', space=smem, size = 0x4, offset = 0x4, fixed_abs, tag = 'smem constant byte address 0x4 - core index']
  #allocation1 [shape = 'u32[144,128]{1,0:T(1,128)}', space=vmem, size = 0x12000, scoped, tag = 'internal scratch']
  %s0 = inlined_call_operand.vmem [shape: f32[2,164,32], index: 0, kind: input, shape index: {}]
  %s1 = inlined_call_operand.hbm [shape: bf16[32,384], index: 1, kind: input, shape index: {}]
  %s2 = inlined_call_operand.hbm [shape: f32[1,384], index: 2, kind: input, shape index: {}]
  %s3 = inlined_call_operand.vmem [shape: f32[164,1], index: 3, kind: input, shape index: {}]
  %s4 = inlined_call_operand.vmem [shape: f32[160,1], index: 4, kind: input, shape index: {}]
  %s5 = inlined_call_operand.vmem [shape: bf16[640,128], index: 5, kind: input, shape index: {}]
  %s6 = inlined_call_operand.hbm [shape: f32[1,128], index: 6, kind: input, shape index: {}]
  %s7 = inlined_call_operand.hbm [shape: bf16[128,128], index: 7, kind: input, shape index: {}]
  %s8 = inlined_call_operand.hbm [shape: f32[1,128], index: 8, kind: input, shape index: {}]
  %s9 = inlined_call_operand.vmem [shape: bf16[384,128], index: 9, kind: input, shape index: {}]
  %s10 = inlined_call_operand.hbm [shape: f32[1,128], index: 10, kind: input, shape index: {}]
  %s11 = inlined_call_operand.hbm [shape: bf16[128,128], index: 11, kind: input, shape index: {}]
  %s12 = inlined_call_operand.hbm [shape: f32[1,128], index: 12, kind: input, shape index: {}]
  %s13 = inlined_call_operand.hbm [shape: bf16[256,256], index: 13, kind: input, shape index: {}]
  %s14 = inlined_call_operand.hbm [shape: f32[1,256], index: 14, kind: input, shape index: {}]
  %s15 = inlined_call_operand.hbm [shape: bf16[80,160], index: 15, kind: input, shape index: {}]
  %s16 = inlined_call_operand.vmem [shape: bf16[512,256], index: 16, kind: input, shape index: {}]
  %s17 = inlined_call_operand.hbm [shape: f32[1,256], index: 17, kind: input, shape index: {}]
  %s18 = inlined_call_operand.hbm [shape: bf16[40,80], index: 18, kind: input, shape index: {}]
  %s19 = inlined_call_operand.vmem [shape: bf16[256,45], index: 19, kind: input, shape index: {}]
  %s20 = inlined_call_operand.vmem [shape: f32[40,45], index: 20, kind: input, shape index: {}]
  %s21 = inlined_call_operand.vmem [shape: bf16[45,5], index: 21, kind: input, shape index: {}]
  %s22 = inlined_call_operand.vmem [shape: bf16[4,40], index: 22, kind: input, shape index: {}]
  %s23 = inlined_call_operand.vmem [shape: f32[1,5], index: 23, kind: input, shape index: {}]
  %s24 = inlined_call_operand.hbm [shape: f32[2,4,5], index: 24, kind: output, shape index: {}]
  %s25 = sld [smem:[#allocation0]]
  $region181: #{tpu_custom_call.1} parent=0
    _
  %s27 = ssub.s32 1, %s25
  %s28 = scalar_select 0, %s27, %s25
  $region1: #{tpu_custom_call.1} parent=0
    #allocation2 [shape = 'u8[24576]{0}', space=vmem, size = 0x6000, scoped, tag = 'input window, operand 1, single buffered']
    #allocation3 [shape = 's32[2]{0}', space=sflag, size = 0x8, scoped, tag = 'scoped memory for tpu_custom_call.1']
    #allocation4 [shape = 's32[2]{0}', space=sflag, size = 0x8, scoped, tag = 'scoped memory for tpu_custom_call.1']
    #allocation5 [shape = 'u8[1536]{0}', space=vmem, size = 0x800, scoped, tag = 'input window, operand 2, single buffered']
    #allocation6 [shape = 's32[1]{0}', space=sflag, size = 0x4, scoped, tag = 'scoped memory for tpu_custom_call.1']
    #allocation7 [shape = 'u8[512]{0}', space=vmem, size = 0x400, scoped, tag = 'input window, operand 6, single buffered']
    #allocation8 [shape = 'u8[32768]{0}', space=vmem, size = 0x8000, scoped, tag = 'input window, operand 7, single buffered']
    #allocation9 [shape = 's32[1]{0}', space=sflag, size = 0x4, scoped, tag = 'scoped memory for tpu_custom_call.1']
    #allocation10 [shape = 'u8[512]{0}', space=vmem, size = 0x400, scoped, tag = 'input window, operand 8, single buffered']
    #allocation11 [shape = 'u8[512]{0}', space=vmem, size = 0x400, scoped, tag = 'input window, operand 10, single buffered']
    #allocation12 [shape = 's32[1]{0}', space=sflag, size = 0x4, scoped, tag = 'scoped memory for tpu_custom_call.1']
    #allocation13 [shape = 'u8[32768]{0}', space=vmem, size = 0x8000, scoped, tag = 'input window, operand 11, single buffered']
    #allocation14 [shape = 'u8[512]{0}', space=vmem, size = 0x400, scoped, tag = 'input window, operand 12, single buffered']
    #allocation15 [shape = 's32[1]{0}', space=sflag, size = 0x4, scoped, tag = 'scoped memory for tpu_custom_call.1']
    #allocation16 [shape = 'u8[131072]{0}', space=vmem, size = 0x20000, scoped, tag = 'input window, operand 13, single buffered']
    #allocation17 [shape = 'u8[1024]{0}', space=vmem, size = 0x400, scoped, tag = 'input window, operand 14, single buffered']
    #allocation18 [shape = 's32[1]{0}', space=sflag, size = 0x4, scoped, tag = 'scoped memory for tpu_custom_call.1']
    #allocation19 [shape = 'u8[40960]{0}', space=vmem, size = 0xa000, scoped, tag = 'input window, operand 15, single buffered']
    #allocation20 [shape = 'u8[1024]{0}', space=vmem, size = 0x400, scoped, tag = 'input window, operand 17, single buffered']
    #allocation21 [shape = 's32[1]{0}', space=sflag, size = 0x4, scoped, tag = 'scoped memory for tpu_custom_call.1']
    #allocation22 [shape = 'u8[10240]{0}', space=vmem, size = 0x2800, scoped, tag = 'input window, operand 18, single buffered']
    #allocation23 [shape = 'u8[4096]{0}', space=vmem, size = 0x1000, scoped, tag = 'output window, operand 0']
    %29 = vsyncpa [#allocation3], 0
    %30 = vsyncpa [#allocation6], 0
    %31 = vsyncpa [#allocation9], 0
    %32 = vsyncpa [#allocation12], 0
    %33 = vsyncpa [#allocation15], 0
    %34 = vsyncpa [#allocation18], 0
    %35 = vsyncpa [#allocation21], 0
    %36 = vsyncpa [#allocation4], 0
    %s37 = scalar_lea.sflag [#allocation4], 1
    %38 = vsyncpa %s37, 0
    loop: start=0, step=1, limit=4
    $region2: #{tpu_custom_call.1} parent=1 // loop_pre_header
      _
    $region3: #{tpu_custom_call.1} parent=1 // loop_header
      %s40 = sphi 0, %s44
      %p41 = scmp.ge.s32.totalorder %s40, 4
      %s50 = sphi 0, %s52
      %s53 = sphi 0, %s50
      %s54 = sphi 0, %s53
      %s70 = sphi 0, %s54
      %s74 = sphi 0, %s74
      %s76 = sphi 0, %s74
      %s77 = sphi 0, %s76
      %s91 = sphi 0, %s77
      %s95 = sphi 0, %s95
      %s97 = sphi 0, %s95
      %s98 = sphi 0, %s97
      %s112 = sphi 0, %s98
      %s116 = sphi 0, %s116
      %s118 = sphi 0, %s116
      %s119 = sphi 0, %s118
      %s133 = sphi 0, %s119
      %s137 = sphi 0, %s137
      %s139 = sphi 0, %s137
      %s140 = sphi 0, %s139
      %s154 = sphi 0, %s140
      %s158 = sphi 0, %s158
      %s160 = sphi 0, %s158
      %s161 = sphi 0, %s160
      %s175 = sphi 0, %s161
      %s179 = sphi 0, %s179
      %s181 = sphi 0, %s179
      %s182 = sphi 0, %s181
      %s196 = sphi 0, %s182
      %s200 = sphi 0, %s200
      %s202 = sphi 0, %s200
      %s203 = sphi 0, %s202
      %s217 = sphi 0, %s203
      %s221 = sphi 0, %s221
      %s223 = sphi 0, %s221
      %s224 = sphi 0, %s223
      %s238 = sphi 0, %s224
      %s242 = sphi 0, %s242
      %s244 = sphi 0, %s242
      %s245 = sphi 0, %s244
      %s259 = sphi 0, %s245
      %s263 = sphi 0, %s263
      %s265 = sphi 0, %s263
      %s266 = sphi 0, %s265
      %s280 = sphi 0, %s266
      %s284 = sphi 0, %s284
      %s286 = sphi 0, %s284
      %s287 = sphi 0, %s286
      %s301 = sphi 0, %s287
      %s305 = sphi 0, %s305
      %s307 = sphi 0, %s305
      %s308 = sphi 0, %s307
      %s322 = sphi 0, %s308
      %s326 = sphi 0, %s326
      %s328 = sphi 0, %s326
      %s329 = sphi 0, %s328
      %s343 = sphi 0, %s329
      %s347 = sphi 0, %s347
      %s349 = sphi 0, %s347
      %s350 = sphi 0, %s349
      %s364 = sphi 0, %s350
      %s368 = sphi 0, %s368
      %s370 = sphi 0, %s368
      %s371 = sphi 0, %s370
      %s385 = sphi 0, %s371
      %s389 = sphi 0, %s389
      %s391 = sphi 0, %s389
      %s392 = sphi 0, %s391
      %s406 = sphi 0, %s392
      %s410 = sphi 0, %s410
      %s412 = sphi 0, %s410
      %s413 = sphi 0, %s412
      %s427 = sphi 0, %s413
      %s431 = sphi 0, %s431
      %s433 = sphi 0, %s431
      %s434 = sphi 0, %s433
      %s448 = sphi 0, %s434
      %s452 = sphi 0, %s452
      %s454 = sphi 0, %s452
      %s455 = sphi 0, %s454
      %s469 = sphi 0, %s455
      %s473 = sphi 0, %s473
      %s475 = sphi 0, %s473
      %s476 = sphi 0, %s475
      %s490 = sphi 0, %s476
      %s494 = sphi 0, %s494
      %s496 = sphi 0, %s494
      %s497 = sphi 0, %s496
      %s511 = sphi 0, %s497
      %s515 = sphi 0, %s515
      %s517 = sphi 0, %s515
      %s518 = sphi 0, %s517
      %s532 = sphi 0, %s518
      %s536 = sphi 0, %s536
      %s538 = sphi 0, %s536
      %s539 = sphi 0, %s538
      %s553 = sphi 0, %s539
      %s559 = sphi 0, %s561
      %s562 = sphi 0, %s559
      %s563 = sphi 0, %s562
      %s579 = sphi 0, %s563
    $region4: #{tpu_custom_call.1} parent=1 // loop_header_branch
      %43 = sbr.rel (%p41) target = $region8
    $region5: #{tpu_custom_call.1} parent=1 // loop_body
      %s45 = ssub.s32 %s40, 1
      %s46 = ssub.s32 %s40, 2
      %s47 = sadd.s32 %s40, 1
      %s48 = ssub.s32 %s40, %s47
      %p49 = scmp.eq.s32.totalorder %s48, 0
      %s51 = sadd.s32 %s50, 1
      %s52 = scalar_select %p49, %s50, %s51
      %p55 = pneg %p49
      %p56 = scmp.eq.s32.totalorder %s40, 1
      %p57 = por %p55, %p56
      %p58 = scmp.ne.s32.totalorder %s50, %s53
      %p59 = scmp.eq.s32.totalorder %s40, 0
      %p60 = por %p58, %p59
      %p61 = scmp.ne.s32.totalorder %s50, %s53
      %p62 = scmp.eq.s32.totalorder %s45, 1
      %p63 = por %p61, %p62
      %p64 = scmp.ne.s32.totalorder %s53, %s54
      %p65 = scmp.eq.s32.totalorder %s45, 0
      %p66 = por %p64, %p65
      %p67 = scmp.ne.s32.totalorder %s53, %s54
      %p68 = scmp.eq.s32.totalorder %s46, 1
      %p69 = por %p67, %p68
      %p71 = scmp.ne.s32.totalorder %s54, %s70
      %p72 = scmp.eq.s32.totalorder %s46, 0
      %p73 = por %p71, %p72
      %s75 = sadd.s32 %s74, 1
      %p78 = scmp.eq.s32.totalorder %s40, 1
      %p79 = scmp.ne.s32.totalorder %s74, %s76
      %p80 = scmp.eq.s32.totalorder %s40, 0
      %p81 = por %p79, %p80
      %p82 = scmp.ne.s32.totalorder %s74, %s76
      %p83 = scmp.eq.s32.totalorder %s45, 1
      %p84 = por %p82, %p83
      %p85 = scmp.ne.s32.totalorder %s76, %s77
      %p86 = scmp.eq.s32.totalorder %s45, 0
      %p87 = por %p85, %p86
      %p88 = scmp.ne.s32.totalorder %s76, %s77
      %p89 = scmp.eq.s32.totalorder %s46, 1
      %p90 = por %p88, %p89
      %p92 = scmp.ne.s32.totalorder %s77, %s91
      %p93 = scmp.eq.s32.totalorder %s46, 0
      %p94 = por %p92, %p93
      %s96 = sadd.s32 %s95, 1
      %p99 = scmp.eq.s32.totalorder %s40, 1
      %p100 = scmp.ne.s32.totalorder %s95, %s97
      %p101 = scmp.eq.s32.totalorder %s40, 0
      %p102 = por %p100, %p101
      %p103 = scmp.ne.s32.totalorder %s95, %s97
      %p104 = scmp.eq.s32.totalorder %s45, 1
      %p105 = por %p103, %p104
      %p106 = scmp.ne.s32.totalorder %s97, %s98
      %p107 = scmp.eq.s32.totalorder %s45, 0
      %p108 = por %p106, %p107
      %p109 = scmp.ne.s32.totalorder %s97, %s98
      %p110 = scmp.eq.s32.totalorder %s46, 1
      %p111 = por %p109, %p110
      %p113 = scmp.ne.s32.totalorder %s98, %s112
      %p114 = scmp.eq.s32.totalorder %s46, 0
      %p115 = por %p113, %p114
      %s117 = sadd.s32 %s116, 1
      %p120 = scmp.eq.s32.totalorder %s40, 1
      %p121 = scmp.ne.s32.totalorder %s116, %s118
      %p122 = scmp.eq.s32.totalorder %s40, 0
      %p123 = por %p121, %p122
      %p124 = scmp.ne.s32.totalorder %s116, %s118
      %p125 = scmp.eq.s32.totalorder %s45, 1
      %p126 = por %p124, %p125
      %p127 = scmp.ne.s32.totalorder %s118, %s119
      %p128 = scmp.eq.s32.totalorder %s45, 0
      %p129 = por %p127, %p128
      %p130 = scmp.ne.s32.totalorder %s118, %s119
      %p131 = scmp.eq.s32.totalorder %s46, 1
      %p132 = por %p130, %p131
      %p134 = scmp.ne.s32.totalorder %s119, %s133
      %p135 = scmp.eq.s32.totalorder %s46, 0
      %p136 = por %p134, %p135
      %s138 = sadd.s32 %s137, 1
      %p141 = scmp.eq.s32.totalorder %s40, 1
      %p142 = scmp.ne.s32.totalorder %s137, %s139
      %p143 = scmp.eq.s32.totalorder %s40, 0
      %p144 = por %p142, %p143
      %p145 = scmp.ne.s32.totalorder %s137, %s139
      %p146 = scmp.eq.s32.totalorder %s45, 1
      %p147 = por %p145, %p146
      %p148 = scmp.ne.s32.totalorder %s139, %s140
      %p149 = scmp.eq.s32.totalorder %s45, 0
      %p150 = por %p148, %p149
      %p151 = scmp.ne.s32.totalorder %s139, %s140
      %p152 = scmp.eq.s32.totalorder %s46, 1
      %p153 = por %p151, %p152
      %p155 = scmp.ne.s32.totalorder %s140, %s154
      %p156 = scmp.eq.s32.totalorder %s46, 0
      %p157 = por %p155, %p156
      %s159 = sadd.s32 %s158, 1
      %p162 = scmp.eq.s32.totalorder %s40, 1
      %p163 = scmp.ne.s32.totalorder %s158, %s160
      %p164 = scmp.eq.s32.totalorder %s40, 0
      %p165 = por %p163, %p164
      %p166 = scmp.ne.s32.totalorder %s158, %s160
      %p167 = scmp.eq.s32.totalorder %s45, 1
      %p168 = por %p166, %p167
      %p169 = scmp.ne.s32.totalorder %s160, %s161
      %p170 = scmp.eq.s32.totalorder %s45, 0
      %p171 = por %p169, %p170
      %p172 = scmp.ne.s32.totalorder %s160, %s161
      %p173 = scmp.eq.s32.totalorder %s46, 1
      %p174 = por %p172, %p173
      %p176 = scmp.ne.s32.totalorder %s161, %s175
      %p177 = scmp.eq.s32.totalorder %s46, 0
      %p178 = por %p176, %p177
      %s180 = sadd.s32 %s179, 1
      %p183 = scmp.eq.s32.totalorder %s40, 1
      %p184 = scmp.ne.s32.totalorder %s179, %s181
      %p185 = scmp.eq.s32.totalorder %s40, 0
      %p186 = por %p184, %p185
      %p187 = scmp.ne.s32.totalorder %s179, %s181
      %p188 = scmp.eq.s32.totalorder %s45, 1
      %p189 = por %p187, %p188
      %p190 = scmp.ne.s32.totalorder %s181, %s182
      %p191 = scmp.eq.s32.totalorder %s45, 0
      %p192 = por %p190, %p191
      %p193 = scmp.ne.s32.totalorder %s181, %s182
      %p194 = scmp.eq.s32.totalorder %s46, 1
      %p195 = por %p193, %p194
      %p197 = scmp.ne.s32.totalorder %s182, %s196
      %p198 = scmp.eq.s32.totalorder %s46, 0
      %p199 = por %p197, %p198
      %s201 = sadd.s32 %s200, 1
      %p204 = scmp.eq.s32.totalorder %s40, 1
      %p205 = scmp.ne.s32.totalorder %s200, %s202
      %p206 = scmp.eq.s32.totalorder %s40, 0
      %p207 = por %p205, %p206
      %p208 = scmp.ne.s32.totalorder %s200, %s202
      %p209 = scmp.eq.s32.totalorder %s45, 1
      %p210 = por %p208, %p209
      %p211 = scmp.ne.s32.totalorder %s202, %s203
      %p212 = scmp.eq.s32.totalorder %s45, 0
      %p213 = por %p211, %p212
      %p214 = scmp.ne.s32.totalorder %s202, %s203
      %p215 = scmp.eq.s32.totalorder %s46, 1
      %p216 = por %p214, %p215
      %p218 = scmp.ne.s32.totalorder %s203, %s217
      %p219 = scmp.eq.s32.totalorder %s46, 0
      %p220 = por %p218, %p219
      %s222 = sadd.s32 %s221, 1
      %p225 = scmp.eq.s32.totalorder %s40, 1
      %p226 = scmp.ne.s32.totalorder %s221, %s223
      %p227 = scmp.eq.s32.totalorder %s40, 0
      %p228 = por %p226, %p227
      %p229 = scmp.ne.s32.totalorder %s221, %s223
      %p230 = scmp.eq.s32.totalorder %s45, 1
      %p231 = por %p229, %p230
      %p232 = scmp.ne.s32.totalorder %s223, %s224
      %p233 = scmp.eq.s32.totalorder %s45, 0
      %p234 = por %p232, %p233
      %p235 = scmp.ne.s32.totalorder %s223, %s224
      %p236 = scmp.eq.s32.totalorder %s46, 1
      %p237 = por %p235, %p236
      %p239 = scmp.ne.s32.totalorder %s224, %s238
      %p240 = scmp.eq.s32.totalorder %s46, 0
      %p241 = por %p239, %p240
      %s243 = sadd.s32 %s242, 1
      %p246 = scmp.eq.s32.totalorder %s40, 1
      %p247 = scmp.ne.s32.totalorder %s242, %s244
      %p248 = scmp.eq.s32.totalorder %s40, 0
      %p249 = por %p247, %p248
      %p250 = scmp.ne.s32.totalorder %s242, %s244
      %p251 = scmp.eq.s32.totalorder %s45, 1
      %p252 = por %p250, %p251
      %p253 = scmp.ne.s32.totalorder %s244, %s245
      %p254 = scmp.eq.s32.totalorder %s45, 0
      %p255 = por %p253, %p254
      %p256 = scmp.ne.s32.totalorder %s244, %s245
      %p257 = scmp.eq.s32.totalorder %s46, 1
      %p258 = por %p256, %p257
      %p260 = scmp.ne.s32.totalorder %s245, %s259
      %p261 = scmp.eq.s32.totalorder %s46, 0
      %p262 = por %p260, %p261
      %s264 = sadd.s32 %s263, 1
      %p267 = scmp.eq.s32.totalorder %s40, 1
      %p268 = scmp.ne.s32.totalorder %s263, %s265
      %p269 = scmp.eq.s32.totalorder %s40, 0
      %p270 = por %p268, %p269
      %p271 = scmp.ne.s32.totalorder %s263, %s265
      %p272 = scmp.eq.s32.totalorder %s45, 1
      %p273 = por %p271, %p272
      %p274 = scmp.ne.s32.totalorder %s265, %s266
      %p275 = scmp.eq.s32.totalorder %s45, 0
      %p276 = por %p274, %p275
      %p277 = scmp.ne.s32.totalorder %s265, %s266
      %p278 = scmp.eq.s32.totalorder %s46, 1
      %p279 = por %p277, %p278
      %p281 = scmp.ne.s32.totalorder %s266, %s280
      %p282 = scmp.eq.s32.totalorder %s46, 0
      %p283 = por %p281, %p282
      %s285 = sadd.s32 %s284, 1
      %p288 = scmp.eq.s32.totalorder %s40, 1
      %p289 = scmp.ne.s32.totalorder %s284, %s286
      %p290 = scmp.eq.s32.totalorder %s40, 0
      %p291 = por %p289, %p290
      %p292 = scmp.ne.s32.totalorder %s284, %s286
      %p293 = scmp.eq.s32.totalorder %s45, 1
      %p294 = por %p292, %p293
      %p295 = scmp.ne.s32.totalorder %s286, %s287
      %p296 = scmp.eq.s32.totalorder %s45, 0
      %p297 = por %p295, %p296
      %p298 = scmp.ne.s32.totalorder %s286, %s287
      %p299 = scmp.eq.s32.totalorder %s46, 1
      %p300 = por %p298, %p299
      %p302 = scmp.ne.s32.totalorder %s287, %s301
      %p303 = scmp.eq.s32.totalorder %s46, 0
      %p304 = por %p302, %p303
      %s306 = sadd.s32 %s305, 1
      %p309 = scmp.eq.s32.totalorder %s40, 1
      %p310 = scmp.ne.s32.totalorder %s305, %s307
      %p311 = scmp.eq.s32.totalorder %s40, 0
      %p312 = por %p310, %p311
      %p313 = scmp.ne.s32.totalorder %s305, %s307
      %p314 = scmp.eq.s32.totalorder %s45, 1
      %p315 = por %p313, %p314
      %p316 = scmp.ne.s32.totalorder %s307, %s308
      %p317 = scmp.eq.s32.totalorder %s45, 0
      %p318 = por %p316, %p317
      %p319 = scmp.ne.s32.totalorder %s307, %s308
      %p320 = scmp.eq.s32.totalorder %s46, 1
      %p321 = por %p319, %p320
      %p323 = scmp.ne.s32.totalorder %s308, %s322
      %p324 = scmp.eq.s32.totalorder %s46, 0
      %p325 = por %p323, %p324
      %s327 = sadd.s32 %s326, 1
      %p330 = scmp.eq.s32.totalorder %s40, 1
      %p331 = scmp.ne.s32.totalorder %s326, %s328
      %p332 = scmp.eq.s32.totalorder %s40, 0
      %p333 = por %p331, %p332
      %p334 = scmp.ne.s32.totalorder %s326, %s328
      %p335 = scmp.eq.s32.totalorder %s45, 1
      %p336 = por %p334, %p335
      %p337 = scmp.ne.s32.totalorder %s328, %s329
      %p338 = scmp.eq.s32.totalorder %s45, 0
      %p339 = por %p337, %p338
      %p340 = scmp.ne.s32.totalorder %s328, %s329
      %p341 = scmp.eq.s32.totalorder %s46, 1
      %p342 = por %p340, %p341
      %p344 = scmp.ne.s32.totalorder %s329, %s343
      %p345 = scmp.eq.s32.totalorder %s46, 0
      %p346 = por %p344, %p345
      %s348 = sadd.s32 %s347, 1
      %p351 = scmp.eq.s32.totalorder %s40, 1
      %p352 = scmp.ne.s32.totalorder %s347, %s349
      %p353 = scmp.eq.s32.totalorder %s40, 0
      %p354 = por %p352, %p353
      %p355 = scmp.ne.s32.totalorder %s347, %s349
      %p356 = scmp.eq.s32.totalorder %s45, 1
      %p357 = por %p355, %p356
      %p358 = scmp.ne.s32.totalorder %s349, %s350
      %p359 = scmp.eq.s32.totalorder %s45, 0
      %p360 = por %p358, %p359
      %p361 = scmp.ne.s32.totalorder %s349, %s350
      %p362 = scmp.eq.s32.totalorder %s46, 1
      %p363 = por %p361, %p362
      %p365 = scmp.ne.s32.totalorder %s350, %s364
      %p366 = scmp.eq.s32.totalorder %s46, 0
      %p367 = por %p365, %p366
      %s369 = sadd.s32 %s368, 1
      %p372 = scmp.eq.s32.totalorder %s40, 1
      %p373 = scmp.ne.s32.totalorder %s368, %s370
      %p374 = scmp.eq.s32.totalorder %s40, 0
      %p375 = por %p373, %p374
      %p376 = scmp.ne.s32.totalorder %s368, %s370
      %p377 = scmp.eq.s32.totalorder %s45, 1
      %p378 = por %p376, %p377
      %p379 = scmp.ne.s32.totalorder %s370, %s371
      %p380 = scmp.eq.s32.totalorder %s45, 0
      %p381 = por %p379, %p380
      %p382 = scmp.ne.s32.totalorder %s370, %s371
      %p383 = scmp.eq.s32.totalorder %s46, 1
      %p384 = por %p382, %p383
      %p386 = scmp.ne.s32.totalorder %s371, %s385
      %p387 = scmp.eq.s32.totalorder %s46, 0
      %p388 = por %p386, %p387
      %s390 = sadd.s32 %s389, 1
      %p393 = scmp.eq.s32.totalorder %s40, 1
      %p394 = scmp.ne.s32.totalorder %s389, %s391
      %p395 = scmp.eq.s32.totalorder %s40, 0
      %p396 = por %p394, %p395
      %p397 = scmp.ne.s32.totalorder %s389, %s391
      %p398 = scmp.eq.s32.totalorder %s45, 1
      %p399 = por %p397, %p398
      %p400 = scmp.ne.s32.totalorder %s391, %s392
      %p401 = scmp.eq.s32.totalorder %s45, 0
      %p402 = por %p400, %p401
      %p403 = scmp.ne.s32.totalorder %s391, %s392
      %p404 = scmp.eq.s32.totalorder %s46, 1
      %p405 = por %p403, %p404
      %p407 = scmp.ne.s32.totalorder %s392, %s406
      %p408 = scmp.eq.s32.totalorder %s46, 0
      %p409 = por %p407, %p408
      %s411 = sadd.s32 %s410, 1
      %p414 = scmp.eq.s32.totalorder %s40, 1
      %p415 = scmp.ne.s32.totalorder %s410, %s412
      %p416 = scmp.eq.s32.totalorder %s40, 0
      %p417 = por %p415, %p416
      %p418 = scmp.ne.s32.totalorder %s410, %s412
      %p419 = scmp.eq.s32.totalorder %s45, 1
      %p420 = por %p418, %p419
      %p421 = scmp.ne.s32.totalorder %s412, %s413
      %p422 = scmp.eq.s32.totalorder %s45, 0
      %p423 = por %p421, %p422
      %p424 = scmp.ne.s32.totalorder %s412, %s413
      %p425 = scmp.eq.s32.totalorder %s46, 1
      %p426 = por %p424, %p425
      %p428 = scmp.ne.s32.totalorder %s413, %s427
      %p429 = scmp.eq.s32.totalorder %s46, 0
      %p430 = por %p428, %p429
      %s432 = sadd.s32 %s431, 1
      %p435 = scmp.eq.s32.totalorder %s40, 1
      %p436 = scmp.ne.s32.totalorder %s431, %s433
      %p437 = scmp.eq.s32.totalorder %s40, 0
      %p438 = por %p436, %p437
      %p439 = scmp.ne.s32.totalorder %s431, %s433
      %p440 = scmp.eq.s32.totalorder %s45, 1
      %p441 = por %p439, %p440
      %p442 = scmp.ne.s32.totalorder %s433, %s434
      %p443 = scmp.eq.s32.totalorder %s45, 0
      %p444 = por %p442, %p443
      %p445 = scmp.ne.s32.totalorder %s433, %s434
      %p446 = scmp.eq.s32.totalorder %s46, 1
      %p447 = por %p445, %p446
      %p449 = scmp.ne.s32.totalorder %s434, %s448
      %p450 = scmp.eq.s32.totalorder %s46, 0
      %p451 = por %p449, %p450
      %s453 = sadd.s32 %s452, 1
      %p456 = scmp.eq.s32.totalorder %s40, 1
      %p457 = scmp.ne.s32.totalorder %s452, %s454
      %p458 = scmp.eq.s32.totalorder %s40, 0
      %p459 = por %p457, %p458
      %p460 = scmp.ne.s32.totalorder %s452, %s454
      %p461 = scmp.eq.s32.totalorder %s45, 1
      %p462 = por %p460, %p461
      %p463 = scmp.ne.s32.totalorder %s454, %s455
      %p464 = scmp.eq.s32.totalorder %s45, 0
      %p465 = por %p463, %p464
      %p466 = scmp.ne.s32.totalorder %s454, %s455
      %p467 = scmp.eq.s32.totalorder %s46, 1
      %p468 = por %p466, %p467
      %p470 = scmp.ne.s32.totalorder %s455, %s469
      %p471 = scmp.eq.s32.totalorder %s46, 0
      %p472 = por %p470, %p471
      %s474 = sadd.s32 %s473, 1
      %p477 = scmp.eq.s32.totalorder %s40, 1
      %p478 = scmp.ne.s32.totalorder %s473, %s475
      %p479 = scmp.eq.s32.totalorder %s40, 0
      %p480 = por %p478, %p479
      %p481 = scmp.ne.s32.totalorder %s473, %s475
      %p482 = scmp.eq.s32.totalorder %s45, 1
      %p483 = por %p481, %p482
      %p484 = scmp.ne.s32.totalorder %s475, %s476
      %p485 = scmp.eq.s32.totalorder %s45, 0
      %p486 = por %p484, %p485
      %p487 = scmp.ne.s32.totalorder %s475, %s476
      %p488 = scmp.eq.s32.totalorder %s46, 1
      %p489 = por %p487, %p488
      %p491 = scmp.ne.s32.totalorder %s476, %s490
      %p492 = scmp.eq.s32.totalorder %s46, 0
      %p493 = por %p491, %p492
      %s495 = sadd.s32 %s494, 1
      %p498 = scmp.eq.s32.totalorder %s40, 1
      %p499 = scmp.ne.s32.totalorder %s494, %s496
      %p500 = scmp.eq.s32.totalorder %s40, 0
      %p501 = por %p499, %p500
      %p502 = scmp.ne.s32.totalorder %s494, %s496
      %p503 = scmp.eq.s32.totalorder %s45, 1
      %p504 = por %p502, %p503
      %p505 = scmp.ne.s32.totalorder %s496, %s497
      %p506 = scmp.eq.s32.totalorder %s45, 0
      %p507 = por %p505, %p506
      %p508 = scmp.ne.s32.totalorder %s496, %s497
      %p509 = scmp.eq.s32.totalorder %s46, 1
      %p510 = por %p508, %p509
      %p512 = scmp.ne.s32.totalorder %s497, %s511
      %p513 = scmp.eq.s32.totalorder %s46, 0
      %p514 = por %p512, %p513
      %s516 = sadd.s32 %s515, 1
      %p519 = scmp.eq.s32.totalorder %s40, 1
      %p520 = scmp.ne.s32.totalorder %s515, %s517
      %p521 = scmp.eq.s32.totalorder %s40, 0
      %p522 = por %p520, %p521
      %p523 = scmp.ne.s32.totalorder %s515, %s517
      %p524 = scmp.eq.s32.totalorder %s45, 1
      %p525 = por %p523, %p524
      %p526 = scmp.ne.s32.totalorder %s517, %s518
      %p527 = scmp.eq.s32.totalorder %s45, 0
      %p528 = por %p526, %p527
      %p529 = scmp.ne.s32.totalorder %s517, %s518
      %p530 = scmp.eq.s32.totalorder %s46, 1
      %p531 = por %p529, %p530
      %p533 = scmp.ne.s32.totalorder %s518, %s532
      %p534 = scmp.eq.s32.totalorder %s46, 0
      %p535 = por %p533, %p534
      %s537 = sadd.s32 %s536, 1
      %p540 = scmp.eq.s32.totalorder %s40, 1
      %p541 = scmp.ne.s32.totalorder %s536, %s538
      %p542 = scmp.eq.s32.totalorder %s40, 0
      %p543 = por %p541, %p542
      %p544 = scmp.ne.s32.totalorder %s536, %s538
      %p545 = scmp.eq.s32.totalorder %s45, 1
      %p546 = por %p544, %p545
      %p547 = scmp.ne.s32.totalorder %s538, %s539
      %p548 = scmp.eq.s32.totalorder %s45, 0
      %p549 = por %p547, %p548
      %p550 = scmp.ne.s32.totalorder %s538, %s539
      %p551 = scmp.eq.s32.totalorder %s46, 1
      %p552 = por %p550, %p551
      %p554 = scmp.ne.s32.totalorder %s539, %s553
      %p555 = scmp.eq.s32.totalorder %s46, 0
      %p556 = por %p554, %p555
      %s557 = ssub.s32 %s40, %s47
      %p558 = scmp.eq.s32.totalorder %s557, 0
      %s560 = sadd.s32 %s559, 1
      %s561 = scalar_select %p558, %s559, %s560
      %p564 = pneg %p558
      %p565 = scmp.eq.s32.totalorder %s40, 1
      %p566 = por %p564, %p565
      %p567 = scmp.ne.s32.totalorder %s559, %s562
      %p568 = scmp.eq.s32.totalorder %s40, 0
      %p569 = por %p567, %p568
      %p570 = scmp.ne.s32.totalorder %s559, %s562
      %p571 = scmp.eq.s32.totalorder %s45, 1
      %p572 = por %p570, %p571
      %p573 = scmp.ne.s32.totalorder %s562, %s563
      %p574 = scmp.eq.s32.totalorder %s45, 0
      %p575 = por %p573, %p574
      %p576 = scmp.ne.s32.totalorder %s562, %s563
      %p577 = scmp.eq.s32.totalorder %s46, 1
      %p578 = por %p576, %p577
      %p580 = scmp.ne.s32.totalorder %s563, %s579
      %p581 = scmp.eq.s32.totalorder %s46, 0
      %p582 = por %p580, %p581
      %p583 = scmp.le.s32.totalorder 1, %s40
      %p584 = scmp.lt.s32.totalorder %s40, 3
      %p585 = pnand %p583, %p584
      %p586 = pneg %p585
      // Predicated region
      $region9: #{tpu_custom_call.1} parent=5 // pred_check
        _
      $region10: #{tpu_custom_call.1} parent=5 // pred_check_branch
        %588 = sbr.rel (%p585) target = $region12
      $region11: #{tpu_custom_call.1} parent=5 // pred_region
        %s589 = ssub.s32 %s40, 1
        // Predicated region
        $region13: #{tpu_custom_call.1} parent=11 // pred_check
          %p590 = pneg %p87
        $region14: #{tpu_custom_call.1} parent=11 // pred_check_branch
          %592 = sbr.rel (%p590) target = $region16
        $region15: #{tpu_custom_call.1} parent=11 // pred_region
          %s594 = ssub.s32 768, 768
          %595 = vsyncadd [#allocation3], %s594
          %s596 = sshll.u32 [#allocation2], 4
          %s597 = int_to_ptr.vmem [resolvable:$true] %s596
          %602 = dma.hbm_to_vmem [thread:$0]  %s1, 768, %s597, [#allocation3], 192, 192, 12
        $region16: #{tpu_custom_call.1} parent=11 // pred_fallthru
          _
        // Predicated region
        $region17: #{tpu_custom_call.1} parent=11 // pred_check
          %p603 = pneg %p108
        $region18: #{tpu_custom_call.1} parent=11 // pred_check_branch
          %605 = sbr.rel (%p603) target = $region20
        $region19: #{tpu_custom_call.1} parent=11 // pred_region
          %s607 = ssub.s32 48, 48
          %608 = vsyncadd [#allocation6], %s607
          %s610 = sshll.u32 [#allocation5], 4
          %s611 = int_to_ptr.vmem [resolvable:$true] %s610
          %613 = dma.hbm_to_vmem [thread:$0]  %s2, 48, %s611, [#allocation6]
        $region20: #{tpu_custom_call.1} parent=11 // pred_fallthru
          _
        // Predicated region
        $region21: #{tpu_custom_call.1} parent=11 // pred_check
          %p614 = pneg %p129
        $region22: #{tpu_custom_call.1} parent=11 // pred_check_branch
          %616 = sbr.rel (%p614) target = $region24
        $region23: #{tpu_custom_call.1} parent=11 // pred_region
          _
        $region24: #{tpu_custom_call.1} parent=11 // pred_fallthru
          _
        // Predicated region
        $region25: #{tpu_custom_call.1} parent=11 // pred_check
          %p617 = pneg %p150
        $region26: #{tpu_custom_call.1} parent=11 // pred_check_branch
          %619 = sbr.rel (%p617) target = $region28
        $region27: #{tpu_custom_call.1} parent=11 // pred_region
          _
        $region28: #{tpu_custom_call.1} parent=11 // pred_fallthru
          _
        // Predicated region
        $region29: #{tpu_custom_call.1} parent=11 // pred_check
          %p620 = pneg %p171
        $region30: #{tpu_custom_call.1} parent=11 // pred_check_branch
          %622 = sbr.rel (%p620) target = $region32
        $region31: #{tpu_custom_call.1} parent=11 // pred_region
          _
        $region32: #{tpu_custom_call.1} parent=11 // pred_fallthru
          _
        // Predicated region
        $region33: #{tpu_custom_call.1} parent=11 // pred_check
          %p623 = pneg %p192
        $region34: #{tpu_custom_call.1} parent=11 // pred_check_branch
          %625 = sbr.rel (%p623) target = $region36
        $region35: #{tpu_custom_call.1} parent=11 // pred_region
          %s627 = ssub.s32 16, 16
          %628 = vsyncadd [#allocation6], %s627
          %s630 = sshll.u32 [#allocation7], 4
          %s631 = int_to_ptr.vmem [resolvable:$true] %s630
          %633 = dma.hbm_to_vmem [thread:$0]  %s6, 16, %s631, [#allocation6]
        $region36: #{tpu_custom_call.1} parent=11 // pred_fallthru
          _
        // Predicated region
        $region37: #{tpu_custom_call.1} parent=11 // pred_check
          %p634 = pneg %p213
        $region38: #{tpu_custom_call.1} parent=11 // pred_check_branch
          %636 = sbr.rel (%p634) target = $region40
        $region39: #{tpu_custom_call.1} parent=11 // pred_region
          %s638 = ssub.s32 1024, 1024
          %639 = vsyncadd [#allocation9], %s638
          %s640 = sshll.u32 [#allocation8], 4
          %s641 = int_to_ptr.vmem [resolvable:$true] %s640
          %646 = dma.hbm_to_vmem [thread:$0]  %s7, 1024, %s641, [#allocation9], 64, 64, 4
        $region40: #{tpu_custom_call.1} parent=11 // pred_fallthru
          _
        // Predicated region
        $region41: #{tpu_custom_call.1} parent=11 // pred_check
          %p647 = pneg %p234
        $region42: #{tpu_custom_call.1} parent=11 // pred_check_branch
          %649 = sbr.rel (%p647) target = $region44
        $region43: #{tpu_custom_call.1} parent=11 // pred_region
          %s651 = ssub.s32 16, 16
          %652 = vsyncadd [#allocation9], %s651
          %s654 = sshll.u32 [#allocation10], 4
          %s655 = int_to_ptr.vmem [resolvable:$true] %s654
          %657 = dma.hbm_to_vmem [thread:$0]  %s8, 16, %s655, [#allocation9]
        $region44: #{tpu_custom_call.1} parent=11 // pred_fallthru
          _
        // Predicated region
        $region45: #{tpu_custom_call.1} parent=11 // pred_check
          %p658 = pneg %p255
        $region46: #{tpu_custom_call.1} parent=11 // pred_check_branch
          %660 = sbr.rel (%p658) target = $region48
        $region47: #{tpu_custom_call.1} parent=11 // pred_region
          _
        $region48: #{tpu_custom_call.1} parent=11 // pred_fallthru
          _
        // Predicated region
        $region49: #{tpu_custom_call.1} parent=11 // pred_check
          %p661 = pneg %p276
        $region50: #{tpu_custom_call.1} parent=11 // pred_check_branch
          %663 = sbr.rel (%p661) target = $region52
        $region51: #{tpu_custom_call.1} parent=11 // pred_region
          %s665 = ssub.s32 16, 16
          %666 = vsyncadd [#allocation12], %s665
          %s668 = sshll.u32 [#allocation11], 4
          %s669 = int_to_ptr.vmem [resolvable:$true] %s668
          %671 = dma.hbm_to_vmem [thread:$0]  %s10, 16, %s669, [#allocation12]
        $region52: #{tpu_custom_call.1} parent=11 // pred_fallthru
          _
        // Predicated region
        $region53: #{tpu_custom_call.1} parent=11 // pred_check
          %p672 = pneg %p297
        $region54: #{tpu_custom_call.1} parent=11 // pred_check_branch
          %674 = sbr.rel (%p672) target = $region56
        $region55: #{tpu_custom_call.1} parent=11 // pred_region
          %s676 = ssub.s32 1024, 1024
          %677 = vsyncadd [#allocation12], %s676
          %s678 = sshll.u32 [#allocation13], 4
          %s679 = int_to_ptr.vmem [resolvable:$true] %s678
          %684 = dma.hbm_to_vmem [thread:$0]  %s11, 1024, %s679, [#allocation12], 64, 64, 4
        $region56: #{tpu_custom_call.1} parent=11 // pred_fallthru
          _
        // Predicated region
        $region57: #{tpu_custom_call.1} parent=11 // pred_check
          %p685 = pneg %p318
        $region58: #{tpu_custom_call.1} parent=11 // pred_check_branch
          %687 = sbr.rel (%p685) target = $region60
        $region59: #{tpu_custom_call.1} parent=11 // pred_region
          %s689 = ssub.s32 16, 16
          %690 = vsyncadd [#allocation15], %s689
          %s692 = sshll.u32 [#allocation14], 4
          %s693 = int_to_ptr.vmem [resolvable:$true] %s692
          %695 = dma.hbm_to_vmem [thread:$0]  %s12, 16, %s693, [#allocation15]
        $region60: #{tpu_custom_call.1} parent=11 // pred_fallthru
          _
        // Predicated region
        $region61: #{tpu_custom_call.1} parent=11 // pred_check
          %p696 = pneg %p339
        $region62: #{tpu_custom_call.1} parent=11 // pred_check_branch
          %698 = sbr.rel (%p696) target = $region64
        $region63: #{tpu_custom_call.1} parent=11 // pred_region
          %s700 = ssub.s32 4096, 4096
          %701 = vsyncadd [#allocation15], %s700
          %s702 = sshll.u32 [#allocation16], 4
          %s703 = int_to_ptr.vmem [resolvable:$true] %s702
          %708 = dma.hbm_to_vmem [thread:$0]  %s13, 4096, %s703, [#allocation15], 128, 128, 8
        $region64: #{tpu_custom_call.1} parent=11 // pred_fallthru
          _
        // Predicated region
        $region65: #{tpu_custom_call.1} parent=11 // pred_check
          %p709 = pneg %p360
        $region66: #{tpu_custom_call.1} parent=11 // pred_check_branch
          %711 = sbr.rel (%p709) target = $region68
        $region67: #{tpu_custom_call.1} parent=11 // pred_region
          %s713 = ssub.s32 32, 32
          %714 = vsyncadd [#allocation18], %s713
          %s716 = sshll.u32 [#allocation17], 4
          %s717 = int_to_ptr.vmem [resolvable:$true] %s716
          %719 = dma.hbm_to_vmem [thread:$0]  %s14, 32, %s717, [#allocation18]
        $region68: #{tpu_custom_call.1} parent=11 // pred_fallthru
          _
        // Predicated region
        $region69: #{tpu_custom_call.1} parent=11 // pred_check
          %p720 = pneg %p381
        $region70: #{tpu_custom_call.1} parent=11 // pred_check_branch
          %722 = sbr.rel (%p720) target = $region72
        $region71: #{tpu_custom_call.1} parent=11 // pred_region
          %s724 = ssub.s32 1280, 1280
          %725 = vsyncadd [#allocation18], %s724
          %s726 = sshll.u32 [#allocation19], 4
          %s727 = int_to_ptr.vmem [resolvable:$true] %s726
          %732 = dma.hbm_to_vmem [thread:$0]  %s15, 1280, %s727, [#allocation18], 128, 128, 8
        $region72: #{tpu_custom_call.1} parent=11 // pred_fallthru
          _
        // Predicated region
        $region73: #{tpu_custom_call.1} parent=11 // pred_check
          %p733 = pneg %p402
        $region74: #{tpu_custom_call.1} parent=11 // pred_check_branch
          %735 = sbr.rel (%p733) target = $region76
        $region75: #{tpu_custom_call.1} parent=11 // pred_region
          _
        $region76: #{tpu_custom_call.1} parent=11 // pred_fallthru
          _
        // Predicated region
        $region77: #{tpu_custom_call.1} parent=11 // pred_check
          %p736 = pneg %p423
        $region78: #{tpu_custom_call.1} parent=11 // pred_check_branch
          %738 = sbr.rel (%p736) target = $region80
        $region79: #{tpu_custom_call.1} parent=11 // pred_region
          %s740 = ssub.s32 32, 32
          %741 = vsyncadd [#allocation21], %s740
          %s743 = sshll.u32 [#allocation20], 4
          %s744 = int_to_ptr.vmem [resolvable:$true] %s743
          %746 = dma.hbm_to_vmem [thread:$0]  %s17, 32, %s744, [#allocation21]
        $region80: #{tpu_custom_call.1} parent=11 // pred_fallthru
          _
        // Predicated region
        $region81: #{tpu_custom_call.1} parent=11 // pred_check
          %p747 = pneg %p444
        $region82: #{tpu_custom_call.1} parent=11 // pred_check_branch
          %749 = sbr.rel (%p747) target = $region84
        $region83: #{tpu_custom_call.1} parent=11 // pred_region
          %s751 = ssub.s32 320, 320
          %752 = vsyncadd [#allocation21], %s751
          %s753 = sshll.u32 [#allocation22], 4
          %s754 = int_to_ptr.vmem [resolvable:$true] %s753
          %759 = dma.hbm_to_vmem [thread:$0]  %s18, 320, %s754, [#allocation21], 64, 64, 4
        $region84: #{tpu_custom_call.1} parent=11 // pred_fallthru
          _
        // Predicated region
        $region85: #{tpu_custom_call.1} parent=11 // pred_check
          %p760 = pneg %p465
        $region86: #{tpu_custom_call.1} parent=11 // pred_check_branch
          %762 = sbr.rel (%p760) target = $region88
        $region87: #{tpu_custom_call.1} parent=11 // pred_region
          _
        $region88: #{tpu_custom_call.1} parent=11 // pred_fallthru
          _
        // Predicated region
        $region89: #{tpu_custom_call.1} parent=11 // pred_check
          %p763 = pneg %p486
        $region90: #{tpu_custom_call.1} parent=11 // pred_check_branch
          %765 = sbr.rel (%p763) target = $region92
        $region91: #{tpu_custom_call.1} parent=11 // pred_region
          _
        $region92: #{tpu_custom_call.1} parent=11 // pred_fallthru
          _
        // Predicated region
        $region93: #{tpu_custom_call.1} parent=11 // pred_check
          %p766 = pneg %p507
        $region94: #{tpu_custom_call.1} parent=11 // pred_check_branch
          %768 = sbr.rel (%p766) target = $region96
        $region95: #{tpu_custom_call.1} parent=11 // pred_region
          _
        $region96: #{tpu_custom_call.1} parent=11 // pred_fallthru
          _
        // Predicated region
        $region97: #{tpu_custom_call.1} parent=11 // pred_check
          %p769 = pneg %p528
        $region98: #{tpu_custom_call.1} parent=11 // pred_check_branch
          %771 = sbr.rel (%p769) target = $region100
        $region99: #{tpu_custom_call.1} parent=11 // pred_region
          _
        $region100: #{tpu_custom_call.1} parent=11 // pred_fallthru
          _
        // Predicated region
        $region101: #{tpu_custom_call.1} parent=11 // pred_check
          %p772 = pneg %p549
        $region102: #{tpu_custom_call.1} parent=11 // pred_check_branch
          %774 = sbr.rel (%p772) target = $region104
        $region103: #{tpu_custom_call.1} parent=11 // pred_region
          _
        $region104: #{tpu_custom_call.1} parent=11 // pred_fallthru
          _
      $region12: #{tpu_custom_call.1} parent=5 // pred_fallthru
        _
      %p775 = scmp.lt.s32.totalorder %s40, 2
      // Predicated region
      $region105: #{tpu_custom_call.1} parent=5 // pred_check
        %p776 = pneg %p775
      $region106: #{tpu_custom_call.1} parent=5 // pred_check_branch
        %778 = sbr.rel (%p776) target = $region108
      $region107: #{tpu_custom_call.1} parent=5 // pred_region
        // Predicated region
        $region109: #{tpu_custom_call.1} parent=107 // pred_check
          %p779 = pneg %p60
        $region110: #{tpu_custom_call.1} parent=107 // pred_check_branch
          %781 = sbr.rel (%p779) target = $region112
        $region111: #{tpu_custom_call.1} parent=107 // pred_region
          %p782 = scmp.lt.s32.totalorder %s40, 1
          %s783 = scalar_select %p782, %s40, 1
          %s784 = smul.addr %s783, 21
          %s785 = smul.addr %s784, 8
          %s786 = scalar_lea.vmem %s0, %s785
        $region112: #{tpu_custom_call.1} parent=107 // pred_fallthru
          _
      $region108: #{tpu_custom_call.1} parent=5 // pred_fallthru
        _
      %p787 = scmp.le.s32.totalorder 1, %s40
      %p788 = scmp.lt.s32.totalorder %s40, 3
      %p789 = pnand %p787, %p788
      %p790 = pneg %p789
      // Predicated region
      $region113: #{tpu_custom_call.1} parent=5 // pred_check
        _
      $region114: #{tpu_custom_call.1} parent=5 // pred_check_branch
        %792 = sbr.rel (%p789) target = $region116
      $region115: #{tpu_custom_call.1} parent=5 // pred_region
        %s793 = ssub.s32 %s40, 1
        // Predicated region
        $region117: #{tpu_custom_call.1} parent=115 // pred_check
          %p794 = pneg %p87
        $region118: #{tpu_custom_call.1} parent=115 // pred_check_branch
          %796 = sbr.rel (%p794) target = $region120
        $region119: #{tpu_custom_call.1} parent=115 // pred_region
          %797 = dma.done [#allocation3], 768
        $region120: #{tpu_custom_call.1} parent=115 // pred_fallthru
          _
        // Predicated region
        $region121: #{tpu_custom_call.1} parent=115 // pred_check
          %p798 = pneg %p108
        $region122: #{tpu_custom_call.1} parent=115 // pred_check_branch
          %800 = sbr.rel (%p798) target = $region124
        $region123: #{tpu_custom_call.1} parent=115 // pred_region
          %801 = dma.done [#allocation6], 48
        $region124: #{tpu_custom_call.1} parent=115 // pred_fallthru
          _
        // Predicated region
        $region125: #{tpu_custom_call.1} parent=115 // pred_check
          %p802 = pneg %p192
        $region126: #{tpu_custom_call.1} parent=115 // pred_check_branch
          %804 = sbr.rel (%p802) target = $region128
        $region127: #{tpu_custom_call.1} parent=115 // pred_region
          %805 = dma.done [#allocation6], 16
        $region128: #{tpu_custom_call.1} parent=115 // pred_fallthru
          _
        // Predicated region
        $region129: #{tpu_custom_call.1} parent=115 // pred_check
          %p806 = pneg %p213
        $region130: #{tpu_custom_call.1} parent=115 // pred_check_branch
          %808 = sbr.rel (%p806) target = $region132
        $region131: #{tpu_custom_call.1} parent=115 // pred_region
          %809 = dma.done [#allocation9], 1024
        $region132: #{tpu_custom_call.1} parent=115 // pred_fallthru
          _
        // Predicated region
        $region133: #{tpu_custom_call.1} parent=115 // pred_check
          %p810 = pneg %p234
        $region134: #{tpu_custom_call.1} parent=115 // pred_check_branch
          %812 = sbr.rel (%p810) target = $region136
        $region135: #{tpu_custom_call.1} parent=115 // pred_region
          %813 = dma.done [#allocation9], 16
        $region136: #{tpu_custom_call.1} parent=115 // pred_fallthru
          _
        // Predicated region
        $region137: #{tpu_custom_call.1} parent=115 // pred_check
          %p814 = pneg %p276
        $region138: #{tpu_custom_call.1} parent=115 // pred_check_branch
          %816 = sbr.rel (%p814) target = $region140
        $region139: #{tpu_custom_call.1} parent=115 // pred_region
          %817 = dma.done [#allocation12], 16
        $region140: #{tpu_custom_call.1} parent=115 // pred_fallthru
          _
        // Predicated region
        $region141: #{tpu_custom_call.1} parent=115 // pred_check
          %p818 = pneg %p297
        $region142: #{tpu_custom_call.1} parent=115 // pred_check_branch
          %820 = sbr.rel (%p818) target = $region144
        $region143: #{tpu_custom_call.1} parent=115 // pred_region
          %821 = dma.done [#allocation12], 1024
        $region144: #{tpu_custom_call.1} parent=115 // pred_fallthru
          _
        // Predicated region
        $region145: #{tpu_custom_call.1} parent=115 // pred_check
          %p822 = pneg %p318
        $region146: #{tpu_custom_call.1} parent=115 // pred_check_branch
          %824 = sbr.rel (%p822) target = $region148
        $region147: #{tpu_custom_call.1} parent=115 // pred_region
          %825 = dma.done [#allocation15], 16
        $region148: #{tpu_custom_call.1} parent=115 // pred_fallthru
          _
        // Predicated region
        $region149: #{tpu_custom_call.1} parent=115 // pred_check
          %p826 = pneg %p339
        $region150: #{tpu_custom_call.1} parent=115 // pred_check_branch
          %828 = sbr.rel (%p826) target = $region152
        $region151: #{tpu_custom_call.1} parent=115 // pred_region
          %829 = dma.done [#allocation15], 4096
        $region152: #{tpu_custom_call.1} parent=115 // pred_fallthru
          _
        // Predicated region
        $region153: #{tpu_custom_call.1} parent=115 // pred_check
          %p830 = pneg %p360
        $region154: #{tpu_custom_call.1} parent=115 // pred_check_branch
          %832 = sbr.rel (%p830) target = $region156
        $region155: #{tpu_custom_call.1} parent=115 // pred_region
          %833 = dma.done [#allocation18], 32
        $region156: #{tpu_custom_call.1} parent=115 // pred_fallthru
          _
        // Predicated region
        $region157: #{tpu_custom_call.1} parent=115 // pred_check
          %p834 = pneg %p381
        $region158: #{tpu_custom_call.1} parent=115 // pred_check_branch
          %836 = sbr.rel (%p834) target = $region160
        $region159: #{tpu_custom_call.1} parent=115 // pred_region
          %837 = dma.done [#allocation18], 1280
        $region160: #{tpu_custom_call.1} parent=115 // pred_fallthru
          _
        // Predicated region
        $region161: #{tpu_custom_call.1} parent=115 // pred_check
          %p838 = pneg %p423
        $region162: #{tpu_custom_call.1} parent=115 // pred_check_branch
          %840 = sbr.rel (%p838) target = $region164
        $region163: #{tpu_custom_call.1} parent=115 // pred_region
          %841 = dma.done [#allocation21], 32
        $region164: #{tpu_custom_call.1} parent=115 // pred_fallthru
          _
        // Predicated region
        $region165: #{tpu_custom_call.1} parent=115 // pred_check
          %p842 = pneg %p444
        $region166: #{tpu_custom_call.1} parent=115 // pred_check_branch
          %844 = sbr.rel (%p842) target = $region168
        $region167: #{tpu_custom_call.1} parent=115 // pred_region
          %845 = dma.done [#allocation21], 320
        $region168: #{tpu_custom_call.1} parent=115 // pred_fallthru
          _
        %p846 = scmp.lt.s32.totalorder %s45, 1
        %s847 = scalar_select %p846, %s45, 1
        %s848 = smul.addr %s847, 21
        %s849 = smul.addr %s848, 8
        %s850 = scalar_lea.vmem %s0, %s849
        %p851 = pneg %p66
        %p852 = pneg %p63
        %p853 = pneg %p87
        %p854 = pneg %p84
        %p855 = pneg %p108
        %p856 = pneg %p105
        %p857 = pneg %p129
        %p858 = pneg %p126
        %p859 = pneg %p150
        %p860 = pneg %p147
        %p861 = pneg %p171
        %p862 = pneg %p168
        %p863 = pneg %p192
        %p864 = pneg %p189
        %p865 = pneg %p213
        %p866 = pneg %p210
        %p867 = pneg %p234
        %p868 = pneg %p231
        %p869 = pneg %p255
        %p870 = pneg %p252
        %p871 = pneg %p276
        %p872 = pneg %p273
        %p873 = pneg %p297
        %p874 = pneg %p294
        %p875 = pneg %p318
        %p876 = pneg %p315
        %p877 = pneg %p339
        %p878 = pneg %p336
        %p879 = pneg %p360
        %p880 = pneg %p357
        %p881 = pneg %p381
        %p882 = pneg %p378
        %p883 = pneg %p402
        %p884 = pneg %p399
        %p885 = pneg %p423
        %p886 = pneg %p420
        %p887 = pneg %p444
        %p888 = pneg %p441
        %p889 = pneg %p465
        %p890 = pneg %p462
        %p891 = pneg %p486
        %p892 = pneg %p483
        %p893 = pneg %p507
        %p894 = pneg %p504
        %p895 = pneg %p528
        %p896 = pneg %p525
        %p897 = pneg %p549
        %p898 = pneg %p546
        %p899 = pneg %p575
        %p900 = pneg %p572
        %s901 = sand.u32 %s562, 1
        %s902 = scalar_lea.sflag [#allocation4], %s901
        %s903 = sand.u32 %s562, 1
        %s904 = smul.addr %s903, 4
        %s905 = scalar_lea.vmem [#allocation23], %s904
        %p906 = scmp.lt.s32.totalorder %s45, 1
        %s907 = scalar_select %p906, %s45, 1
        %s908 = smul.addr %s907, 21
        %s909 = smul.addr %s908, 8
        %s910 = scalar_lea.vmem %s0, %s909
        %v912 = vld [vmem:[%s910] sm:$0xff]
        %v913 = vld [vmem:[%s910 + $0x8] sm:$0xff]
        %v914 = vld [vmem:[%s910 + $0x10] sm:$0xff]
        %v915 = vld [vmem:[%s910 + $0x18] sm:$0xff]
        %v916 = vld [vmem:[%s910 + $0x20] sm:$0xff]
        %v917 = vld [vmem:[%s910 + $0x28] sm:$0xff]
        %v918 = vld [vmem:[%s910 + $0x30] sm:$0xff]
        %v919 = vld [vmem:[%s910 + $0x38] sm:$0xff]
        %v920 = vld [vmem:[%s910 + $0x40] sm:$0xff]
        %v921 = vld [vmem:[%s910 + $0x48] sm:$0xff]
        %v922 = vld [vmem:[%s910 + $0x50] sm:$0xff]
        %v923 = vld [vmem:[%s910 + $0x58] sm:$0xff]
        %v924 = vld [vmem:[%s910 + $0x60] sm:$0xff]
        %v925 = vld [vmem:[%s910 + $0x68] sm:$0xff]
        %v926 = vld [vmem:[%s910 + $0x70] sm:$0xff]
        %v927 = vld [vmem:[%s910 + $0x78] sm:$0xff]
        %v928 = vld [vmem:[%s910 + $0x80] sm:$0xff]
        %v929 = vld [vmem:[%s910 + $0x88] sm:$0xff]
        %v930 = vld [vmem:[%s910 + $0x90] sm:$0xff]
        %v931 = vld [vmem:[%s910 + $0x98] sm:$0xff]
        %v932 = vld [vmem:[%s910 + $0xa0] sm:$0xf]
        %v933 = vld [vmem:[#allocation2] sm:$0xff]
        %v934 = vld [vmem:[#allocation2 + $0x8] sm:$0xf]
        %v935 = vld [vmem:[#allocation2 + $0xc] sm:$0xff]
        %v936 = vld [vmem:[#allocation2 + $0x14] sm:$0xf]
        %v937 = vld [vmem:[#allocation2 + $0x18] sm:$0xff]
        %v938 = vld [vmem:[#allocation2 + $0x20] sm:$0xf]
        %v939 = vld [vmem:[#allocation2 + $0x24] sm:$0xff]
        %v940 = vld [vmem:[#allocation2 + $0x2c] sm:$0xf]
        %v941 = vpack.c.bf16 %v913, %v912
        %v942 = vpack.c.bf16 %v915, %v914
        %v943 = vpack.c.bf16 %v917, %v916
        %v944 = vpack.c.bf16 %v919, %v918
        %v945 = vpack.c.bf16 %v921, %v920
        %v946 = vpack.c.bf16 %v923, %v922
        %v947 = vpack.c.bf16 %v925, %v924
        %v948 = vpack.c.bf16 %v927, %v926
        %v949 = vpack.c.bf16 %v929, %v928
        %v950 = vpack.c.bf16 %v931, %v930
        %v951 = vpack.c.bf16 %v932, %v932
        %v952 = vld [vmem:[#allocation5] sm:$0x7]
        %v954 = vlaneseq
        %v955 = vshrl.u32 %v954, 7
        %v956 = vsub.s32 0, %v955
        %v957 = vrot.slane %v952, %v956
        %v958 = vlaneseq
        %v959 = vshrl.u32 %v958, 7
        %v960 = vsub.s32 1, %v959
        %v961 = vrot.slane %v952, %v960
        %v962 = vlaneseq
        %v963 = vshrl.u32 %v962, 7
        %v964 = vsub.s32 2, %v963
        %v965 = vrot.slane %v952, %v964
        %v977 = vunpack.c.l.b16 %v933
        %v978 = vunpack.c.h.b16 %v933
        %v979 = vunpack.c.l.b16 %v934
        %v980 = vunpack.c.l.b16 %v935
        %v981 = vunpack.c.h.b16 %v935
        %v982 = vunpack.c.l.b16 %v936
        %v983 = vunpack.c.l.b16 %v937
        %v984 = vunpack.c.h.b16 %v937
        %v985 = vunpack.c.l.b16 %v938
        %v986 = vunpack.c.l.b16 %v939
        %v987 = vunpack.c.h.b16 %v939
        %v988 = vunpack.c.l.b16 %v940
        %v989 = vpack.c.b16 %v980, %v977
        %v990 = vpack.c.b16 %v981, %v978
        %v991 = vpack.c.b16 %v982, %v979
        %v992 = vpack.c.b16 %v986, %v983
        %v993 = vpack.c.b16 %v987, %v984
        %v994 = vpack.c.b16 %v988, %v985
        %vm1001 = vcmask 261120
        %v1003 = vsel %vm1001, %v941, 0
        %v1006 = vsel %vm1001, %v942, 0
        %v1009 = vsel %vm1001, %v943, 0
        %v1012 = vsel %vm1001, %v944, 0
        %v1015 = vsel %vm1001, %v945, 0
        %v1018 = vsel %vm1001, %v946, 0
        %v1021 = vsel %vm1001, %v947, 0
        %v1024 = vsel %vm1001, %v948, 0
        %v1027 = vsel %vm1001, %v949, 0
        %v1030 = vsel %vm1001, %v950, 0
        %v1033 = vsel %vm1001, %v951, 0
        %1035 = vmatprep.subr.bf16.mxu0 %v990
        %1036 = vmatpush1.bf16.msra.mxu0 %v989
        %1037 = vmatprep.subr.bf16.mxu0 %v993
        %1038 = vmatpush1.bf16.msra.mxu0 %v992
        %1039 = vmatprep.subr.bf16.mxu0 0
        %1040 = vmatpush1.bf16.msra.mxu0 0
        %1041 = vmatprep.subr.bf16.mxu0 0
        %1042 = vmatpush1.bf16.msra.mxu0 0
        %1043 = vmatprep.subr.bf16.mxu0 0
        %1044 = vmatpush1.bf16.msra.mxu0 0
        %1045 = vmatprep.subr.bf16.mxu0 0
        %1046 = vmatpush1.bf16.msra.mxu0 0
        %1047 = vmatprep.subr.bf16.mxu0 0
        %1048 = vmatpush1.bf16.msra.mxu0 0
        %1049 = vmatprep.subr.bf16.mxu0 0
        %1050 = vmatpush1.bf16.msra.mxu0 0
        %1051 = vmatprep.subr.bf16.mxu0 0
        %1052 = vmatpush1.bf16.msra.mxu0 0
        %1053 = vmatprep.subr.bf16.mxu0 0
        %1054 = vmatpush1.bf16.msra.mxu0 0
        %1055 = vmatprep.subr.bf16.mxu0 0
        %1056 = vmatpush1.bf16.msra.mxu0 0
        %1057 = vmatprep.subr.bf16.mxu0 0
        %1058 = vmatpush1.bf16.msra.mxu0 0
        %1059 = vmatprep.subr.bf16.mxu0 0
        %1060 = vmatpush1.bf16.msra.mxu0 0
        %1061 = vmatprep.subr.bf16.mxu0 0
        %1062 = vmatpush1.bf16.msra.mxu0 0
        %1063 = vmatprep.subr.bf16.mxu0 0
        %1064 = vmatpush1.bf16.msra.mxu0 0
        %1065 = vmatprep.subr.bf16.mxu0 0
        %1066 = vmatpush1.bf16.msra.mxu0 0
        %1067 = vmatprep.mubr.bf16.mxu0 0
        %1068 = vmatmul.mubr.bf16.gmra.mrb[0].mxu0 %v1003
        %v1069 = vpop.f32.mrb[0].mxu0
        %v1070 = vadd.f32 %v957, %v1069
        %v1071 = vpop.f32.mrb[0].mxu0
        %v1072 = vadd.f32 %v961, %v1071
        %v1073 = vpop.f32.mrb[0].mxu0
        %v1074 = vadd.f32 %v957, %v1073
        %v1075 = vpop.f32.mrb[0].mxu0
        %v1076 = vadd.f32 %v961, %v1075
        %1077 = vmatprep.mubr.bf16.mxu0 0
        %1078 = vmatmul.mubr.bf16.gmra.mrb[0].mxu0 %v1006
        %v1079 = vpop.f32.mrb[0].mxu0
        %v1080 = vadd.f32 %v957, %v1079
        %v1081 = vpop.f32.mrb[0].mxu0
        %v1082 = vadd.f32 %v961, %v1081
        %v1083 = vpop.f32.mrb[0].mxu0
        %v1084 = vadd.f32 %v957, %v1083
        %v1085 = vpop.f32.mrb[0].mxu0
        %v1086 = vadd.f32 %v961, %v1085
        %1087 = vmatprep.mubr.bf16.mxu0 0
        %1088 = vmatmul.mubr.bf16.gmra.mrb[0].mxu0 %v1009
        %v1089 = vpop.f32.mrb[0].mxu0
        %v1090 = vadd.f32 %v957, %v1089
        %v1091 = vpop.f32.mrb[0].mxu0
        %v1092 = vadd.f32 %v961, %v1091
        %v1093 = vpop.f32.mrb[0].mxu0
        %v1094 = vadd.f32 %v957, %v1093
        %v1095 = vpop.f32.mrb[0].mxu0
        %v1096 = vadd.f32 %v961, %v1095
        %1097 = vmatprep.mubr.bf16.mxu0 0
        %1098 = vmatmul.mubr.bf16.gmra.mrb[0].mxu0 %v1012
        %v1099 = vpop.f32.mrb[0].mxu0
        %v1100 = vadd.f32 %v957, %v1099
        %v1101 = vpop.f32.mrb[0].mxu0
        %v1102 = vadd.f32 %v961, %v1101
        %v1103 = vpop.f32.mrb[0].mxu0
        %v1104 = vadd.f32 %v957, %v1103
        %v1105 = vpop.f32.mrb[0].mxu0
        %v1106 = vadd.f32 %v961, %v1105
        %1107 = vmatprep.mubr.bf16.mxu0 0
        %1108 = vmatmul.mubr.bf16.gmra.mrb[0].mxu0 %v1015
        %v1109 = vpop.f32.mrb[0].mxu0
        %v1110 = vadd.f32 %v957, %v1109
        %v1111 = vpop.f32.mrb[0].mxu0
        %v1112 = vadd.f32 %v961, %v1111
        %v1113 = vpop.f32.mrb[0].mxu0
        %v1114 = vadd.f32 %v957, %v1113
        %v1115 = vpop.f32.mrb[0].mxu0
        %v1116 = vadd.f32 %v961, %v1115
        %1117 = vmatprep.mubr.bf16.mxu0 0
        %1118 = vmatmul.mubr.bf16.gmra.mrb[0].mxu0 %v1018
        %v1119 = vpop.f32.mrb[0].mxu0
        %v1120 = vadd.f32 %v957, %v1119
        %v1121 = vpop.f32.mrb[0].mxu0
        %v1122 = vadd.f32 %v961, %v1121
        %v1123 = vpop.f32.mrb[0].mxu0
        %v1124 = vadd.f32 %v957, %v1123
        %v1125 = vpop.f32.mrb[0].mxu0
        %v1126 = vadd.f32 %v961, %v1125
        %1127 = vmatprep.mubr.bf16.mxu0 0
        %1128 = vmatmul.mubr.bf16.gmra.mrb[0].mxu0 %v1021
        %v1129 = vpop.f32.mrb[0].mxu0
        %v1130 = vadd.f32 %v957, %v1129
        %v1131 = vpop.f32.mrb[0].mxu0
        %v1132 = vadd.f32 %v961, %v1131
        %v1133 = vpop.f32.mrb[0].mxu0
        %v1134 = vadd.f32 %v957, %v1133
        %v1135 = vpop.f32.mrb[0].mxu0
        %v1136 = vadd.f32 %v961, %v1135
        %1137 = vmatprep.mubr.bf16.mxu0 0
        %1138 = vmatmul.mubr.bf16.gmra.mrb[0].mxu0 %v1024
        %v1139 = vpop.f32.mrb[0].mxu0
        %v1140 = vadd.f32 %v957, %v1139
        %v1141 = vpop.f32.mrb[0].mxu0
        %v1142 = vadd.f32 %v961, %v1141
        %v1143 = vpop.f32.mrb[0].mxu0
        %v1144 = vadd.f32 %v957, %v1143
        %v1145 = vpop.f32.mrb[0].mxu0
        %v1146 = vadd.f32 %v961, %v1145
        %1147 = vmatprep.mubr.bf16.mxu0 0
        %1148 = vmatmul.mubr.bf16.gmra.mrb[0].mxu0 %v1027
        %v1149 = vpop.f32.mrb[0].mxu0
        %v1150 = vadd.f32 %v957, %v1149
        %v1151 = vpop.f32.mrb[0].mxu0
        %v1152 = vadd.f32 %v961, %v1151
        %v1153 = vpop.f32.mrb[0].mxu0
        %v1154 = vadd.f32 %v957, %v1153
        %v1155 = vpop.f32.mrb[0].mxu0
        %v1156 = vadd.f32 %v961, %v1155
        %1157 = vmatprep.mubr.bf16.mxu0 0
        %1158 = vmatmul.mubr.bf16.gmra.mrb[0].mxu0 %v1030
        %v1159 = vpop.f32.mrb[0].mxu0
        %v1160 = vadd.f32 %v957, %v1159
        %v1161 = vpop.f32.mrb[0].mxu0
        %v1162 = vadd.f32 %v961, %v1161
        %v1163 = vpop.f32.mrb[0].mxu0
        %v1164 = vadd.f32 %v957, %v1163
        %v1165 = vpop.f32.mrb[0].mxu0
        %v1166 = vadd.f32 %v961, %v1165
        %1167 = vmatprep.mubr.bf16.mxu0 0
        %1168 = vmatmul.mubr.bf16.gmra.mrb[0].mxu0 %v1033
        %v1169 = vpop.f32.mrb[0].mxu0
        %v1170 = vadd.f32 %v957, %v1169
        %v1171 = vpop.f32.mrb[0].mxu0
        %v1172 = vadd.f32 %v961, %v1171
        %v1173 = vpop.f32.mrb[0].mxu0
        %v1174 = vpop.f32.mrb[0].mxu0
        %1175 = vdwg.mxu0
        %1176 = vmatprep.subr.bf16.mxu0 0
        %1177 = vmatpush1.bf16.msra.mxu0 %v991
        %1178 = vmatprep.subr.bf16.mxu0 0
        %1179 = vmatpush1.bf16.msra.mxu0 %v994
        %1180 = vmatprep.subr.bf16.mxu0 0
        %1181 = vmatpush1.bf16.msra.mxu0 0
        %1182 = vmatprep.subr.bf16.mxu0 0
        %1183 = vmatpush1.bf16.msra.mxu0 0
        %1184 = vmatprep.subr.bf16.mxu0 0
        %1185 = vmatpush1.bf16.msra.mxu0 0
        %1186 = vmatprep.subr.bf16.mxu0 0
        %1187 = vmatpush1.bf16.msra.mxu0 0
        %1188 = vmatprep.subr.bf16.mxu0 0
        %1189 = vmatpush1.bf16.msra.mxu0 0
        %1190 = vmatprep.subr.bf16.mxu0 0
        %1191 = vmatpush1.bf16.msra.mxu0 0
        %1192 = vmatprep.subr.bf16.mxu0 0
        %1193 = vmatpush1.bf16.msra.mxu0 0
        %1194 = vmatprep.subr.bf16.mxu0 0
        %1195 = vmatpush1.bf16.msra.mxu0 0
        %1196 = vmatprep.subr.bf16.mxu0 0
        %1197 = vmatpush1.bf16.msra.mxu0 0
        %1198 = vmatprep.subr.bf16.mxu0 0
        %1199 = vmatpush1.bf16.msra.mxu0 0
        %1200 = vmatprep.subr.bf16.mxu0 0
        %1201 = vmatpush1.bf16.msra.mxu0 0
        %1202 = vmatprep.subr.bf16.mxu0 0
        %1203 = vmatpush1.bf16.msra.mxu0 0
        %1204 = vmatprep.subr.bf16.mxu0 0
        %1205 = vmatpush1.bf16.msra.mxu0 0
        %1206 = vmatprep.subr.bf16.mxu0 0
        %1207 = vmatpush1.bf16.msra.mxu0 0
        %1208 = vmatprep.mubr.bf16.mxu0 0
        %1209 = vmatmul.mubr.bf16.gmra.mrb[0].mxu0 %v1003
        %v1210 = vpop.f32.mrb[0].mxu0
        %v1211 = vadd.f32 %v965, %v1210
        %v1212 = vpop.f32.mrb[0].mxu0
        %v1213 = vpop.f32.mrb[0].mxu0
        %v1214 = vadd.f32 %v965, %v1213
        %v1215 = vpop.f32.mrb[0].mxu0
        %1216 = vmatprep.mubr.bf16.mxu0 0
        %1217 = vmatmul.mubr.bf16.gmra.mrb[0].mxu0 %v1006
        %v1218 = vpop.f32.mrb[0].mxu0
        %v1219 = vadd.f32 %v965, %v1218
        %v1220 = vpop.f32.mrb[0].mxu0
        %v1221 = vpop.f32.mrb[0].mxu0
        %v1222 = vadd.f32 %v965, %v1221
        %v1223 = vpop.f32.mrb[0].mxu0
        %1224 = vmatprep.mubr.bf16.mxu0 0
        %1225 = vmatmul.mubr.bf16.gmra.mrb[0].mxu0 %v1009
        %v1226 = vpop.f32.mrb[0].mxu0
        %v1227 = vadd.f32 %v965, %v1226
        %v1228 = vpop.f32.mrb[0].mxu0
        %v1229 = vpop.f32.mrb[0].mxu0
        %v1230 = vadd.f32 %v965, %v1229
        %v1231 = vpop.f32.mrb[0].mxu0
        %1232 = vmatprep.mubr.bf16.mxu0 0
        %1233 = vmatmul.mubr.bf16.gmra.mrb[0].mxu0 %v1012
        %v1234 = vpop.f32.mrb[0].mxu0
        %v1235 = vadd.f32 %v965, %v1234
        %v1236 = vpop.f32.mrb[0].mxu0
        %v1237 = vpop.f32.mrb[0].mxu0
        %v1238 = vadd.f32 %v965, %v1237
        %v1239 = vpop.f32.mrb[0].mxu0
        %1240 = vmatprep.mubr.bf16.mxu0 0
        %1241 = vmatmul.mubr.bf16.gmra.mrb[0].mxu0 %v1015
        %v1242 = vpop.f32.mrb[0].mxu0
        %v1243 = vadd.f32 %v965, %v1242
        %v1244 = vpop.f32.mrb[0].mxu0
        %v1245 = vpop.f32.mrb[0].mxu0
        %v1246 = vadd.f32 %v965, %v1245
        %v1247 = vpop.f32.mrb[0].mxu0
        %1248 = vmatprep.mubr.bf16.mxu0 0
        %1249 = vmatmul.mubr.bf16.gmra.mrb[0].mxu0 %v1018
        %v1250 = vpop.f32.mrb[0].mxu0
        %v1251 = vadd.f32 %v965, %v1250
        %v1252 = vpop.f32.mrb[0].mxu0
        %v1253 = vpop.f32.mrb[0].mxu0
        %v1254 = vadd.f32 %v965, %v1253
        %v1255 = vpop.f32.mrb[0].mxu0
        %1256 = vmatprep.mubr.bf16.mxu0 0
        %1257 = vmatmul.mubr.bf16.gmra.mrb[0].mxu0 %v1021
        %v1258 = vpop.f32.mrb[0].mxu0
        %v1259 = vadd.f32 %v965, %v1258
        %v1260 = vpop.f32.mrb[0].mxu0
        %v1261 = vpop.f32.mrb[0].mxu0
        %v1262 = vadd.f32 %v965, %v1261
        %v1263 = vpop.f32.mrb[0].mxu0
        %1264 = vmatprep.mubr.bf16.mxu0 0
        %1265 = vmatmul.mubr.bf16.gmra.mrb[0].mxu0 %v1024
        %v1266 = vpop.f32.mrb[0].mxu0
        %v1267 = vadd.f32 %v965, %v1266
        %v1268 = vpop.f32.mrb[0].mxu0
        %v1269 = vpop.f32.mrb[0].mxu0
        %v1270 = vadd.f32 %v965, %v1269
        %v1271 = vpop.f32.mrb[0].mxu0
        %1272 = vmatprep.mubr.bf16.mxu0 0
        %1273 = vmatmul.mubr.bf16.gmra.mrb[0].mxu0 %v1027
        %v1274 = vpop.f32.mrb[0].mxu0
        %v1275 = vadd.f32 %v965, %v1274
        %v1276 = vpop.f32.mrb[0].mxu0
        %v1277 = vpop.f32.mrb[0].mxu0
        %v1278 = vadd.f32 %v965, %v1277
        %v1279 = vpop.f32.mrb[0].mxu0
        %1280 = vmatprep.mubr.bf16.mxu0 0
        %1281 = vmatmul.mubr.bf16.gmra.mrb[0].mxu0 %v1030
        %v1282 = vpop.f32.mrb[0].mxu0
        %v1283 = vadd.f32 %v965, %v1282
        %v1284 = vpop.f32.mrb[0].mxu0
        %v1285 = vpop.f32.mrb[0].mxu0
        %v1286 = vadd.f32 %v965, %v1285
        %v1287 = vpop.f32.mrb[0].mxu0
        %1288 = vmatprep.mubr.bf16.mxu0 0
        %1289 = vmatmul.mubr.bf16.gmra.mrb[0].mxu0 %v1033
        %v1290 = vpop.f32.mrb[0].mxu0
        %v1291 = vadd.f32 %v965, %v1290
        %v1292 = vpop.f32.mrb[0].mxu0
        %v1293 = vpop.f32.mrb[0].mxu0
        %v1294 = vpop.f32.mrb[0].mxu0
        %1295 = vdwg.mxu0
        %v1296 = vmax.f32 %v1070, 0.0
        %v1297 = vmax.f32 %v1072, 0.0
        %v1298 = vmax.f32 %v1211, 0.0
        %v1299 = vmax.f32 %v1074, 0.0
        %v1300 = vmax.f32 %v1076, 0.0
        %v1301 = vmax.f32 %v1214, 0.0
        %v1302 = vmax.f32 %v1080, 0.0
        %v1303 = vmax.f32 %v1082, 0.0
        %v1304 = vmax.f32 %v1219, 0.0
        %v1305 = vmax.f32 %v1084, 0.0
        %v1306 = vmax.f32 %v1086, 0.0
        %v1307 = vmax.f32 %v1222, 0.0
        %v1308 = vmax.f32 %v1090, 0.0
        %v1309 = vmax.f32 %v1092, 0.0
        %v1310 = vmax.f32 %v1227, 0.0
        %v1311 = vmax.f32 %v1094, 0.0
        %v1312 = vmax.f32 %v1096, 0.0
        %v1313 = vmax.f32 %v1230, 0.0
        %v1314 = vmax.f32 %v1100, 0.0
        %v1315 = vmax.f32 %v1102, 0.0
        %v1316 = vmax.f32 %v1235, 0.0
        %v1317 = vmax.f32 %v1104, 0.0
        %v1318 = vmax.f32 %v1106, 0.0
        %v1319 = vmax.f32 %v1238, 0.0
        %v1320 = vmax.f32 %v1110, 0.0
        %v1321 = vmax.f32 %v1112, 0.0
        %v1322 = vmax.f32 %v1243, 0.0
        %v1323 = vmax.f32 %v1114, 0.0
        %v1324 = vmax.f32 %v1116, 0.0
        %v1325 = vmax.f32 %v1246, 0.0
        %v1326 = vmax.f32 %v1120, 0.0
        %v1327 = vmax.f32 %v1122, 0.0
        %v1328 = vmax.f32 %v1251, 0.0
        %v1329 = vmax.f32 %v1124, 0.0
        %v1330 = vmax.f32 %v1126, 0.0
        %v1331 = vmax.f32 %v1254, 0.0
        %v1332 = vmax.f32 %v1130, 0.0
        %v1333 = vmax.f32 %v1132, 0.0
        %v1334 = vmax.f32 %v1259, 0.0
        %v1335 = vmax.f32 %v1134, 0.0
        %v1336 = vmax.f32 %v1136, 0.0
        %v1337 = vmax.f32 %v1262, 0.0
        %v1338 = vmax.f32 %v1140, 0.0
        %v1339 = vmax.f32 %v1142, 0.0
        %v1340 = vmax.f32 %v1267, 0.0
        %v1341 = vmax.f32 %v1144, 0.0
        %v1342 = vmax.f32 %v1146, 0.0
        %v1343 = vmax.f32 %v1270, 0.0
        %v1344 = vmax.f32 %v1150, 0.0
        %v1345 = vmax.f32 %v1152, 0.0
        %v1346 = vmax.f32 %v1275, 0.0
        %v1347 = vmax.f32 %v1154, 0.0
        %v1348 = vmax.f32 %v1156, 0.0
        %v1349 = vmax.f32 %v1278, 0.0
        %v1350 = vmax.f32 %v1160, 0.0
        %v1351 = vmax.f32 %v1162, 0.0
        %v1352 = vmax.f32 %v1283, 0.0
        %v1353 = vmax.f32 %v1164, 0.0
        %v1354 = vmax.f32 %v1166, 0.0
        %v1355 = vmax.f32 %v1286, 0.0
        %v1356 = vmax.f32 %v1170, 0.0
        %v1357 = vmax.f32 %v1172, 0.0
        %v1358 = vmax.f32 %v1291, 0.0
        %v1359 = vld [vmem:[%s3] sm:$0xff]
        %v1360 = vld [vmem:[%s3 + $0x8] sm:$0xff]
        %v1361 = vld [vmem:[%s3 + $0x10] sm:$0xff]
        %v1362 = vld [vmem:[%s3 + $0x18] sm:$0xff]
        %v1363 = vld [vmem:[%s3 + $0x20] sm:$0xff]
        %v1364 = vld [vmem:[%s3 + $0x28] sm:$0xff]
        %v1365 = vld [vmem:[%s3 + $0x30] sm:$0xff]
        %v1366 = vld [vmem:[%s3 + $0x38] sm:$0xff]
        %v1367 = vld [vmem:[%s3 + $0x40] sm:$0xff]
        %v1368 = vld [vmem:[%s3 + $0x48] sm:$0xff]
        %v1369 = vld [vmem:[%s3 + $0x50] sm:$0xff]
        %v1370 = vld [vmem:[%s3 + $0x58] sm:$0xff]
        %v1371 = vld [vmem:[%s3 + $0x60] sm:$0xff]
        %v1372 = vld [vmem:[%s3 + $0x68] sm:$0xff]
        %v1373 = vld [vmem:[%s3 + $0x70] sm:$0xff]
        %v1374 = vld [vmem:[%s3 + $0x78] sm:$0xff]
        %v1375 = vld [vmem:[%s3 + $0x80] sm:$0xff]
        %v1376 = vld [vmem:[%s3 + $0x88] sm:$0xff]
        %v1377 = vld [vmem:[%s3 + $0x90] sm:$0xff]
        %v1378 = vld [vmem:[%s3 + $0x98] sm:$0xff]
        %v1379 = vld [vmem:[%s3 + $0xa0] sm:$0xf]
        %1381 = vset.pattern.permute.xlu0 0
        %1382 = vperm.xlu0 %1381, %v1359
        %v1383 = vpop.permute.xlu0 %1382
        %1386 = vset.pattern.permute.xlu0 0
        %1387 = vperm.xlu0 %1386, %v1360
        %v1388 = vpop.permute.xlu0 %1387
        %1391 = vset.pattern.permute.xlu0 0
        %1392 = vperm.xlu0 %1391, %v1361
        %v1393 = vpop.permute.xlu0 %1392
        %1396 = vset.pattern.permute.xlu0 0
        %1397 = vperm.xlu0 %1396, %v1362
        %v1398 = vpop.permute.xlu0 %1397
        %1401 = vset.pattern.permute.xlu0 0
        %1402 = vperm.xlu0 %1401, %v1363
        %v1403 = vpop.permute.xlu0 %1402
        %1406 = vset.pattern.permute.xlu0 0
        %1407 = vperm.xlu0 %1406, %v1364
        %v1408 = vpop.permute.xlu0 %1407
        %1411 = vset.pattern.permute.xlu0 0
        %1412 = vperm.xlu0 %1411, %v1365
        %v1413 = vpop.permute.xlu0 %1412
        %1416 = vset.pattern.permute.xlu0 0
        %1417 = vperm.xlu0 %1416, %v1366
        %v1418 = vpop.permute.xlu0 %1417
        %1421 = vset.pattern.permute.xlu0 0
        %1422 = vperm.xlu0 %1421, %v1367
        %v1423 = vpop.permute.xlu0 %1422
        %1426 = vset.pattern.permute.xlu0 0
        %1427 = vperm.xlu0 %1426, %v1368
        %v1428 = vpop.permute.xlu0 %1427
        %1431 = vset.pattern.permute.xlu0 0
        %1432 = vperm.xlu0 %1431, %v1369
        %v1433 = vpop.permute.xlu0 %1432
        %1436 = vset.pattern.permute.xlu0 0
        %1437 = vperm.xlu0 %1436, %v1370
        %v1438 = vpop.permute.xlu0 %1437
        %1441 = vset.pattern.permute.xlu0 0
        %1442 = vperm.xlu0 %1441, %v1371
        %v1443 = vpop.permute.xlu0 %1442
        %1446 = vset.pattern.permute.xlu0 0
        %1447 = vperm.xlu0 %1446, %v1372
        %v1448 = vpop.permute.xlu0 %1447
        %1451 = vset.pattern.permute.xlu0 0
        %1452 = vperm.xlu0 %1451, %v1373
        %v1453 = vpop.permute.xlu0 %1452
        %1456 = vset.pattern.permute.xlu0 0
        %1457 = vperm.xlu0 %1456, %v1374
        %v1458 = vpop.permute.xlu0 %1457
        %1461 = vset.pattern.permute.xlu0 0
        %1462 = vperm.xlu0 %1461, %v1375
        %v1463 = vpop.permute.xlu0 %1462
        %1466 = vset.pattern.permute.xlu0 0
        %1467 = vperm.xlu0 %1466, %v1376
        %v1468 = vpop.permute.xlu0 %1467
        %1471 = vset.pattern.permute.xlu0 0
        %1472 = vperm.xlu0 %1471, %v1377
        %v1473 = vpop.permute.xlu0 %1472
        %1476 = vset.pattern.permute.xlu0 0
        %1477 = vperm.xlu0 %1476, %v1378
        %v1478 = vpop.permute.xlu0 %1477
        %1481 = vset.pattern.permute.xlu0 0
        %1482 = vperm.xlu0 %1481, %v1379
        %v1483 = vpop.permute.xlu0 %1482
        %v1485 = vmul.f32 %v1297, %v1383
        %v1486 = vmul.f32 %v1300, %v1388
        %v1487 = vmul.f32 %v1303, %v1393
        %v1488 = vmul.f32 %v1306, %v1398
        %v1489 = vmul.f32 %v1309, %v1403
        %v1490 = vmul.f32 %v1312, %v1408
        %v1491 = vmul.f32 %v1315, %v1413
        %v1492 = vmul.f32 %v1318, %v1418
        %v1493 = vmul.f32 %v1321, %v1423
        %v1494 = vmul.f32 %v1324, %v1428
        %v1495 = vmul.f32 %v1327, %v1433
        %v1496 = vmul.f32 %v1330, %v1438
        %v1497 = vmul.f32 %v1333, %v1443
        %v1498 = vmul.f32 %v1336, %v1448
        %v1499 = vmul.f32 %v1339, %v1453
        %v1500 = vmul.f32 %v1342, %v1458
        %v1501 = vmul.f32 %v1345, %v1463
        %v1502 = vmul.f32 %v1348, %v1468
        %v1503 = vmul.f32 %v1351, %v1473
        %v1504 = vmul.f32 %v1354, %v1478
        %v1505 = vmul.f32 %v1357, %v1483
        %v1506 = vmul.f32 %v1298, %v1383
        %v1507 = vmul.f32 %v1301, %v1388
        %v1508 = vmul.f32 %v1304, %v1393
        %v1509 = vmul.f32 %v1307, %v1398
        %v1510 = vmul.f32 %v1310, %v1403
        %v1511 = vmul.f32 %v1313, %v1408
        %v1512 = vmul.f32 %v1316, %v1413
        %v1513 = vmul.f32 %v1319, %v1418
        %v1514 = vmul.f32 %v1322, %v1423
        %v1515 = vmul.f32 %v1325, %v1428
        %v1516 = vmul.f32 %v1328, %v1433
        %v1517 = vmul.f32 %v1331, %v1438
        %v1518 = vmul.f32 %v1334, %v1443
        %v1519 = vmul.f32 %v1337, %v1448
        %v1520 = vmul.f32 %v1340, %v1453
        %v1521 = vmul.f32 %v1343, %v1458
        %v1522 = vmul.f32 %v1346, %v1463
        %v1523 = vmul.f32 %v1349, %v1468
        %v1524 = vmul.f32 %v1352, %v1473
        %v1525 = vmul.f32 %v1355, %v1478
        %v1526 = vmul.f32 %v1358, %v1483
        %vm1548 = vcmask 1046528
        %v1549 = vrot.slane %v1485, 1
        %v1550 = vrot.slane %v1486, 1
        %v1551 = vsel %vm1548, %v1549, %v1550
        %v1552 = vrot.slane %v1487, 1
        %v1553 = vsel %vm1548, %v1550, %v1552
        %v1554 = vrot.slane %v1488, 1
        %v1555 = vsel %vm1548, %v1552, %v1554
        %v1556 = vrot.slane %v1489, 1
        %v1557 = vsel %vm1548, %v1554, %v1556
        %v1558 = vrot.slane %v1490, 1
        %v1559 = vsel %vm1548, %v1556, %v1558
        %v1560 = vrot.slane %v1491, 1
        %v1561 = vsel %vm1548, %v1558, %v1560
        %v1562 = vrot.slane %v1492, 1
        %v1563 = vsel %vm1548, %v1560, %v1562
        %v1564 = vrot.slane %v1493, 1
        %v1565 = vsel %vm1548, %v1562, %v1564
        %v1566 = vrot.slane %v1494, 1
        %v1567 = vsel %vm1548, %v1564, %v1566
        %v1568 = vrot.slane %v1495, 1
        %v1569 = vsel %vm1548, %v1566, %v1568
        %v1570 = vrot.slane %v1496, 1
        %v1571 = vsel %vm1548, %v1568, %v1570
        %v1572 = vrot.slane %v1497, 1
        %v1573 = vsel %vm1548, %v1570, %v1572
        %v1574 = vrot.slane %v1498, 1
        %v1575 = vsel %vm1548, %v1572, %v1574
        %v1576 = vrot.slane %v1499, 1
        %v1577 = vsel %vm1548, %v1574, %v1576
        %v1578 = vrot.slane %v1500, 1
        %v1579 = vsel %vm1548, %v1576, %v1578
        %v1580 = vrot.slane %v1501, 1
        %v1581 = vsel %vm1548, %v1578, %v1580
        %v1582 = vrot.slane %v1502, 1
        %v1583 = vsel %vm1548, %v1580, %v1582
        %v1584 = vrot.slane %v1503, 1
        %v1585 = vsel %vm1548, %v1582, %v1584
        %v1586 = vrot.slane %v1504, 1
        %v1587 = vsel %vm1548, %v1584, %v1586
        %v1588 = vrot.slane %v1505, 1
        %v1589 = vsel %vm1548, %v1586, %v1588
        %vm1610 = vcmask 1045504
        %v1611 = vrot.slane %v1485, 2
        %v1612 = vrot.slane %v1486, 2
        %v1613 = vsel %vm1610, %v1611, %v1612
        %v1614 = vrot.slane %v1487, 2
        %v1615 = vsel %vm1610, %v1612, %v1614
        %v1616 = vrot.slane %v1488, 2
        %v1617 = vsel %vm1610, %v1614, %v1616
        %v1618 = vrot.slane %v1489, 2
        %v1619 = vsel %vm1610, %v1616, %v1618
        %v1620 = vrot.slane %v1490, 2
        %v1621 = vsel %vm1610, %v1618, %v1620
        %v1622 = vrot.slane %v1491, 2
        %v1623 = vsel %vm1610, %v1620, %v1622
        %v1624 = vrot.slane %v1492, 2
        %v1625 = vsel %vm1610, %v1622, %v1624
        %v1626 = vrot.slane %v1493, 2
        %v1627 = vsel %vm1610, %v1624, %v1626
        %v1628 = vrot.slane %v1494, 2
        %v1629 = vsel %vm1610, %v1626, %v1628
        %v1630 = vrot.slane %v1495, 2
        %v1631 = vsel %vm1610, %v1628, %v1630
        %v1632 = vrot.slane %v1496, 2
        %v1633 = vsel %vm1610, %v1630, %v1632
        %v1634 = vrot.slane %v1497, 2
        %v1635 = vsel %vm1610, %v1632, %v1634
        %v1636 = vrot.slane %v1498, 2
        %v1637 = vsel %vm1610, %v1634, %v1636
        %v1638 = vrot.slane %v1499, 2
        %v1639 = vsel %vm1610, %v1636, %v1638
        %v1640 = vrot.slane %v1500, 2
        %v1641 = vsel %vm1610, %v1638, %v1640
        %v1642 = vrot.slane %v1501, 2
        %v1643 = vsel %vm1610, %v1640, %v1642
        %v1644 = vrot.slane %v1502, 2
        %v1645 = vsel %vm1610, %v1642, %v1644
        %v1646 = vrot.slane %v1503, 2
        %v1647 = vsel %vm1610, %v1644, %v1646
        %v1648 = vrot.slane %v1504, 2
        %v1649 = vsel %vm1610, %v1646, %v1648
        %v1650 = vrot.slane %v1505, 2
        %v1651 = vsel %vm1610, %v1648, %v1650
        %vm1672 = vcmask 1044480
        %v1673 = vrot.slane %v1485, 3
        %v1674 = vrot.slane %v1486, 3
        %v1675 = vsel %vm1672, %v1673, %v1674
        %v1676 = vrot.slane %v1487, 3
        %v1677 = vsel %vm1672, %v1674, %v1676
        %v1678 = vrot.slane %v1488, 3
        %v1679 = vsel %vm1672, %v1676, %v1678
        %v1680 = vrot.slane %v1489, 3
        %v1681 = vsel %vm1672, %v1678, %v1680
        %v1682 = vrot.slane %v1490, 3
        %v1683 = vsel %vm1672, %v1680, %v1682
        %v1684 = vrot.slane %v1491, 3
        %v1685 = vsel %vm1672, %v1682, %v1684
        %v1686 = vrot.slane %v1492, 3
        %v1687 = vsel %vm1672, %v1684, %v1686
        %v1688 = vrot.slane %v1493, 3
        %v1689 = vsel %vm1672, %v1686, %v1688
        %v1690 = vrot.slane %v1494, 3
        %v1691 = vsel %vm1672, %v1688, %v1690
        %v1692 = vrot.slane %v1495, 3
        %v1693 = vsel %vm1672, %v1690, %v1692
        %v1694 = vrot.slane %v1496, 3
        %v1695 = vsel %vm1672, %v1692, %v1694
        %v1696 = vrot.slane %v1497, 3
        %v1697 = vsel %vm1672, %v1694, %v1696
        %v1698 = vrot.slane %v1498, 3
        %v1699 = vsel %vm1672, %v1696, %v1698
        %v1700 = vrot.slane %v1499, 3
        %v1701 = vsel %vm1672, %v1698, %v1700
        %v1702 = vrot.slane %v1500, 3
        %v1703 = vsel %vm1672, %v1700, %v1702
        %v1704 = vrot.slane %v1501, 3
        %v1705 = vsel %vm1672, %v1702, %v1704
        %v1706 = vrot.slane %v1502, 3
        %v1707 = vsel %vm1672, %v1704, %v1706
        %v1708 = vrot.slane %v1503, 3
        %v1709 = vsel %vm1672, %v1706, %v1708
        %v1710 = vrot.slane %v1504, 3
        %v1711 = vsel %vm1672, %v1708, %v1710
        %v1712 = vrot.slane %v1505, 3
        %v1713 = vsel %vm1672, %v1710, %v1712
        %vm1734 = vcmask 1043456
        %v1735 = vrot.slane %v1485, 4
        %v1736 = vrot.slane %v1486, 4
        %v1737 = vsel %vm1734, %v1735, %v1736
        %v1738 = vrot.slane %v1487, 4
        %v1739 = vsel %vm1734, %v1736, %v1738
        %v1740 = vrot.slane %v1488, 4
        %v1741 = vsel %vm1734, %v1738, %v1740
        %v1742 = vrot.slane %v1489, 4
        %v1743 = vsel %vm1734, %v1740, %v1742
        %v1744 = vrot.slane %v1490, 4
        %v1745 = vsel %vm1734, %v1742, %v1744
        %v1746 = vrot.slane %v1491, 4
        %v1747 = vsel %vm1734, %v1744, %v1746
        %v1748 = vrot.slane %v1492, 4
        %v1749 = vsel %vm1734, %v1746, %v1748
        %v1750 = vrot.slane %v1493, 4
        %v1751 = vsel %vm1734, %v1748, %v1750
        %v1752 = vrot.slane %v1494, 4
        %v1753 = vsel %vm1734, %v1750, %v1752
        %v1754 = vrot.slane %v1495, 4
        %v1755 = vsel %vm1734, %v1752, %v1754
        %v1756 = vrot.slane %v1496, 4
        %v1757 = vsel %vm1734, %v1754, %v1756
        %v1758 = vrot.slane %v1497, 4
        %v1759 = vsel %vm1734, %v1756, %v1758
        %v1760 = vrot.slane %v1498, 4
        %v1761 = vsel %vm1734, %v1758, %v1760
        %v1762 = vrot.slane %v1499, 4
        %v1763 = vsel %vm1734, %v1760, %v1762
        %v1764 = vrot.slane %v1500, 4
        %v1765 = vsel %vm1734, %v1762, %v1764
        %v1766 = vrot.slane %v1501, 4
        %v1767 = vsel %vm1734, %v1764, %v1766
        %v1768 = vrot.slane %v1502, 4
        %v1769 = vsel %vm1734, %v1766, %v1768
        %v1770 = vrot.slane %v1503, 4
        %v1771 = vsel %vm1734, %v1768, %v1770
        %v1772 = vrot.slane %v1504, 4
        %v1773 = vsel %vm1734, %v1770, %v1772
        %v1774 = vrot.slane %v1505, 4
        %v1775 = vsel %vm1734, %v1772, %v1774
        %v1796 = vld [vmem:[%s5] sm:$0xf]
        %v1797 = vld [vmem:[%s5 + $0x4] sm:$0xf]
        %v1798 = vld [vmem:[%s5 + $0x8] sm:$0xf]
        %v1799 = vld [vmem:[%s5 + $0xc] sm:$0xf]
        %v1800 = vld [vmem:[%s5 + $0x10] sm:$0xf]
        %v1801 = vld [vmem:[%s5 + $0x14] sm:$0xf]
        %v1802 = vld [vmem:[%s5 + $0x18] sm:$0xf]
        %v1803 = vld [vmem:[%s5 + $0x1c] sm:$0xf]
        %v1804 = vld [vmem:[%s5 + $0x20] sm:$0xf]
        %v1805 = vld [vmem:[%s5 + $0x24] sm:$0xf]
        %v1806 = vld [vmem:[%s5 + $0x28] sm:$0xf]
        %v1807 = vld [vmem:[%s5 + $0x2c] sm:$0xf]
        %v1808 = vld [vmem:[%s5 + $0x30] sm:$0xf]
        %v1809 = vld [vmem:[%s5 + $0x34] sm:$0xf]
        %v1810 = vld [vmem:[%s5 + $0x38] sm:$0xf]
        %v1811 = vld [vmem:[%s5 + $0x3c] sm:$0xf]
        %v1812 = vld [vmem:[%s5 + $0x40] sm:$0xf]
        %v1813 = vld [vmem:[%s5 + $0x44] sm:$0xf]
        %v1814 = vld [vmem:[%s5 + $0x48] sm:$0xf]
        %v1815 = vld [vmem:[%s5 + $0x4c] sm:$0xf]
        %v1816 = vld [vmem:[%s5 + $0x50] sm:$0xf]
        %v1817 = vld [vmem:[%s5 + $0x54] sm:$0xf]
        %v1818 = vld [vmem:[%s5 + $0x58] sm:$0xf]
        %v1819 = vld [vmem:[%s5 + $0x5c] sm:$0xf]
        %v1820 = vld [vmem:[%s5 + $0x60] sm:$0xf]
        %v1821 = vld [vmem:[%s5 + $0x64] sm:$0xf]
        %v1822 = vld [vmem:[%s5 + $0x68] sm:$0xf]
        %v1823 = vld [vmem:[%s5 + $0x6c] sm:$0xf]
        %v1824 = vld [vmem:[%s5 + $0x70] sm:$0xf]
        %v1825 = vld [vmem:[%s5 + $0x74] sm:$0xf]
        %v1826 = vld [vmem:[%s5 + $0x78] sm:$0xf]
        %v1827 = vld [vmem:[%s5 + $0x7c] sm:$0xf]
        %v1828 = vld [vmem:[%s5 + $0x80] sm:$0xf]
        %v1829 = vld [vmem:[%s5 + $0x84] sm:$0xf]
        %v1830 = vld [vmem:[%s5 + $0x88] sm:$0xf]
        %v1831 = vld [vmem:[%s5 + $0x8c] sm:$0xf]
        %v1832 = vld [vmem:[%s5 + $0x90] sm:$0xf]
        %v1833 = vld [vmem:[%s5 + $0x94] sm:$0xf]
        %v1834 = vld [vmem:[%s5 + $0x98] sm:$0xf]
        %v1835 = vld [vmem:[%s5 + $0x9c] sm:$0xf]
        %v1836 = vld [vmem:[%s5 + $0xa0] sm:$0xf]
        %v1837 = vld [vmem:[%s5 + $0xa4] sm:$0xf]
        %v1838 = vld [vmem:[%s5 + $0xa8] sm:$0xf]
        %v1839 = vld [vmem:[%s5 + $0xac] sm:$0xf]
        %v1840 = vld [vmem:[%s5 + $0xb0] sm:$0xf]
        %v1841 = vld [vmem:[%s5 + $0xb4] sm:$0xf]
        %v1842 = vld [vmem:[%s5 + $0xb8] sm:$0xf]
        %v1843 = vld [vmem:[%s5 + $0xbc] sm:$0xf]
        %v1844 = vld [vmem:[%s5 + $0xc0] sm:$0xf]
        %v1845 = vld [vmem:[%s5 + $0xc4] sm:$0xf]
        %v1846 = vld [vmem:[%s5 + $0xc8] sm:$0xf]
        %v1847 = vld [vmem:[%s5 + $0xcc] sm:$0xf]
        %v1848 = vld [vmem:[%s5 + $0xd0] sm:$0xf]
        %v1849 = vld [vmem:[%s5 + $0xd4] sm:$0xf]
        %v1850 = vld [vmem:[%s5 + $0xd8] sm:$0xf]
        %v1851 = vld [vmem:[%s5 + $0xdc] sm:$0xf]
        %v1852 = vld [vmem:[%s5 + $0xe0] sm:$0xf]
        %v1853 = vld [vmem:[%s5 + $0xe4] sm:$0xf]
        %v1854 = vld [vmem:[%s5 + $0xe8] sm:$0xf]
        %v1855 = vld [vmem:[%s5 + $0xec] sm:$0xf]
        %v1856 = vld [vmem:[%s5 + $0xf0] sm:$0xf]
        %v1857 = vld [vmem:[%s5 + $0xf4] sm:$0xf]
        %v1858 = vld [vmem:[%s5 + $0xf8] sm:$0xf]
        %v1859 = vld [vmem:[%s5 + $0xfc] sm:$0xf]
        %v1860 = vld [vmem:[%s5 + $0x100] sm:$0xf]
        %v1861 = vld [vmem:[%s5 + $0x104] sm:$0xf]
        %v1862 = vld [vmem:[%s5 + $0x108] sm:$0xf]
        %v1863 = vld [vmem:[%s5 + $0x10c] sm:$0xf]
        %v1864 = vld [vmem:[%s5 + $0x110] sm:$0xf]
        %v1865 = vld [vmem:[%s5 + $0x114] sm:$0xf]
        %v1866 = vld [vmem:[%s5 + $0x118] sm:$0xf]
        %v1867 = vld [vmem:[%s5 + $0x11c] sm:$0xf]
        %v1868 = vld [vmem:[%s5 + $0x120] sm:$0xf]
        %v1869 = vld [vmem:[%s5 + $0x124] sm:$0xf]
        %v1870 = vld [vmem:[%s5 + $0x128] sm:$0xf]
        %v1871 = vld [vmem:[%s5 + $0x12c] sm:$0xf]
        %v1872 = vld [vmem:[%s5 + $0x130] sm:$0xf]
        %v1873 = vld [vmem:[%s5 + $0x134] sm:$0xf]
        %v1874 = vld [vmem:[%s5 + $0x138] sm:$0xf]
        %v1875 = vld [vmem:[%s5 + $0x13c] sm:$0xf]
        %v1876 = vpack.c.bf16 %v1486, %v1485
        %v1877 = vpack.c.bf16 %v1553, %v1551
        %v1878 = vpack.c.bf16 %v1615, %v1613
        %v1879 = vpack.c.bf16 %v1677, %v1675
        %v1880 = vpack.c.bf16 %v1739, %v1737
        %v1881 = vpack.c.bf16 %v1488, %v1487
        %v1882 = vpack.c.bf16 %v1557, %v1555
        %v1883 = vpack.c.bf16 %v1619, %v1617
        %v1884 = vpack.c.bf16 %v1681, %v1679
        %v1885 = vpack.c.bf16 %v1743, %v1741
        %v1886 = vpack.c.bf16 %v1490, %v1489
        %v1887 = vpack.c.bf16 %v1561, %v1559
        %v1888 = vpack.c.bf16 %v1623, %v1621
        %v1889 = vpack.c.bf16 %v1685, %v1683
        %v1890 = vpack.c.bf16 %v1747, %v1745
        %v1891 = vpack.c.bf16 %v1492, %v1491
        %v1892 = vpack.c.bf16 %v1565, %v1563
        %v1893 = vpack.c.bf16 %v1627, %v1625
        %v1894 = vpack.c.bf16 %v1689, %v1687
        %v1895 = vpack.c.bf16 %v1751, %v1749
        %v1896 = vpack.c.bf16 %v1494, %v1493
        %v1897 = vpack.c.bf16 %v1569, %v1567
        %v1898 = vpack.c.bf16 %v1631, %v1629
        %v1899 = vpack.c.bf16 %v1693, %v1691
        %v1900 = vpack.c.bf16 %v1755, %v1753
        %v1901 = vpack.c.bf16 %v1496, %v1495
        %v1902 = vpack.c.bf16 %v1573, %v1571
        %v1903 = vpack.c.bf16 %v1635, %v1633
        %v1904 = vpack.c.bf16 %v1697, %v1695
        %v1905 = vpack.c.bf16 %v1759, %v1757
        %v1906 = vpack.c.bf16 %v1498, %v1497
        %v1907 = vpack.c.bf16 %v1577, %v1575
        %v1908 = vpack.c.bf16 %v1639, %v1637
        %v1909 = vpack.c.bf16 %v1701, %v1699
        %v1910 = vpack.c.bf16 %v1763, %v1761
        %v1911 = vpack.c.bf16 %v1500, %v1499
        %v1912 = vpack.c.bf16 %v1581, %v1579
        %v1913 = vpack.c.bf16 %v1643, %v1641
        %v1914 = vpack.c.bf16 %v1705, %v1703
        %v1915 = vpack.c.bf16 %v1767, %v1765
        %v1916 = vpack.c.bf16 %v1502, %v1501
        %v1917 = vpack.c.bf16 %v1585, %v1583
        %v1918 = vpack.c.bf16 %v1647, %v1645
        %v1919 = vpack.c.bf16 %v1709, %v1707
        %v1920 = vpack.c.bf16 %v1771, %v1769
        %v1921 = vpack.c.bf16 %v1504, %v1503
        %v1922 = vpack.c.bf16 %v1589, %v1587
        %v1923 = vpack.c.bf16 %v1651, %v1649
        %v1924 = vpack.c.bf16 %v1713, %v1711
        %v1925 = vpack.c.bf16 %v1775, %v1773
        %v1926 = vld [vmem:[#allocation7] sm:$0x1]
        %v1928 = vlaneseq
        %v1929 = vshrl.u32 %v1928, 7
        %v1930 = vsub.s32 0, %v1929
        %v1931 = vrot.slane %v1926, %v1930
        %v2013 = vunpack.c.l.b16 %v1796
        %v2014 = vunpack.c.l.b16 %v1797
        %v2015 = vunpack.c.l.b16 %v1798
        %v2016 = vunpack.c.l.b16 %v1799
        %v2017 = vunpack.c.l.b16 %v1800
        %v2018 = vunpack.c.l.b16 %v1801
        %v2019 = vunpack.c.l.b16 %v1802
        %v2020 = vunpack.c.l.b16 %v1803
        %v2021 = vunpack.c.l.b16 %v1804
        %v2022 = vunpack.c.l.b16 %v1805
        %v2023 = vunpack.c.l.b16 %v1806
        %v2024 = vunpack.c.l.b16 %v1807
        %v2025 = vunpack.c.l.b16 %v1808
        %v2026 = vunpack.c.l.b16 %v1809
        %v2027 = vunpack.c.l.b16 %v1810
        %v2028 = vunpack.c.l.b16 %v1811
        %v2029 = vunpack.c.l.b16 %v1812
        %v2030 = vunpack.c.l.b16 %v1813
        %v2031 = vunpack.c.l.b16 %v1814
        %v2032 = vunpack.c.l.b16 %v1815
        %v2033 = vunpack.c.l.b16 %v1816
        %v2034 = vunpack.c.l.b16 %v1817
        %v2035 = vunpack.c.l.b16 %v1818
        %v2036 = vunpack.c.l.b16 %v1819
        %v2037 = vunpack.c.l.b16 %v1820
        %v2038 = vunpack.c.l.b16 %v1821
        %v2039 = vunpack.c.l.b16 %v1822
        %v2040 = vunpack.c.l.b16 %v1823
        %v2041 = vunpack.c.l.b16 %v1824
        %v2042 = vunpack.c.l.b16 %v1825
        %v2043 = vunpack.c.l.b16 %v1826
        %v2044 = vunpack.c.l.b16 %v1827
        %v2045 = vunpack.c.l.b16 %v1828
        %v2046 = vunpack.c.l.b16 %v1829
        %v2047 = vunpack.c.l.b16 %v1830
        %v2048 = vunpack.c.l.b16 %v1831
        %v2049 = vunpack.c.l.b16 %v1832
        %v2050 = vunpack.c.l.b16 %v1833
        %v2051 = vunpack.c.l.b16 %v1834
        %v2052 = vunpack.c.l.b16 %v1835
        %v2053 = vunpack.c.l.b16 %v1836
        %v2054 = vunpack.c.l.b16 %v1837
        %v2055 = vunpack.c.l.b16 %v1838
        %v2056 = vunpack.c.l.b16 %v1839
        %v2057 = vunpack.c.l.b16 %v1840
        %v2058 = vunpack.c.l.b16 %v1841
        %v2059 = vunpack.c.l.b16 %v1842
        %v2060 = vunpack.c.l.b16 %v1843
        %v2061 = vunpack.c.l.b16 %v1844
        %v2062 = vunpack.c.l.b16 %v1845
        %v2063 = vunpack.c.l.b16 %v1846
        %v2064 = vunpack.c.l.b16 %v1847
        %v2065 = vunpack.c.l.b16 %v1848
        %v2066 = vunpack.c.l.b16 %v1849
        %v2067 = vunpack.c.l.b16 %v1850
        %v2068 = vunpack.c.l.b16 %v1851
        %v2069 = vunpack.c.l.b16 %v1852
        %v2070 = vunpack.c.l.b16 %v1853
        %v2071 = vunpack.c.l.b16 %v1854
        %v2072 = vunpack.c.l.b16 %v1855
        %v2073 = vunpack.c.l.b16 %v1856
        %v2074 = vunpack.c.l.b16 %v1857
        %v2075 = vunpack.c.l.b16 %v1858
        %v2076 = vunpack.c.l.b16 %v1859
        %v2077 = vunpack.c.l.b16 %v1860
        %v2078 = vunpack.c.l.b16 %v1861
        %v2079 = vunpack.c.l.b16 %v1862
        %v2080 = vunpack.c.l.b16 %v1863
        %v2081 = vunpack.c.l.b16 %v1864
        %v2082 = vunpack.c.l.b16 %v1865
        %v2083 = vunpack.c.l.b16 %v1866
        %v2084 = vunpack.c.l.b16 %v1867
        %v2085 = vunpack.c.l.b16 %v1868
        %v2086 = vunpack.c.l.b16 %v1869
        %v2087 = vunpack.c.l.b16 %v1870
        %v2088 = vunpack.c.l.b16 %v1871
        %v2089 = vunpack.c.l.b16 %v1872
        %v2090 = vunpack.c.l.b16 %v1873
        %v2091 = vunpack.c.l.b16 %v1874
        %v2092 = vunpack.c.l.b16 %v1875
        %v2093 = vpack.c.b16 %v2014, %v2013
        %v2094 = vpack.c.b16 %v2016, %v2015
        %v2095 = vpack.c.b16 %v2018, %v2017
        %v2096 = vpack.c.b16 %v2020, %v2019
        %v2097 = vpack.c.b16 %v2022, %v2021
        %v2098 = vpack.c.b16 %v2024, %v2023
        %v2099 = vpack.c.b16 %v2026, %v2025
        %v2100 = vpack.c.b16 %v2028, %v2027
        %v2101 = vpack.c.b16 %v2030, %v2029
        %v2102 = vpack.c.b16 %v2032, %v2031
        %v2103 = vpack.c.b16 %v2034, %v2033
        %v2104 = vpack.c.b16 %v2036, %v2035
        %v2105 = vpack.c.b16 %v2038, %v2037
        %v2106 = vpack.c.b16 %v2040, %v2039
        %v2107 = vpack.c.b16 %v2042, %v2041
        %v2108 = vpack.c.b16 %v2044, %v2043
        %v2109 = vpack.c.b16 %v2046, %v2045
        %v2110 = vpack.c.b16 %v2048, %v2047
        %v2111 = vpack.c.b16 %v2050, %v2049
        %v2112 = vpack.c.b16 %v2052, %v2051
        %v2113 = vpack.c.b16 %v2054, %v2053
        %v2114 = vpack.c.b16 %v2056, %v2055
        %v2115 = vpack.c.b16 %v2058, %v2057
        %v2116 = vpack.c.b16 %v2060, %v2059
        %v2117 = vpack.c.b16 %v2062, %v2061
        %v2118 = vpack.c.b16 %v2064, %v2063
        %v2119 = vpack.c.b16 %v2066, %v2065
        %v2120 = vpack.c.b16 %v2068, %v2067
        %v2121 = vpack.c.b16 %v2070, %v2069
        %v2122 = vpack.c.b16 %v2072, %v2071
        %v2123 = vpack.c.b16 %v2074, %v2073
        %v2124 = vpack.c.b16 %v2076, %v2075
        %v2125 = vpack.c.b16 %v2078, %v2077
        %v2126 = vpack.c.b16 %v2080, %v2079
        %v2127 = vpack.c.b16 %v2082, %v2081
        %v2128 = vpack.c.b16 %v2084, %v2083
        %v2129 = vpack.c.b16 %v2086, %v2085
        %v2130 = vpack.c.b16 %v2088, %v2087
        %v2131 = vpack.c.b16 %v2090, %v2089
        %v2132 = vpack.c.b16 %v2092, %v2091
        %2173 = vmatprep.subr.bf16.mxu0 0
        %2174 = vmatpush1.bf16.msra.mxu0 %v2093
        %2175 = vmatprep.subr.bf16.mxu0 0
        %2176 = vmatpush1.bf16.msra.mxu0 %v2094
        %2177 = vmatprep.subr.bf16.mxu0 0
        %2178 = vmatpush1.bf16.msra.mxu0 %v2095
        %2179 = vmatprep.subr.bf16.mxu0 0
        %2180 = vmatpush1.bf16.msra.mxu0 %v2096
        %2181 = vmatprep.subr.bf16.mxu0 0
        %2182 = vmatpush1.bf16.msra.mxu0 %v2097
        %2183 = vmatprep.subr.bf16.mxu0 0
        %2184 = vmatpush1.bf16.msra.mxu0 %v2098
        %2185 = vmatprep.subr.bf16.mxu0 0
        %2186 = vmatpush1.bf16.msra.mxu0 %v2099
        %2187 = vmatprep.subr.bf16.mxu0 0
        %2188 = vmatpush1.bf16.msra.mxu0 %v2100
        %2189 = vmatprep.subr.bf16.mxu0 0
        %2190 = vmatpush1.bf16.msra.mxu0 %v2101
        %2191 = vmatprep.subr.bf16.mxu0 0
        %2192 = vmatpush1.bf16.msra.mxu0 %v2102
        %2193 = vmatprep.subr.bf16.mxu0 0
        %2194 = vmatpush1.bf16.msra.mxu0 %v2103
        %2195 = vmatprep.subr.bf16.mxu0 0
        %2196 = vmatpush1.bf16.msra.mxu0 %v2104
        %2197 = vmatprep.subr.bf16.mxu0 0
        %2198 = vmatpush1.bf16.msra.mxu0 %v2105
        %2199 = vmatprep.subr.bf16.mxu0 0
        %2200 = vmatpush1.bf16.msra.mxu0 %v2106
        %2201 = vmatprep.subr.bf16.mxu0 0
        %2202 = vmatpush1.bf16.msra.mxu0 %v2107
        %2203 = vmatprep.subr.bf16.mxu0 0
        %2204 = vmatpush1.bf16.msra.mxu0 %v2108
        %2205 = vmatprep.mubr.bf16.mxu0 %v1877
        %2206 = vmatmul.mubr.bf16.gmra.mrb[0].mxu0 %v1876
        %v2207 = vpop.f32.mrb[0].mxu0
        %v2208 = vadd.f32 %v1931, %v2207
        %v2209 = vpop.f32.mrb[0].mxu0
        %v2210 = vpop.f32.mrb[0].mxu0
        %v2211 = vadd.f32 %v1931, %v2210
        %v2212 = vpop.f32.mrb[0].mxu0
        %2213 = vmatprep.mubr.bf16.mxu0 %v1882
        %2214 = vmatmul.mubr.bf16.gmra.mrb[0].mxu0 %v1881
        %v2215 = vpop.f32.mrb[0].mxu0
        %v2216 = vadd.f32 %v1931, %v2215
        %v2217 = vpop.f32.mrb[0].mxu0
        %v2218 = vpop.f32.mrb[0].mxu0
        %v2219 = vadd.f32 %v1931, %v2218
        %v2220 = vpop.f32.mrb[0].mxu0
        %2221 = vmatprep.mubr.bf16.mxu0 %v1887
        %2222 = vmatmul.mubr.bf16.gmra.mrb[0].mxu0 %v1886
        %v2223 = vpop.f32.mrb[0].mxu0
        %v2224 = vadd.f32 %v1931, %v2223
        %v2225 = vpop.f32.mrb[0].mxu0
        %v2226 = vpop.f32.mrb[0].mxu0
        %v2227 = vadd.f32 %v1931, %v2226
        %v2228 = vpop.f32.mrb[0].mxu0
        %2229 = vmatprep.mubr.bf16.mxu0 %v1892
        %2230 = vmatmul.mubr.bf16.gmra.mrb[0].mxu0 %v1891
        %v2231 = vpop.f32.mrb[0].mxu0
        %v2232 = vadd.f32 %v1931, %v2231
        %v2233 = vpop.f32.mrb[0].mxu0
        %v2234 = vpop.f32.mrb[0].mxu0
        %v2235 = vadd.f32 %v1931, %v2234
        %v2236 = vpop.f32.mrb[0].mxu0
        %2237 = vmatprep.mubr.bf16.mxu0 %v1897
        %2238 = vmatmul.mubr.bf16.gmra.mrb[0].mxu0 %v1896
        %v2239 = vpop.f32.mrb[0].mxu0
        %v2240 = vadd.f32 %v1931, %v2239
        %v2241 = vpop.f32.mrb[0].mxu0
        %v2242 = vpop.f32.mrb[0].mxu0
        %v2243 = vadd.f32 %v1931, %v2242
        %v2244 = vpop.f32.mrb[0].mxu0
        %2245 = vmatprep.mubr.bf16.mxu0 %v1902
        %2246 = vmatmul.mubr.bf16.gmra.mrb[0].mxu0 %v1901
        %v2247 = vpop.f32.mrb[0].mxu0
        %v2248 = vadd.f32 %v1931, %v2247
        %v2249 = vpop.f32.mrb[0].mxu0
        %v2250 = vpop.f32.mrb[0].mxu0
        %v2251 = vadd.f32 %v1931, %v2250
        %v2252 = vpop.f32.mrb[0].mxu0
        %2253 = vmatprep.mubr.bf16.mxu0 %v1907
        %2254 = vmatmul.mubr.bf16.gmra.mrb[0].mxu0 %v1906
        %v2255 = vpop.f32.mrb[0].mxu0
        %v2256 = vadd.f32 %v1931, %v2255
        %v2257 = vpop.f32.mrb[0].mxu0
        %v2258 = vpop.f32.mrb[0].mxu0
        %v2259 = vadd.f32 %v1931, %v2258
        %v2260 = vpop.f32.mrb[0].mxu0
        %2261 = vmatprep.mubr.bf16.mxu0 %v1912
        %2262 = vmatmul.mubr.bf16.gmra.mrb[0].mxu0 %v1911
        %v2263 = vpop.f32.mrb[0].mxu0
        %v2264 = vadd.f32 %v1931, %v2263
        %v2265 = vpop.f32.mrb[0].mxu0
        %v2266 = vpop.f32.mrb[0].mxu0
        %v2267 = vadd.f32 %v1931, %v2266
        %v2268 = vpop.f32.mrb[0].mxu0
        %2269 = vmatprep.mubr.bf16.mxu0 %v1917
        %2270 = vmatmul.mubr.bf16.gmra.mrb[0].mxu0 %v1916
        %v2271 = vpop.f32.mrb[0].mxu0
        %v2272 = vadd.f32 %v1931, %v2271
        %v2273 = vpop.f32.mrb[0].mxu0
        %v2274 = vpop.f32.mrb[0].mxu0
        %v2275 = vadd.f32 %v1931, %v2274
        %v2276 = vpop.f32.mrb[0].mxu0
        %2277 = vmatprep.mubr.bf16.mxu0 %v1922
        %2278 = vmatmul.mubr.bf16.gmra.mrb[0].mxu0 %v1921
        %v2279 = vpop.f32.mrb[0].mxu0
        %v2280 = vadd.f32 %v1931, %v2279
        %v2281 = vpop.f32.mrb[0].mxu0
        %v2282 = vpop.f32.mrb[0].mxu0
        %v2283 = vadd.f32 %v1931, %v2282
        %v2284 = vpop.f32.mrb[0].mxu0
        %2285 = vdwg.mxu0
        %2286 = vmatprep.subr.bf16.mxu0 0
        %2287 = vmatpush1.bf16.msra.mxu0 %v2109
        %2288 = vmatprep.subr.bf16.mxu0 0
        %2289 = vmatpush1.bf16.msra.mxu0 %v2110
        %2290 = vmatprep.subr.bf16.mxu0 0
        %2291 = vmatpush1.bf16.msra.mxu0 %v2111
        %2292 = vmatprep.subr.bf16.mxu0 0
        %2293 = vmatpush1.bf16.msra.mxu0 %v2112
        %2294 = vmatprep.subr.bf16.mxu0 0
        %2295 = vmatpush1.bf16.msra.mxu0 %v2113
        %2296 = vmatprep.subr.bf16.mxu0 0
        %2297 = vmatpush1.bf16.msra.mxu0 %v2114
        %2298 = vmatprep.subr.bf16.mxu0 0
        %2299 = vmatpush1.bf16.msra.mxu0 %v2115
        %2300 = vmatprep.subr.bf16.mxu0 0
        %2301 = vmatpush1.bf16.msra.mxu0 %v2116
        %2302 = vmatprep.subr.bf16.mxu0 0
        %2303 = vmatpush1.bf16.msra.mxu0 %v2117
        %2304 = vmatprep.subr.bf16.mxu0 0
        %2305 = vmatpush1.bf16.msra.mxu0 %v2118
        %2306 = vmatprep.subr.bf16.mxu0 0
        %2307 = vmatpush1.bf16.msra.mxu0 %v2119
        %2308 = vmatprep.subr.bf16.mxu0 0
        %2309 = vmatpush1.bf16.msra.mxu0 %v2120
        %2310 = vmatprep.subr.bf16.mxu0 0
        %2311 = vmatpush1.bf16.msra.mxu0 %v2121
        %2312 = vmatprep.subr.bf16.mxu0 0
        %2313 = vmatpush1.bf16.msra.mxu0 %v2122
        %2314 = vmatprep.subr.bf16.mxu0 0
        %2315 = vmatpush1.bf16.msra.mxu0 %v2123
        %2316 = vmatprep.subr.bf16.mxu0 0
        %2317 = vmatpush1.bf16.msra.mxu0 %v2124
        %2318 = vmatprep.mubr.bf16.mxu0 %v1879
        %2319 = vmatmul.mubr.bf16.gmra.mrb[0].mxu0 %v1878
        %v2320 = vpop.f32.mrb[0].mxu0
        %v2321 = vadd.f32 %v2208, %v2320
        %v2322 = vpop.f32.mrb[0].mxu0
        %v2323 = vpop.f32.mrb[0].mxu0
        %v2324 = vadd.f32 %v2211, %v2323
        %v2325 = vpop.f32.mrb[0].mxu0
        %2326 = vmatprep.mubr.bf16.mxu0 %v1884
        %2327 = vmatmul.mubr.bf16.gmra.mrb[0].mxu0 %v1883
        %v2328 = vpop.f32.mrb[0].mxu0
        %v2329 = vadd.f32 %v2216, %v2328
        %v2330 = vpop.f32.mrb[0].mxu0
        %v2331 = vpop.f32.mrb[0].mxu0
        %v2332 = vadd.f32 %v2219, %v2331
        %v2333 = vpop.f32.mrb[0].mxu0
        %2334 = vmatprep.mubr.bf16.mxu0 %v1889
        %2335 = vmatmul.mubr.bf16.gmra.mrb[0].mxu0 %v1888
        %v2336 = vpop.f32.mrb[0].mxu0
        %v2337 = vadd.f32 %v2224, %v2336
        %v2338 = vpop.f32.mrb[0].mxu0
        %v2339 = vpop.f32.mrb[0].mxu0
        %v2340 = vadd.f32 %v2227, %v2339
        %v2341 = vpop.f32.mrb[0].mxu0
        %2342 = vmatprep.mubr.bf16.mxu0 %v1894
        %2343 = vmatmul.mubr.bf16.gmra.mrb[0].mxu0 %v1893
        %v2344 = vpop.f32.mrb[0].mxu0
        %v2345 = vadd.f32 %v2232, %v2344
        %v2346 = vpop.f32.mrb[0].mxu0
        %v2347 = vpop.f32.mrb[0].mxu0
        %v2348 = vadd.f32 %v2235, %v2347
        %v2349 = vpop.f32.mrb[0].mxu0
        %2350 = vmatprep.mubr.bf16.mxu0 %v1899
        %2351 = vmatmul.mubr.bf16.gmra.mrb[0].mxu0 %v1898
        %v2352 = vpop.f32.mrb[0].mxu0
        %v2353 = vadd.f32 %v2240, %v2352
        %v2354 = vpop.f32.mrb[0].mxu0
        %v2355 = vpop.f32.mrb[0].mxu0
        %v2356 = vadd.f32 %v2243, %v2355
        %v2357 = vpop.f32.mrb[0].mxu0
        %2358 = vmatprep.mubr.bf16.mxu0 %v1904
        %2359 = vmatmul.mubr.bf16.gmra.mrb[0].mxu0 %v1903
        %v2360 = vpop.f32.mrb[0].mxu0
        %v2361 = vadd.f32 %v2248, %v2360
        %v2362 = vpop.f32.mrb[0].mxu0
        %v2363 = vpop.f32.mrb[0].mxu0
        %v2364 = vadd.f32 %v2251, %v2363
        %v2365 = vpop.f32.mrb[0].mxu0
        %2366 = vmatprep.mubr.bf16.mxu0 %v1909
        %2367 = vmatmul.mubr.bf16.gmra.mrb[0].mxu0 %v1908
        %v2368 = vpop.f32.mrb[0].mxu0
        %v2369 = vadd.f32 %v2256, %v2368
        %v2370 = vpop.f32.mrb[0].mxu0
        %v2371 = vpop.f32.mrb[0].mxu0
        %v2372 = vadd.f32 %v2259, %v2371
        %v2373 = vpop.f32.mrb[0].mxu0
        %2374 = vmatprep.mubr.bf16.mxu0 %v1914
        %2375 = vmatmul.mubr.bf16.gmra.mrb[0].mxu0 %v1913
        %v2376 = vpop.f32.mrb[0].mxu0
        %v2377 = vadd.f32 %v2264, %v2376
        %v2378 = vpop.f32.mrb[0].mxu0
        %v2379 = vpop.f32.mrb[0].mxu0
        %v2380 = vadd.f32 %v2267, %v2379
        %v2381 = vpop.f32.mrb[0].mxu0
        %2382 = vmatprep.mubr.bf16.mxu0 %v1919
        %2383 = vmatmul.mubr.bf16.gmra.mrb[0].mxu0 %v1918
        %v2384 = vpop.f32.mrb[0].mxu0
        %v2385 = vadd.f32 %v2272, %v2384
        %v2386 = vpop.f32.mrb[0].mxu0
        %v2387 = vpop.f32.mrb[0].mxu0
        %v2388 = vadd.f32 %v2275, %v2387
        %v2389 = vpop.f32.mrb[0].mxu0
        %2390 = vmatprep.mubr.bf16.mxu0 %v1924
        %2391 = vmatmul.mubr.bf16.gmra.mrb[0].mxu0 %v1923
        %v2392 = vpop.f32.mrb[0].mxu0
        %v2393 = vadd.f32 %v2280, %v2392
        %v2394 = vpop.f32.mrb[0].mxu0
        %v2395 = vpop.f32.mrb[0].mxu0
        %v2396 = vadd.f32 %v2283, %v2395
        %v2397 = vpop.f32.mrb[0].mxu0
        %2398 = vdwg.mxu0
        %2399 = vmatprep.subr.bf16.mxu0 0
        %2400 = vmatpush1.bf16.msra.mxu0 %v2125
        %2401 = vmatprep.subr.bf16.mxu0 0
        %2402 = vmatpush1.bf16.msra.mxu0 %v2126
        %2403 = vmatprep.subr.bf16.mxu0 0
        %2404 = vmatpush1.bf16.msra.mxu0 %v2127
        %2405 = vmatprep.subr.bf16.mxu0 0
        %2406 = vmatpush1.bf16.msra.mxu0 %v2128
        %2407 = vmatprep.subr.bf16.mxu0 0
        %2408 = vmatpush1.bf16.msra.mxu0 %v2129
        %2409 = vmatprep.subr.bf16.mxu0 0
        %2410 = vmatpush1.bf16.msra.mxu0 %v2130
        %2411 = vmatprep.subr.bf16.mxu0 0
        %2412 = vmatpush1.bf16.msra.mxu0 %v2131
        %2413 = vmatprep.subr.bf16.mxu0 0
        %2414 = vmatpush1.bf16.msra.mxu0 %v2132
        %2415 = vmatprep.subr.bf16.mxu0 0
        %2416 = vmatpush1.bf16.msra.mxu0 0
        %2417 = vmatprep.subr.bf16.mxu0 0
        %2418 = vmatpush1.bf16.msra.mxu0 0
        %2419 = vmatprep.subr.bf16.mxu0 0
        %2420 = vmatpush1.bf16.msra.mxu0 0
        %2421 = vmatprep.subr.bf16.mxu0 0
        %2422 = vmatpush1.bf16.msra.mxu0 0
        %2423 = vmatprep.subr.bf16.mxu0 0
        %2424 = vmatpush1.bf16.msra.mxu0 0
        %2425 = vmatprep.subr.bf16.mxu0 0
        %2426 = vmatpush1.bf16.msra.mxu0 0
        %2427 = vmatprep.subr.bf16.mxu0 0
        %2428 = vmatpush1.bf16.msra.mxu0 0
        %2429 = vmatprep.subr.bf16.mxu0 0
        %2430 = vmatpush1.bf16.msra.mxu0 0
        %2431 = vmatprep.mubr.bf16.mxu0 0
        %2432 = vmatmul.mubr.bf16.gmra.mrb[0].mxu0 %v1880
        %v2433 = vpop.f32.mrb[0].mxu0
        %v2434 = vadd.f32 %v2321, %v2433
        %v2435 = vpop.f32.mrb[0].mxu0
        %v2436 = vpop.f32.mrb[0].mxu0
        %v2437 = vadd.f32 %v2324, %v2436
        %v2438 = vpop.f32.mrb[0].mxu0
        %2439 = vmatprep.mubr.bf16.mxu0 0
        %2440 = vmatmul.mubr.bf16.gmra.mrb[0].mxu0 %v1885
        %v2441 = vpop.f32.mrb[0].mxu0
        %v2442 = vadd.f32 %v2329, %v2441
        %v2443 = vpop.f32.mrb[0].mxu0
        %v2444 = vpop.f32.mrb[0].mxu0
        %v2445 = vadd.f32 %v2332, %v2444
        %v2446 = vpop.f32.mrb[0].mxu0
        %2447 = vmatprep.mubr.bf16.mxu0 0
        %2448 = vmatmul.mubr.bf16.gmra.mrb[0].mxu0 %v1890
        %v2449 = vpop.f32.mrb[0].mxu0
        %v2450 = vadd.f32 %v2337, %v2449
        %v2451 = vpop.f32.mrb[0].mxu0
        %v2452 = vpop.f32.mrb[0].mxu0
        %v2453 = vadd.f32 %v2340, %v2452
        %v2454 = vpop.f32.mrb[0].mxu0
        %2455 = vmatprep.mubr.bf16.mxu0 0
        %2456 = vmatmul.mubr.bf16.gmra.mrb[0].mxu0 %v1895
        %v2457 = vpop.f32.mrb[0].mxu0
        %v2458 = vadd.f32 %v2345, %v2457
        %v2459 = vpop.f32.mrb[0].mxu0
        %v2460 = vpop.f32.mrb[0].mxu0
        %v2461 = vadd.f32 %v2348, %v2460
        %v2462 = vpop.f32.mrb[0].mxu0
        %2463 = vmatprep.mubr.bf16.mxu0 0
        %2464 = vmatmul.mubr.bf16.gmra.mrb[0].mxu0 %v1900
        %v2465 = vpop.f32.mrb[0].mxu0
        %v2466 = vadd.f32 %v2353, %v2465
        %v2467 = vpop.f32.mrb[0].mxu0
        %v2468 = vpop.f32.mrb[0].mxu0
        %v2469 = vadd.f32 %v2356, %v2468
        %v2470 = vpop.f32.mrb[0].mxu0
        %2471 = vmatprep.mubr.bf16.mxu0 0
        %2472 = vmatmul.mubr.bf16.gmra.mrb[0].mxu0 %v1905
        %v2473 = vpop.f32.mrb[0].mxu0
        %v2474 = vadd.f32 %v2361, %v2473
        %v2475 = vpop.f32.mrb[0].mxu0
        %v2476 = vpop.f32.mrb[0].mxu0
        %v2477 = vadd.f32 %v2364, %v2476
        %v2478 = vpop.f32.mrb[0].mxu0
        %2479 = vmatprep.mubr.bf16.mxu0 0
        %2480 = vmatmul.mubr.bf16.gmra.mrb[0].mxu0 %v1910
        %v2481 = vpop.f32.mrb[0].mxu0
        %v2482 = vadd.f32 %v2369, %v2481
        %v2483 = vpop.f32.mrb[0].mxu0
        %v2484 = vpop.f32.mrb[0].mxu0
        %v2485 = vadd.f32 %v2372, %v2484
        %v2486 = vpop.f32.mrb[0].mxu0
        %2487 = vmatprep.mubr.bf16.mxu0 0
        %2488 = vmatmul.mubr.bf16.gmra.mrb[0].mxu0 %v1915
        %v2489 = vpop.f32.mrb[0].mxu0
        %v2490 = vadd.f32 %v2377, %v2489
        %v2491 = vpop.f32.mrb[0].mxu0
        %v2492 = vpop.f32.mrb[0].mxu0
        %v2493 = vadd.f32 %v2380, %v2492
        %v2494 = vpop.f32.mrb[0].mxu0
        %2495 = vmatprep.mubr.bf16.mxu0 0
        %2496 = vmatmul.mubr.bf16.gmra.mrb[0].mxu0 %v1920
        %v2497 = vpop.f32.mrb[0].mxu0
        %v2498 = vadd.f32 %v2385, %v2497
        %v2499 = vpop.f32.mrb[0].mxu0
        %v2500 = vpop.f32.mrb[0].mxu0
        %v2501 = vadd.f32 %v2388, %v2500
        %v2502 = vpop.f32.mrb[0].mxu0
        %2503 = vmatprep.mubr.bf16.mxu0 0
        %2504 = vmatmul.mubr.bf16.gmra.mrb[0].mxu0 %v1925
        %v2505 = vpop.f32.mrb[0].mxu0
        %v2506 = vadd.f32 %v2393, %v2505
        %v2507 = vpop.f32.mrb[0].mxu0
        %v2508 = vpop.f32.mrb[0].mxu0
        %v2509 = vadd.f32 %v2396, %v2508
        %v2510 = vpop.f32.mrb[0].mxu0
        %2511 = vdwg.mxu0
        %v2512 = vmax.f32 %v2434, 0.0
        %v2513 = vmax.f32 %v2437, 0.0
        %v2514 = vmax.f32 %v2442, 0.0
        %v2515 = vmax.f32 %v2445, 0.0
        %v2516 = vmax.f32 %v2450, 0.0
        %v2517 = vmax.f32 %v2453, 0.0
        %v2518 = vmax.f32 %v2458, 0.0
        %v2519 = vmax.f32 %v2461, 0.0
        %v2520 = vmax.f32 %v2466, 0.0
        %v2521 = vmax.f32 %v2469, 0.0
        %v2522 = vmax.f32 %v2474, 0.0
        %v2523 = vmax.f32 %v2477, 0.0
        %v2524 = vmax.f32 %v2482, 0.0
        %v2525 = vmax.f32 %v2485, 0.0
        %v2526 = vmax.f32 %v2490, 0.0
        %v2527 = vmax.f32 %v2493, 0.0
        %v2528 = vmax.f32 %v2498, 0.0
        %v2529 = vmax.f32 %v2501, 0.0
        %v2530 = vmax.f32 %v2506, 0.0
        %v2531 = vmax.f32 %v2509, 0.0
        %v2532 = vld [vmem:[#allocation8] sm:$0xf]
        %v2533 = vld [vmem:[#allocation8 + $0x4] sm:$0xf]
        %v2534 = vld [vmem:[#allocation8 + $0x8] sm:$0xf]
        %v2535 = vld [vmem:[#allocation8 + $0xc] sm:$0xf]
        %v2536 = vld [vmem:[#allocation8 + $0x10] sm:$0xf]
        %v2537 = vld [vmem:[#allocation8 + $0x14] sm:$0xf]
        %v2538 = vld [vmem:[#allocation8 + $0x18] sm:$0xf]
        %v2539 = vld [vmem:[#allocation8 + $0x1c] sm:$0xf]
        %v2540 = vld [vmem:[#allocation8 + $0x20] sm:$0xf]
        %v2541 = vld [vmem:[#allocation8 + $0x24] sm:$0xf]
        %v2542 = vld [vmem:[#allocation8 + $0x28] sm:$0xf]
        %v2543 = vld [vmem:[#allocation8 + $0x2c] sm:$0xf]
        %v2544 = vld [vmem:[#allocation8 + $0x30] sm:$0xf]
        %v2545 = vld [vmem:[#allocation8 + $0x34] sm:$0xf]
        %v2546 = vld [vmem:[#allocation8 + $0x38] sm:$0xf]
        %v2547 = vld [vmem:[#allocation8 + $0x3c] sm:$0xf]
        %v2548 = vpack.c.bf16 %v2513, %v2512
        %v2549 = vpack.c.bf16 %v2515, %v2514
        %v2550 = vpack.c.bf16 %v2517, %v2516
        %v2551 = vpack.c.bf16 %v2519, %v2518
        %v2552 = vpack.c.bf16 %v2521, %v2520
        %v2553 = vpack.c.bf16 %v2523, %v2522
        %v2554 = vpack.c.bf16 %v2525, %v2524
        %v2555 = vpack.c.bf16 %v2527, %v2526
        %v2556 = vpack.c.bf16 %v2529, %v2528
        %v2557 = vpack.c.bf16 %v2531, %v2530
        %v2558 = vld [vmem:[#allocation10] sm:$0x1]
        %v2560 = vlaneseq
        %v2561 = vshrl.u32 %v2560, 7
        %v2562 = vsub.s32 0, %v2561
        %v2563 = vrot.slane %v2558, %v2562
        %v2581 = vunpack.c.l.b16 %v2532
        %v2582 = vunpack.c.l.b16 %v2533
        %v2583 = vunpack.c.l.b16 %v2534
        %v2584 = vunpack.c.l.b16 %v2535
        %v2585 = vunpack.c.l.b16 %v2536
        %v2586 = vunpack.c.l.b16 %v2537
        %v2587 = vunpack.c.l.b16 %v2538
        %v2588 = vunpack.c.l.b16 %v2539
        %v2589 = vunpack.c.l.b16 %v2540
        %v2590 = vunpack.c.l.b16 %v2541
        %v2591 = vunpack.c.l.b16 %v2542
        %v2592 = vunpack.c.l.b16 %v2543
        %v2593 = vunpack.c.l.b16 %v2544
        %v2594 = vunpack.c.l.b16 %v2545
        %v2595 = vunpack.c.l.b16 %v2546
        %v2596 = vunpack.c.l.b16 %v2547
        %v2597 = vpack.c.b16 %v2582, %v2581
        %v2598 = vpack.c.b16 %v2584, %v2583
        %v2599 = vpack.c.b16 %v2586, %v2585
        %v2600 = vpack.c.b16 %v2588, %v2587
        %v2601 = vpack.c.b16 %v2590, %v2589
        %v2602 = vpack.c.b16 %v2592, %v2591
        %v2603 = vpack.c.b16 %v2594, %v2593
        %v2604 = vpack.c.b16 %v2596, %v2595
        %2613 = vmatprep.subr.bf16.mxu0 0
        %2614 = vmatpush1.bf16.msra.mxu0 %v2597
        %2615 = vmatprep.subr.bf16.mxu0 0
        %2616 = vmatpush1.bf16.msra.mxu0 %v2598
        %2617 = vmatprep.subr.bf16.mxu0 0
        %2618 = vmatpush1.bf16.msra.mxu0 %v2599
        %2619 = vmatprep.subr.bf16.mxu0 0
        %2620 = vmatpush1.bf16.msra.mxu0 %v2600
        %2621 = vmatprep.subr.bf16.mxu0 0
        %2622 = vmatpush1.bf16.msra.mxu0 %v2601
        %2623 = vmatprep.subr.bf16.mxu0 0
        %2624 = vmatpush1.bf16.msra.mxu0 %v2602
        %2625 = vmatprep.subr.bf16.mxu0 0
        %2626 = vmatpush1.bf16.msra.mxu0 %v2603
        %2627 = vmatprep.subr.bf16.mxu0 0
        %2628 = vmatpush1.bf16.msra.mxu0 %v2604
        %2629 = vmatprep.subr.bf16.mxu0 0
        %2630 = vmatpush1.bf16.msra.mxu0 0
        %2631 = vmatprep.subr.bf16.mxu0 0
        %2632 = vmatpush1.bf16.msra.mxu0 0
        %2633 = vmatprep.subr.bf16.mxu0 0
        %2634 = vmatpush1.bf16.msra.mxu0 0
        %2635 = vmatprep.subr.bf16.mxu0 0
        %2636 = vmatpush1.bf16.msra.mxu0 0
        %2637 = vmatprep.subr.bf16.mxu0 0
        %2638 = vmatpush1.bf16.msra.mxu0 0
        %2639 = vmatprep.subr.bf16.mxu0 0
        %2640 = vmatpush1.bf16.msra.mxu0 0
        %2641 = vmatprep.subr.bf16.mxu0 0
        %2642 = vmatpush1.bf16.msra.mxu0 0
        %2643 = vmatprep.subr.bf16.mxu0 0
        %2644 = vmatpush1.bf16.msra.mxu0 0
        %2645 = vmatprep.mubr.bf16.mxu0 0
        %2646 = vmatmul.mubr.bf16.gmra.mrb[0].mxu0 %v2548
        %v2647 = vpop.f32.mrb[0].mxu0
        %v2648 = vadd.f32 %v2563, %v2647
        %v2649 = vpop.f32.mrb[0].mxu0
        %v2650 = vpop.f32.mrb[0].mxu0
        %v2651 = vadd.f32 %v2563, %v2650
        %v2652 = vpop.f32.mrb[0].mxu0
        %2653 = vmatprep.mubr.bf16.mxu0 0
        %2654 = vmatmul.mubr.bf16.gmra.mrb[0].mxu0 %v2549
        %v2655 = vpop.f32.mrb[0].mxu0
        %v2656 = vadd.f32 %v2563, %v2655
        %v2657 = vpop.f32.mrb[0].mxu0
        %v2658 = vpop.f32.mrb[0].mxu0
        %v2659 = vadd.f32 %v2563, %v2658
        %v2660 = vpop.f32.mrb[0].mxu0
        %2661 = vmatprep.mubr.bf16.mxu0 0
        %2662 = vmatmul.mubr.bf16.gmra.mrb[0].mxu0 %v2550
        %v2663 = vpop.f32.mrb[0].mxu0
        %v2664 = vadd.f32 %v2563, %v2663
        %v2665 = vpop.f32.mrb[0].mxu0
        %v2666 = vpop.f32.mrb[0].mxu0
        %v2667 = vadd.f32 %v2563, %v2666
        %v2668 = vpop.f32.mrb[0].mxu0
        %2669 = vmatprep.mubr.bf16.mxu0 0
        %2670 = vmatmul.mubr.bf16.gmra.mrb[0].mxu0 %v2551
        %v2671 = vpop.f32.mrb[0].mxu0
        %v2672 = vadd.f32 %v2563, %v2671
        %v2673 = vpop.f32.mrb[0].mxu0
        %v2674 = vpop.f32.mrb[0].mxu0
        %v2675 = vadd.f32 %v2563, %v2674
        %v2676 = vpop.f32.mrb[0].mxu0
        %2677 = vmatprep.mubr.bf16.mxu0 0
        %2678 = vmatmul.mubr.bf16.gmra.mrb[0].mxu0 %v2552
        %v2679 = vpop.f32.mrb[0].mxu0
        %v2680 = vadd.f32 %v2563, %v2679
        %v2681 = vpop.f32.mrb[0].mxu0
        %v2682 = vpop.f32.mrb[0].mxu0
        %v2683 = vadd.f32 %v2563, %v2682
        %v2684 = vpop.f32.mrb[0].mxu0
        %2685 = vmatprep.mubr.bf16.mxu0 0
        %2686 = vmatmul.mubr.bf16.gmra.mrb[0].mxu0 %v2553
        %v2687 = vpop.f32.mrb[0].mxu0
        %v2688 = vadd.f32 %v2563, %v2687
        %v2689 = vpop.f32.mrb[0].mxu0
        %v2690 = vpop.f32.mrb[0].mxu0
        %v2691 = vadd.f32 %v2563, %v2690
        %v2692 = vpop.f32.mrb[0].mxu0
        %2693 = vmatprep.mubr.bf16.mxu0 0
        %2694 = vmatmul.mubr.bf16.gmra.mrb[0].mxu0 %v2554
        %v2695 = vpop.f32.mrb[0].mxu0
        %v2696 = vadd.f32 %v2563, %v2695
        %v2697 = vpop.f32.mrb[0].mxu0
        %v2698 = vpop.f32.mrb[0].mxu0
        %v2699 = vadd.f32 %v2563, %v2698
        %v2700 = vpop.f32.mrb[0].mxu0
        %2701 = vmatprep.mubr.bf16.mxu0 0
        %2702 = vmatmul.mubr.bf16.gmra.mrb[0].mxu0 %v2555
        %v2703 = vpop.f32.mrb[0].mxu0
        %v2704 = vadd.f32 %v2563, %v2703
        %v2705 = vpop.f32.mrb[0].mxu0
        %v2706 = vpop.f32.mrb[0].mxu0
        %v2707 = vadd.f32 %v2563, %v2706
        %v2708 = vpop.f32.mrb[0].mxu0
        %2709 = vmatprep.mubr.bf16.mxu0 0
        %2710 = vmatmul.mubr.bf16.gmra.mrb[0].mxu0 %v2556
        %v2711 = vpop.f32.mrb[0].mxu0
        %v2712 = vadd.f32 %v2563, %v2711
        %v2713 = vpop.f32.mrb[0].mxu0
        %v2714 = vpop.f32.mrb[0].mxu0
        %v2715 = vadd.f32 %v2563, %v2714
        %v2716 = vpop.f32.mrb[0].mxu0
        %2717 = vmatprep.mubr.bf16.mxu0 0
        %2718 = vmatmul.mubr.bf16.gmra.mrb[0].mxu0 %v2557
        %v2719 = vpop.f32.mrb[0].mxu0
        %v2720 = vadd.f32 %v2563, %v2719
        %v2721 = vpop.f32.mrb[0].mxu0
        %v2722 = vpop.f32.mrb[0].mxu0
        %v2723 = vadd.f32 %v2563, %v2722
        %v2724 = vpop.f32.mrb[0].mxu0
        %2725 = vdwg.mxu0
        %v2726 = vmax.f32 %v2648, 0.0
        %v2727 = vmax.f32 %v2651, 0.0
        %v2728 = vmax.f32 %v2656, 0.0
        %v2729 = vmax.f32 %v2659, 0.0
        %v2730 = vmax.f32 %v2664, 0.0
        %v2731 = vmax.f32 %v2667, 0.0
        %v2732 = vmax.f32 %v2672, 0.0
        %v2733 = vmax.f32 %v2675, 0.0
        %v2734 = vmax.f32 %v2680, 0.0
        %v2735 = vmax.f32 %v2683, 0.0
        %v2736 = vmax.f32 %v2688, 0.0
        %v2737 = vmax.f32 %v2691, 0.0
        %v2738 = vmax.f32 %v2696, 0.0
        %v2739 = vmax.f32 %v2699, 0.0
        %v2740 = vmax.f32 %v2704, 0.0
        %v2741 = vmax.f32 %v2707, 0.0
        %v2742 = vmax.f32 %v2712, 0.0
        %v2743 = vmax.f32 %v2715, 0.0
        %v2744 = vmax.f32 %v2720, 0.0
        %v2745 = vmax.f32 %v2723, 0.0
        %v2767 = vrot.slane %v1506, 1
        %v2768 = vrot.slane %v1507, 1
        %v2769 = vsel %vm1548, %v2767, %v2768
        %v2770 = vrot.slane %v1508, 1
        %v2771 = vsel %vm1548, %v2768, %v2770
        %v2772 = vrot.slane %v1509, 1
        %v2773 = vsel %vm1548, %v2770, %v2772
        %v2774 = vrot.slane %v1510, 1
        %v2775 = vsel %vm1548, %v2772, %v2774
        %v2776 = vrot.slane %v1511, 1
        %v2777 = vsel %vm1548, %v2774, %v2776
        %v2778 = vrot.slane %v1512, 1
        %v2779 = vsel %vm1548, %v2776, %v2778
        %v2780 = vrot.slane %v1513, 1
        %v2781 = vsel %vm1548, %v2778, %v2780
        %v2782 = vrot.slane %v1514, 1
        %v2783 = vsel %vm1548, %v2780, %v2782
        %v2784 = vrot.slane %v1515, 1
        %v2785 = vsel %vm1548, %v2782, %v2784
        %v2786 = vrot.slane %v1516, 1
        %v2787 = vsel %vm1548, %v2784, %v2786
        %v2788 = vrot.slane %v1517, 1
        %v2789 = vsel %vm1548, %v2786, %v2788
        %v2790 = vrot.slane %v1518, 1
        %v2791 = vsel %vm1548, %v2788, %v2790
        %v2792 = vrot.slane %v1519, 1
        %v2793 = vsel %vm1548, %v2790, %v2792
        %v2794 = vrot.slane %v1520, 1
        %v2795 = vsel %vm1548, %v2792, %v2794
        %v2796 = vrot.slane %v1521, 1
        %v2797 = vsel %vm1548, %v2794, %v2796
        %v2798 = vrot.slane %v1522, 1
        %v2799 = vsel %vm1548, %v2796, %v2798
        %v2800 = vrot.slane %v1523, 1
        %v2801 = vsel %vm1548, %v2798, %v2800
        %v2802 = vrot.slane %v1524, 1
        %v2803 = vsel %vm1548, %v2800, %v2802
        %v2804 = vrot.slane %v1525, 1
        %v2805 = vsel %vm1548, %v2802, %v2804
        %v2806 = vrot.slane %v1526, 1
        %v2807 = vsel %vm1548, %v2804, %v2806
        %v2829 = vrot.slane %v1506, 2
        %v2830 = vrot.slane %v1507, 2
        %v2831 = vsel %vm1610, %v2829, %v2830
        %v2832 = vrot.slane %v1508, 2
        %v2833 = vsel %vm1610, %v2830, %v2832
        %v2834 = vrot.slane %v1509, 2
        %v2835 = vsel %vm1610, %v2832, %v2834
        %v2836 = vrot.slane %v1510, 2
        %v2837 = vsel %vm1610, %v2834, %v2836
        %v2838 = vrot.slane %v1511, 2
        %v2839 = vsel %vm1610, %v2836, %v2838
        %v2840 = vrot.slane %v1512, 2
        %v2841 = vsel %vm1610, %v2838, %v2840
        %v2842 = vrot.slane %v1513, 2
        %v2843 = vsel %vm1610, %v2840, %v2842
        %v2844 = vrot.slane %v1514, 2
        %v2845 = vsel %vm1610, %v2842, %v2844
        %v2846 = vrot.slane %v1515, 2
        %v2847 = vsel %vm1610, %v2844, %v2846
        %v2848 = vrot.slane %v1516, 2
        %v2849 = vsel %vm1610, %v2846, %v2848
        %v2850 = vrot.slane %v1517, 2
        %v2851 = vsel %vm1610, %v2848, %v2850
        %v2852 = vrot.slane %v1518, 2
        %v2853 = vsel %vm1610, %v2850, %v2852
        %v2854 = vrot.slane %v1519, 2
        %v2855 = vsel %vm1610, %v2852, %v2854
        %v2856 = vrot.slane %v1520, 2
        %v2857 = vsel %vm1610, %v2854, %v2856
        %v2858 = vrot.slane %v1521, 2
        %v2859 = vsel %vm1610, %v2856, %v2858
        %v2860 = vrot.slane %v1522, 2
        %v2861 = vsel %vm1610, %v2858, %v2860
        %v2862 = vrot.slane %v1523, 2
        %v2863 = vsel %vm1610, %v2860, %v2862
        %v2864 = vrot.slane %v1524, 2
        %v2865 = vsel %vm1610, %v2862, %v2864
        %v2866 = vrot.slane %v1525, 2
        %v2867 = vsel %vm1610, %v2864, %v2866
        %v2868 = vrot.slane %v1526, 2
        %v2869 = vsel %vm1610, %v2866, %v2868
        %v2891 = vld [vmem:[%s9] sm:$0xf]
        %v2892 = vld [vmem:[%s9 + $0x4] sm:$0xf]
        %v2893 = vld [vmem:[%s9 + $0x8] sm:$0xf]
        %v2894 = vld [vmem:[%s9 + $0xc] sm:$0xf]
        %v2895 = vld [vmem:[%s9 + $0x10] sm:$0xf]
        %v2896 = vld [vmem:[%s9 + $0x14] sm:$0xf]
        %v2897 = vld [vmem:[%s9 + $0x18] sm:$0xf]
        %v2898 = vld [vmem:[%s9 + $0x1c] sm:$0xf]
        %v2899 = vld [vmem:[%s9 + $0x20] sm:$0xf]
        %v2900 = vld [vmem:[%s9 + $0x24] sm:$0xf]
        %v2901 = vld [vmem:[%s9 + $0x28] sm:$0xf]
        %v2902 = vld [vmem:[%s9 + $0x2c] sm:$0xf]
        %v2903 = vld [vmem:[%s9 + $0x30] sm:$0xf]
        %v2904 = vld [vmem:[%s9 + $0x34] sm:$0xf]
        %v2905 = vld [vmem:[%s9 + $0x38] sm:$0xf]
        %v2906 = vld [vmem:[%s9 + $0x3c] sm:$0xf]
        %v2907 = vld [vmem:[%s9 + $0x40] sm:$0xf]
        %v2908 = vld [vmem:[%s9 + $0x44] sm:$0xf]
        %v2909 = vld [vmem:[%s9 + $0x48] sm:$0xf]
        %v2910 = vld [vmem:[%s9 + $0x4c] sm:$0xf]
        %v2911 = vld [vmem:[%s9 + $0x50] sm:$0xf]
        %v2912 = vld [vmem:[%s9 + $0x54] sm:$0xf]
        %v2913 = vld [vmem:[%s9 + $0x58] sm:$0xf]
        %v2914 = vld [vmem:[%s9 + $0x5c] sm:$0xf]
        %v2915 = vld [vmem:[%s9 + $0x60] sm:$0xf]
        %v2916 = vld [vmem:[%s9 + $0x64] sm:$0xf]
        %v2917 = vld [vmem:[%s9 + $0x68] sm:$0xf]
        %v2918 = vld [vmem:[%s9 + $0x6c] sm:$0xf]
        %v2919 = vld [vmem:[%s9 + $0x70] sm:$0xf]
        %v2920 = vld [vmem:[%s9 + $0x74] sm:$0xf]
        %v2921 = vld [vmem:[%s9 + $0x78] sm:$0xf]
        %v2922 = vld [vmem:[%s9 + $0x7c] sm:$0xf]
        %v2923 = vld [vmem:[%s9 + $0x80] sm:$0xf]
        %v2924 = vld [vmem:[%s9 + $0x84] sm:$0xf]
        %v2925 = vld [vmem:[%s9 + $0x88] sm:$0xf]
        %v2926 = vld [vmem:[%s9 + $0x8c] sm:$0xf]
        %v2927 = vld [vmem:[%s9 + $0x90] sm:$0xf]
        %v2928 = vld [vmem:[%s9 + $0x94] sm:$0xf]
        %v2929 = vld [vmem:[%s9 + $0x98] sm:$0xf]
        %v2930 = vld [vmem:[%s9 + $0x9c] sm:$0xf]
        %v2931 = vld [vmem:[%s9 + $0xa0] sm:$0xf]
        %v2932 = vld [vmem:[%s9 + $0xa4] sm:$0xf]
        %v2933 = vld [vmem:[%s9 + $0xa8] sm:$0xf]
        %v2934 = vld [vmem:[%s9 + $0xac] sm:$0xf]
        %v2935 = vld [vmem:[%s9 + $0xb0] sm:$0xf]
        %v2936 = vld [vmem:[%s9 + $0xb4] sm:$0xf]
        %v2937 = vld [vmem:[%s9 + $0xb8] sm:$0xf]
        %v2938 = vld [vmem:[%s9 + $0xbc] sm:$0xf]
        %v2939 = vpack.c.bf16 %v1507, %v1506
        %v2940 = vpack.c.bf16 %v2771, %v2769
        %v2941 = vpack.c.bf16 %v2833, %v2831
        %v2942 = vpack.c.bf16 %v1509, %v1508
        %v2943 = vpack.c.bf16 %v2775, %v2773
        %v2944 = vpack.c.bf16 %v2837, %v2835
        %v2945 = vpack.c.bf16 %v1511, %v1510
        %v2946 = vpack.c.bf16 %v2779, %v2777
        %v2947 = vpack.c.bf16 %v2841, %v2839
        %v2948 = vpack.c.bf16 %v1513, %v1512
        %v2949 = vpack.c.bf16 %v2783, %v2781
        %v2950 = vpack.c.bf16 %v2845, %v2843
        %v2951 = vpack.c.bf16 %v1515, %v1514
        %v2952 = vpack.c.bf16 %v2787, %v2785
        %v2953 = vpack.c.bf16 %v2849, %v2847
        %v2954 = vpack.c.bf16 %v1517, %v1516
        %v2955 = vpack.c.bf16 %v2791, %v2789
        %v2956 = vpack.c.bf16 %v2853, %v2851
        %v2957 = vpack.c.bf16 %v1519, %v1518
        %v2958 = vpack.c.bf16 %v2795, %v2793
        %v2959 = vpack.c.bf16 %v2857, %v2855
        %v2960 = vpack.c.bf16 %v1521, %v1520
        %v2961 = vpack.c.bf16 %v2799, %v2797
        %v2962 = vpack.c.bf16 %v2861, %v2859
        %v2963 = vpack.c.bf16 %v1523, %v1522
        %v2964 = vpack.c.bf16 %v2803, %v2801
        %v2965 = vpack.c.bf16 %v2865, %v2863
        %v2966 = vpack.c.bf16 %v1525, %v1524
        %v2967 = vpack.c.bf16 %v2807, %v2805
        %v2968 = vpack.c.bf16 %v2869, %v2867
        %v2969 = vpack.c.bf16 %v1526, %v1526
        %v2970 = vpack.c.bf16 %v2806, %v2806
        %v2971 = vpack.c.bf16 %v2868, %v2868
        %v2972 = vld [vmem:[#allocation11] sm:$0x1]
        %v2974 = vlaneseq
        %v2975 = vshrl.u32 %v2974, 7
        %v2976 = vsub.s32 0, %v2975
        %v2977 = vrot.slane %v2972, %v2976
        %vm2979 = vsmask.f32 7424
        %v2981 = vshrl.u32 %v2939, 16
        %v2983 = vshll.u32 %v2939, 16
        %v2985 = vrot.slane %v2983, 1
        %v2986 = vor.u32 %v2981, %v2985
        %v2988 = vshll.u32 %v2942, 16
        %v2990 = vrot.slane %v2988, 1
        %v2991 = vsel %vm2979, %v2986, %v2990
        %v2993 = vshrl.u32 %v2940, 16
        %v2995 = vshll.u32 %v2940, 16
        %v2997 = vrot.slane %v2995, 1
        %v2998 = vor.u32 %v2993, %v2997
        %v3000 = vshll.u32 %v2943, 16
        %v3002 = vrot.slane %v3000, 1
        %v3003 = vsel %vm2979, %v2998, %v3002
        %v3005 = vshrl.u32 %v2941, 16
        %v3007 = vshll.u32 %v2941, 16
        %v3009 = vrot.slane %v3007, 1
        %v3010 = vor.u32 %v3005, %v3009
        %v3012 = vshll.u32 %v2944, 16
        %v3014 = vrot.slane %v3012, 1
        %v3015 = vsel %vm2979, %v3010, %v3014
        %v3016 = vshrl.u32 %v2942, 16
        %v3018 = vor.u32 %v3016, %v2990
        %v3020 = vshll.u32 %v2945, 16
        %v3022 = vrot.slane %v3020, 1
        %v3023 = vsel %vm2979, %v3018, %v3022
        %v3024 = vshrl.u32 %v2943, 16
        %v3026 = vor.u32 %v3024, %v3002
        %v3028 = vshll.u32 %v2946, 16
        %v3030 = vrot.slane %v3028, 1
        %v3031 = vsel %vm2979, %v3026, %v3030
        %v3032 = vshrl.u32 %v2944, 16
        %v3034 = vor.u32 %v3032, %v3014
        %v3036 = vshll.u32 %v2947, 16
        %v3038 = vrot.slane %v3036, 1
        %v3039 = vsel %vm2979, %v3034, %v3038
        %v3040 = vshrl.u32 %v2945, 16
        %v3042 = vor.u32 %v3040, %v3022
        %v3044 = vshll.u32 %v2948, 16
        %v3046 = vrot.slane %v3044, 1
        %v3047 = vsel %vm2979, %v3042, %v3046
        %v3048 = vshrl.u32 %v2946, 16
        %v3050 = vor.u32 %v3048, %v3030
        %v3052 = vshll.u32 %v2949, 16
        %v3054 = vrot.slane %v3052, 1
        %v3055 = vsel %vm2979, %v3050, %v3054
        %v3056 = vshrl.u32 %v2947, 16
        %v3058 = vor.u32 %v3056, %v3038
        %v3060 = vshll.u32 %v2950, 16
        %v3062 = vrot.slane %v3060, 1
        %v3063 = vsel %vm2979, %v3058, %v3062
        %v3064 = vshrl.u32 %v2948, 16
        %v3066 = vor.u32 %v3064, %v3046
        %v3068 = vshll.u32 %v2951, 16
        %v3070 = vrot.slane %v3068, 1
        %v3071 = vsel %vm2979, %v3066, %v3070
        %v3072 = vshrl.u32 %v2949, 16
        %v3074 = vor.u32 %v3072, %v3054
        %v3076 = vshll.u32 %v2952, 16
        %v3078 = vrot.slane %v3076, 1
        %v3079 = vsel %vm2979, %v3074, %v3078
        %v3080 = vshrl.u32 %v2950, 16
        %v3082 = vor.u32 %v3080, %v3062
        %v3084 = vshll.u32 %v2953, 16
        %v3086 = vrot.slane %v3084, 1
        %v3087 = vsel %vm2979, %v3082, %v3086
        %v3088 = vshrl.u32 %v2951, 16
        %v3090 = vor.u32 %v3088, %v3070
        %v3092 = vshll.u32 %v2954, 16
        %v3094 = vrot.slane %v3092, 1
        %v3095 = vsel %vm2979, %v3090, %v3094
        %v3096 = vshrl.u32 %v2952, 16
        %v3098 = vor.u32 %v3096, %v3078
        %v3100 = vshll.u32 %v2955, 16
        %v3102 = vrot.slane %v3100, 1
        %v3103 = vsel %vm2979, %v3098, %v3102
        %v3104 = vshrl.u32 %v2953, 16
        %v3106 = vor.u32 %v3104, %v3086
        %v3108 = vshll.u32 %v2956, 16
        %v3110 = vrot.slane %v3108, 1
        %v3111 = vsel %vm2979, %v3106, %v3110
        %v3112 = vshrl.u32 %v2954, 16
        %v3114 = vor.u32 %v3112, %v3094
        %v3116 = vshll.u32 %v2957, 16
        %v3118 = vrot.slane %v3116, 1
        %v3119 = vsel %vm2979, %v3114, %v3118
        %v3120 = vshrl.u32 %v2955, 16
        %v3122 = vor.u32 %v3120, %v3102
        %v3124 = vshll.u32 %v2958, 16
        %v3126 = vrot.slane %v3124, 1
        %v3127 = vsel %vm2979, %v3122, %v3126
        %v3128 = vshrl.u32 %v2956, 16
        %v3130 = vor.u32 %v3128, %v3110
        %v3132 = vshll.u32 %v2959, 16
        %v3134 = vrot.slane %v3132, 1
        %v3135 = vsel %vm2979, %v3130, %v3134
        %v3136 = vshrl.u32 %v2957, 16
        %v3138 = vor.u32 %v3136, %v3118
        %v3140 = vshll.u32 %v2960, 16
        %v3142 = vrot.slane %v3140, 1
        %v3143 = vsel %vm2979, %v3138, %v3142
        %v3144 = vshrl.u32 %v2958, 16
        %v3146 = vor.u32 %v3144, %v3126
        %v3148 = vshll.u32 %v2961, 16
        %v3150 = vrot.slane %v3148, 1
        %v3151 = vsel %vm2979, %v3146, %v3150
        %v3152 = vshrl.u32 %v2959, 16
        %v3154 = vor.u32 %v3152, %v3134
        %v3156 = vshll.u32 %v2962, 16
        %v3158 = vrot.slane %v3156, 1
        %v3159 = vsel %vm2979, %v3154, %v3158
        %v3160 = vshrl.u32 %v2960, 16
        %v3162 = vor.u32 %v3160, %v3142
        %v3164 = vshll.u32 %v2963, 16
        %v3166 = vrot.slane %v3164, 1
        %v3167 = vsel %vm2979, %v3162, %v3166
        %v3168 = vshrl.u32 %v2961, 16
        %v3170 = vor.u32 %v3168, %v3150
        %v3172 = vshll.u32 %v2964, 16
        %v3174 = vrot.slane %v3172, 1
        %v3175 = vsel %vm2979, %v3170, %v3174
        %v3176 = vshrl.u32 %v2962, 16
        %v3178 = vor.u32 %v3176, %v3158
        %v3180 = vshll.u32 %v2965, 16
        %v3182 = vrot.slane %v3180, 1
        %v3183 = vsel %vm2979, %v3178, %v3182
        %v3184 = vshrl.u32 %v2963, 16
        %v3186 = vor.u32 %v3184, %v3166
        %v3188 = vshll.u32 %v2966, 16
        %v3190 = vrot.slane %v3188, 1
        %v3191 = vsel %vm2979, %v3186, %v3190
        %v3192 = vshrl.u32 %v2964, 16
        %v3194 = vor.u32 %v3192, %v3174
        %v3196 = vshll.u32 %v2967, 16
        %v3198 = vrot.slane %v3196, 1
        %v3199 = vsel %vm2979, %v3194, %v3198
        %v3200 = vshrl.u32 %v2965, 16
        %v3202 = vor.u32 %v3200, %v3182
        %v3204 = vshll.u32 %v2968, 16
        %v3206 = vrot.slane %v3204, 1
        %v3207 = vsel %vm2979, %v3202, %v3206
        %v3208 = vshrl.u32 %v2966, 16
        %v3210 = vor.u32 %v3208, %v3190
        %v3212 = vshll.u32 %v2969, 16
        %v3214 = vrot.slane %v3212, 1
        %v3215 = vsel %vm2979, %v3210, %v3214
        %v3216 = vshrl.u32 %v2967, 16
        %v3218 = vor.u32 %v3216, %v3198
        %v3220 = vshll.u32 %v2970, 16
        %v3222 = vrot.slane %v3220, 1
        %v3223 = vsel %vm2979, %v3218, %v3222
        %v3224 = vshrl.u32 %v2968, 16
        %v3226 = vor.u32 %v3224, %v3206
        %v3228 = vshll.u32 %v2971, 16
        %v3230 = vrot.slane %v3228, 1
        %v3231 = vsel %vm2979, %v3226, %v3230
        %v3310 = vunpack.c.l.b16 %v2891
        %v3311 = vunpack.c.l.b16 %v2892
        %v3312 = vunpack.c.l.b16 %v2893
        %v3313 = vunpack.c.l.b16 %v2894
        %v3314 = vunpack.c.l.b16 %v2895
        %v3315 = vunpack.c.l.b16 %v2896
        %v3316 = vunpack.c.l.b16 %v2897
        %v3317 = vunpack.c.l.b16 %v2898
        %v3318 = vunpack.c.l.b16 %v2899
        %v3319 = vunpack.c.l.b16 %v2900
        %v3320 = vunpack.c.l.b16 %v2901
        %v3321 = vunpack.c.l.b16 %v2902
        %v3322 = vunpack.c.l.b16 %v2903
        %v3323 = vunpack.c.l.b16 %v2904
        %v3324 = vunpack.c.l.b16 %v2905
        %v3325 = vunpack.c.l.b16 %v2906
        %v3326 = vunpack.c.l.b16 %v2907
        %v3327 = vunpack.c.l.b16 %v2908
        %v3328 = vunpack.c.l.b16 %v2909
        %v3329 = vunpack.c.l.b16 %v2910
        %v3330 = vunpack.c.l.b16 %v2911
        %v3331 = vunpack.c.l.b16 %v2912
        %v3332 = vunpack.c.l.b16 %v2913
        %v3333 = vunpack.c.l.b16 %v2914
        %v3334 = vunpack.c.l.b16 %v2915
        %v3335 = vunpack.c.l.b16 %v2916
        %v3336 = vunpack.c.l.b16 %v2917
        %v3337 = vunpack.c.l.b16 %v2918
        %v3338 = vunpack.c.l.b16 %v2919
        %v3339 = vunpack.c.l.b16 %v2920
        %v3340 = vunpack.c.l.b16 %v2921
        %v3341 = vunpack.c.l.b16 %v2922
        %v3342 = vunpack.c.l.b16 %v2923
        %v3343 = vunpack.c.l.b16 %v2924
        %v3344 = vunpack.c.l.b16 %v2925
        %v3345 = vunpack.c.l.b16 %v2926
        %v3346 = vunpack.c.l.b16 %v2927
        %v3347 = vunpack.c.l.b16 %v2928
        %v3348 = vunpack.c.l.b16 %v2929
        %v3349 = vunpack.c.l.b16 %v2930
        %v3350 = vunpack.c.l.b16 %v2931
        %v3351 = vunpack.c.l.b16 %v2932
        %v3352 = vunpack.c.l.b16 %v2933
        %v3353 = vunpack.c.l.b16 %v2934
        %v3354 = vunpack.c.l.b16 %v2935
        %v3355 = vunpack.c.l.b16 %v2936
        %v3356 = vunpack.c.l.b16 %v2937
        %v3357 = vunpack.c.l.b16 %v2938
        %v3358 = vpack.c.b16 %v3311, %v3310
        %v3359 = vpack.c.b16 %v3313, %v3312
        %v3360 = vpack.c.b16 %v3315, %v3314
        %v3361 = vpack.c.b16 %v3317, %v3316
        %v3362 = vpack.c.b16 %v3319, %v3318
        %v3363 = vpack.c.b16 %v3321, %v3320
        %v3364 = vpack.c.b16 %v3323, %v3322
        %v3365 = vpack.c.b16 %v3325, %v3324
        %v3366 = vpack.c.b16 %v3327, %v3326
        %v3367 = vpack.c.b16 %v3329, %v3328
        %v3368 = vpack.c.b16 %v3331, %v3330
        %v3369 = vpack.c.b16 %v3333, %v3332
        %v3370 = vpack.c.b16 %v3335, %v3334
        %v3371 = vpack.c.b16 %v3337, %v3336
        %v3372 = vpack.c.b16 %v3339, %v3338
        %v3373 = vpack.c.b16 %v3341, %v3340
        %v3374 = vpack.c.b16 %v3343, %v3342
        %v3375 = vpack.c.b16 %v3345, %v3344
        %v3376 = vpack.c.b16 %v3347, %v3346
        %v3377 = vpack.c.b16 %v3349, %v3348
        %v3378 = vpack.c.b16 %v3351, %v3350
        %v3379 = vpack.c.b16 %v3353, %v3352
        %v3380 = vpack.c.b16 %v3355, %v3354
        %v3381 = vpack.c.b16 %v3357, %v3356
        %3406 = vmatprep.subr.bf16.mxu0 0
        %3407 = vmatpush1.bf16.msra.mxu0 %v3358
        %3408 = vmatprep.subr.bf16.mxu0 0
        %3409 = vmatpush1.bf16.msra.mxu0 %v3359
        %3410 = vmatprep.subr.bf16.mxu0 0
        %3411 = vmatpush1.bf16.msra.mxu0 %v3360
        %3412 = vmatprep.subr.bf16.mxu0 0
        %3413 = vmatpush1.bf16.msra.mxu0 %v3361
        %3414 = vmatprep.subr.bf16.mxu0 0
        %3415 = vmatpush1.bf16.msra.mxu0 %v3362
        %3416 = vmatprep.subr.bf16.mxu0 0
        %3417 = vmatpush1.bf16.msra.mxu0 %v3363
        %3418 = vmatprep.subr.bf16.mxu0 0
        %3419 = vmatpush1.bf16.msra.mxu0 %v3364
        %3420 = vmatprep.subr.bf16.mxu0 0
        %3421 = vmatpush1.bf16.msra.mxu0 %v3365
        %3422 = vmatprep.subr.bf16.mxu0 0
        %3423 = vmatpush1.bf16.msra.mxu0 %v3366
        %3424 = vmatprep.subr.bf16.mxu0 0
        %3425 = vmatpush1.bf16.msra.mxu0 %v3367
        %3426 = vmatprep.subr.bf16.mxu0 0
        %3427 = vmatpush1.bf16.msra.mxu0 %v3368
        %3428 = vmatprep.subr.bf16.mxu0 0
        %3429 = vmatpush1.bf16.msra.mxu0 %v3369
        %3430 = vmatprep.subr.bf16.mxu0 0
        %3431 = vmatpush1.bf16.msra.mxu0 %v3370
        %3432 = vmatprep.subr.bf16.mxu0 0
        %3433 = vmatpush1.bf16.msra.mxu0 %v3371
        %3434 = vmatprep.subr.bf16.mxu0 0
        %3435 = vmatpush1.bf16.msra.mxu0 %v3372
        %3436 = vmatprep.subr.bf16.mxu0 0
        %3437 = vmatpush1.bf16.msra.mxu0 %v3373
        %3438 = vmatprep.mubr.bf16.mxu0 %v3003
        %3439 = vmatmul.mubr.bf16.gmra.mrb[0].mxu0 %v2991
        %v3440 = vpop.f32.mrb[0].mxu0
        %v3441 = vadd.f32 %v2977, %v3440
        %v3442 = vpop.f32.mrb[0].mxu0
        %v3443 = vpop.f32.mrb[0].mxu0
        %v3444 = vadd.f32 %v2977, %v3443
        %v3445 = vpop.f32.mrb[0].mxu0
        %3446 = vmatprep.mubr.bf16.mxu0 %v3031
        %3447 = vmatmul.mubr.bf16.gmra.mrb[0].mxu0 %v3023
        %v3448 = vpop.f32.mrb[0].mxu0
        %v3449 = vadd.f32 %v2977, %v3448
        %v3450 = vpop.f32.mrb[0].mxu0
        %v3451 = vpop.f32.mrb[0].mxu0
        %v3452 = vadd.f32 %v2977, %v3451
        %v3453 = vpop.f32.mrb[0].mxu0
        %3454 = vmatprep.mubr.bf16.mxu0 %v3055
        %3455 = vmatmul.mubr.bf16.gmra.mrb[0].mxu0 %v3047
        %v3456 = vpop.f32.mrb[0].mxu0
        %v3457 = vadd.f32 %v2977, %v3456
        %v3458 = vpop.f32.mrb[0].mxu0
        %v3459 = vpop.f32.mrb[0].mxu0
        %v3460 = vadd.f32 %v2977, %v3459
        %v3461 = vpop.f32.mrb[0].mxu0
        %3462 = vmatprep.mubr.bf16.mxu0 %v3079
        %3463 = vmatmul.mubr.bf16.gmra.mrb[0].mxu0 %v3071
        %v3464 = vpop.f32.mrb[0].mxu0
        %v3465 = vadd.f32 %v2977, %v3464
        %v3466 = vpop.f32.mrb[0].mxu0
        %v3467 = vpop.f32.mrb[0].mxu0
        %v3468 = vadd.f32 %v2977, %v3467
        %v3469 = vpop.f32.mrb[0].mxu0
        %3470 = vmatprep.mubr.bf16.mxu0 %v3103
        %3471 = vmatmul.mubr.bf16.gmra.mrb[0].mxu0 %v3095
        %v3472 = vpop.f32.mrb[0].mxu0
        %v3473 = vadd.f32 %v2977, %v3472
        %v3474 = vpop.f32.mrb[0].mxu0
        %v3475 = vpop.f32.mrb[0].mxu0
        %v3476 = vadd.f32 %v2977, %v3475
        %v3477 = vpop.f32.mrb[0].mxu0
        %3478 = vmatprep.mubr.bf16.mxu0 %v3127
        %3479 = vmatmul.mubr.bf16.gmra.mrb[0].mxu0 %v3119
        %v3480 = vpop.f32.mrb[0].mxu0
        %v3481 = vadd.f32 %v2977, %v3480
        %v3482 = vpop.f32.mrb[0].mxu0
        %v3483 = vpop.f32.mrb[0].mxu0
        %v3484 = vadd.f32 %v2977, %v3483
        %v3485 = vpop.f32.mrb[0].mxu0
        %3486 = vmatprep.mubr.bf16.mxu0 %v3151
        %3487 = vmatmul.mubr.bf16.gmra.mrb[0].mxu0 %v3143
        %v3488 = vpop.f32.mrb[0].mxu0
        %v3489 = vadd.f32 %v2977, %v3488
        %v3490 = vpop.f32.mrb[0].mxu0
        %v3491 = vpop.f32.mrb[0].mxu0
        %v3492 = vadd.f32 %v2977, %v3491
        %v3493 = vpop.f32.mrb[0].mxu0
        %3494 = vmatprep.mubr.bf16.mxu0 %v3175
        %3495 = vmatmul.mubr.bf16.gmra.mrb[0].mxu0 %v3167
        %v3496 = vpop.f32.mrb[0].mxu0
        %v3497 = vadd.f32 %v2977, %v3496
        %v3498 = vpop.f32.mrb[0].mxu0
        %v3499 = vpop.f32.mrb[0].mxu0
        %v3500 = vadd.f32 %v2977, %v3499
        %v3501 = vpop.f32.mrb[0].mxu0
        %3502 = vmatprep.mubr.bf16.mxu0 %v3199
        %3503 = vmatmul.mubr.bf16.gmra.mrb[0].mxu0 %v3191
        %v3504 = vpop.f32.mrb[0].mxu0
        %v3505 = vadd.f32 %v2977, %v3504
        %v3506 = vpop.f32.mrb[0].mxu0
        %v3507 = vpop.f32.mrb[0].mxu0
        %v3508 = vadd.f32 %v2977, %v3507
        %v3509 = vpop.f32.mrb[0].mxu0
        %3510 = vmatprep.mubr.bf16.mxu0 %v3223
        %3511 = vmatmul.mubr.bf16.gmra.mrb[0].mxu0 %v3215
        %v3512 = vpop.f32.mrb[0].mxu0
        %v3513 = vadd.f32 %v2977, %v3512
        %v3514 = vpop.f32.mrb[0].mxu0
        %v3515 = vpop.f32.mrb[0].mxu0
        %v3516 = vadd.f32 %v2977, %v3515
        %v3517 = vpop.f32.mrb[0].mxu0
        %3518 = vdwg.mxu0
        %3519 = vmatprep.subr.bf16.mxu0 0
        %3520 = vmatpush1.bf16.msra.mxu0 %v3374
        %3521 = vmatprep.subr.bf16.mxu0 0
        %3522 = vmatpush1.bf16.msra.mxu0 %v3375
        %3523 = vmatprep.subr.bf16.mxu0 0
        %3524 = vmatpush1.bf16.msra.mxu0 %v3376
        %3525 = vmatprep.subr.bf16.mxu0 0
        %3526 = vmatpush1.bf16.msra.mxu0 %v3377
        %3527 = vmatprep.subr.bf16.mxu0 0
        %3528 = vmatpush1.bf16.msra.mxu0 %v3378
        %3529 = vmatprep.subr.bf16.mxu0 0
        %3530 = vmatpush1.bf16.msra.mxu0 %v3379
        %3531 = vmatprep.subr.bf16.mxu0 0
        %3532 = vmatpush1.bf16.msra.mxu0 %v3380
        %3533 = vmatprep.subr.bf16.mxu0 0
        %3534 = vmatpush1.bf16.msra.mxu0 %v3381
        %3535 = vmatprep.subr.bf16.mxu0 0
        %3536 = vmatpush1.bf16.msra.mxu0 0
        %3537 = vmatprep.subr.bf16.mxu0 0
        %3538 = vmatpush1.bf16.msra.mxu0 0
        %3539 = vmatprep.subr.bf16.mxu0 0
        %3540 = vmatpush1.bf16.msra.mxu0 0
        %3541 = vmatprep.subr.bf16.mxu0 0
        %3542 = vmatpush1.bf16.msra.mxu0 0
        %3543 = vmatprep.subr.bf16.mxu0 0
        %3544 = vmatpush1.bf16.msra.mxu0 0
        %3545 = vmatprep.subr.bf16.mxu0 0
        %3546 = vmatpush1.bf16.msra.mxu0 0
        %3547 = vmatprep.subr.bf16.mxu0 0
        %3548 = vmatpush1.bf16.msra.mxu0 0
        %3549 = vmatprep.subr.bf16.mxu0 0
        %3550 = vmatpush1.bf16.msra.mxu0 0
        %3551 = vmatprep.mubr.bf16.mxu0 0
        %3552 = vmatmul.mubr.bf16.gmra.mrb[0].mxu0 %v3015
        %v3553 = vpop.f32.mrb[0].mxu0
        %v3554 = vadd.f32 %v3441, %v3553
        %v3555 = vpop.f32.mrb[0].mxu0
        %v3556 = vpop.f32.mrb[0].mxu0
        %v3557 = vadd.f32 %v3444, %v3556
        %v3558 = vpop.f32.mrb[0].mxu0
        %3559 = vmatprep.mubr.bf16.mxu0 0
        %3560 = vmatmul.mubr.bf16.gmra.mrb[0].mxu0 %v3039
        %v3561 = vpop.f32.mrb[0].mxu0
        %v3562 = vadd.f32 %v3449, %v3561
        %v3563 = vpop.f32.mrb[0].mxu0
        %v3564 = vpop.f32.mrb[0].mxu0
        %v3565 = vadd.f32 %v3452, %v3564
        %v3566 = vpop.f32.mrb[0].mxu0
        %3567 = vmatprep.mubr.bf16.mxu0 0
        %3568 = vmatmul.mubr.bf16.gmra.mrb[0].mxu0 %v3063
        %v3569 = vpop.f32.mrb[0].mxu0
        %v3570 = vadd.f32 %v3457, %v3569
        %v3571 = vpop.f32.mrb[0].mxu0
        %v3572 = vpop.f32.mrb[0].mxu0
        %v3573 = vadd.f32 %v3460, %v3572
        %v3574 = vpop.f32.mrb[0].mxu0
        %3575 = vmatprep.mubr.bf16.mxu0 0
        %3576 = vmatmul.mubr.bf16.gmra.mrb[0].mxu0 %v3087
        %v3577 = vpop.f32.mrb[0].mxu0
        %v3578 = vadd.f32 %v3465, %v3577
        %v3579 = vpop.f32.mrb[0].mxu0
        %v3580 = vpop.f32.mrb[0].mxu0
        %v3581 = vadd.f32 %v3468, %v3580
        %v3582 = vpop.f32.mrb[0].mxu0
        %3583 = vmatprep.mubr.bf16.mxu0 0
        %3584 = vmatmul.mubr.bf16.gmra.mrb[0].mxu0 %v3111
        %v3585 = vpop.f32.mrb[0].mxu0
        %v3586 = vadd.f32 %v3473, %v3585
        %v3587 = vpop.f32.mrb[0].mxu0
        %v3588 = vpop.f32.mrb[0].mxu0
        %v3589 = vadd.f32 %v3476, %v3588
        %v3590 = vpop.f32.mrb[0].mxu0
        %3591 = vmatprep.mubr.bf16.mxu0 0
        %3592 = vmatmul.mubr.bf16.gmra.mrb[0].mxu0 %v3135
        %v3593 = vpop.f32.mrb[0].mxu0
        %v3594 = vadd.f32 %v3481, %v3593
        %v3595 = vpop.f32.mrb[0].mxu0
        %v3596 = vpop.f32.mrb[0].mxu0
        %v3597 = vadd.f32 %v3484, %v3596
        %v3598 = vpop.f32.mrb[0].mxu0
        %3599 = vmatprep.mubr.bf16.mxu0 0
        %3600 = vmatmul.mubr.bf16.gmra.mrb[0].mxu0 %v3159
        %v3601 = vpop.f32.mrb[0].mxu0
        %v3602 = vadd.f32 %v3489, %v3601
        %v3603 = vpop.f32.mrb[0].mxu0
        %v3604 = vpop.f32.mrb[0].mxu0
        %v3605 = vadd.f32 %v3492, %v3604
        %v3606 = vpop.f32.mrb[0].mxu0
        %3607 = vmatprep.mubr.bf16.mxu0 0
        %3608 = vmatmul.mubr.bf16.gmra.mrb[0].mxu0 %v3183
        %v3609 = vpop.f32.mrb[0].mxu0
        %v3610 = vadd.f32 %v3497, %v3609
        %v3611 = vpop.f32.mrb[0].mxu0
        %v3612 = vpop.f32.mrb[0].mxu0
        %v3613 = vadd.f32 %v3500, %v3612
        %v3614 = vpop.f32.mrb[0].mxu0
        %3615 = vmatprep.mubr.bf16.mxu0 0
        %3616 = vmatmul.mubr.bf16.gmra.mrb[0].mxu0 %v3207
        %v3617 = vpop.f32.mrb[0].mxu0
        %v3618 = vadd.f32 %v3505, %v3617
        %v3619 = vpop.f32.mrb[0].mxu0
        %v3620 = vpop.f32.mrb[0].mxu0
        %v3621 = vadd.f32 %v3508, %v3620
        %v3622 = vpop.f32.mrb[0].mxu0
        %3623 = vmatprep.mubr.bf16.mxu0 0
        %3624 = vmatmul.mubr.bf16.gmra.mrb[0].mxu0 %v3231
        %v3625 = vpop.f32.mrb[0].mxu0
        %v3626 = vadd.f32 %v3513, %v3625
        %v3627 = vpop.f32.mrb[0].mxu0
        %v3628 = vpop.f32.mrb[0].mxu0
        %v3629 = vadd.f32 %v3516, %v3628
        %v3630 = vpop.f32.mrb[0].mxu0
        %3631 = vdwg.mxu0
        %v3632 = vmax.f32 %v3554, 0.0
        %v3633 = vmax.f32 %v3557, 0.0
        %v3634 = vmax.f32 %v3562, 0.0
        %v3635 = vmax.f32 %v3565, 0.0
        %v3636 = vmax.f32 %v3570, 0.0
        %v3637 = vmax.f32 %v3573, 0.0
        %v3638 = vmax.f32 %v3578, 0.0
        %v3639 = vmax.f32 %v3581, 0.0
        %v3640 = vmax.f32 %v3586, 0.0
        %v3641 = vmax.f32 %v3589, 0.0
        %v3642 = vmax.f32 %v3594, 0.0
        %v3643 = vmax.f32 %v3597, 0.0
        %v3644 = vmax.f32 %v3602, 0.0
        %v3645 = vmax.f32 %v3605, 0.0
        %v3646 = vmax.f32 %v3610, 0.0
        %v3647 = vmax.f32 %v3613, 0.0
        %v3648 = vmax.f32 %v3618, 0.0
        %v3649 = vmax.f32 %v3621, 0.0
        %v3650 = vmax.f32 %v3626, 0.0
        %v3651 = vmax.f32 %v3629, 0.0
        %v3652 = vld [vmem:[#allocation13] sm:$0xf]
        %v3653 = vld [vmem:[#allocation13 + $0x4] sm:$0xf]
        %v3654 = vld [vmem:[#allocation13 + $0x8] sm:$0xf]
        %v3655 = vld [vmem:[#allocation13 + $0xc] sm:$0xf]
        %v3656 = vld [vmem:[#allocation13 + $0x10] sm:$0xf]
        %v3657 = vld [vmem:[#allocation13 + $0x14] sm:$0xf]
        %v3658 = vld [vmem:[#allocation13 + $0x18] sm:$0xf]
        %v3659 = vld [vmem:[#allocation13 + $0x1c] sm:$0xf]
        %v3660 = vld [vmem:[#allocation13 + $0x20] sm:$0xf]
        %v3661 = vld [vmem:[#allocation13 + $0x24] sm:$0xf]
        %v3662 = vld [vmem:[#allocation13 + $0x28] sm:$0xf]
        %v3663 = vld [vmem:[#allocation13 + $0x2c] sm:$0xf]
        %v3664 = vld [vmem:[#allocation13 + $0x30] sm:$0xf]
        %v3665 = vld [vmem:[#allocation13 + $0x34] sm:$0xf]
        %v3666 = vld [vmem:[#allocation13 + $0x38] sm:$0xf]
        %v3667 = vld [vmem:[#allocation13 + $0x3c] sm:$0xf]
        %v3668 = vpack.c.bf16 %v3633, %v3632
        %v3669 = vpack.c.bf16 %v3635, %v3634
        %v3670 = vpack.c.bf16 %v3637, %v3636
        %v3671 = vpack.c.bf16 %v3639, %v3638
        %v3672 = vpack.c.bf16 %v3641, %v3640
        %v3673 = vpack.c.bf16 %v3643, %v3642
        %v3674 = vpack.c.bf16 %v3645, %v3644
        %v3675 = vpack.c.bf16 %v3647, %v3646
        %v3676 = vpack.c.bf16 %v3649, %v3648
        %v3677 = vpack.c.bf16 %v3651, %v3650
        %v3678 = vld [vmem:[#allocation14] sm:$0x1]
        %v3680 = vlaneseq
        %v3681 = vshrl.u32 %v3680, 7
        %v3682 = vsub.s32 0, %v3681
        %v3683 = vrot.slane %v3678, %v3682
        %v3701 = vunpack.c.l.b16 %v3652
        %v3702 = vunpack.c.l.b16 %v3653
        %v3703 = vunpack.c.l.b16 %v3654
        %v3704 = vunpack.c.l.b16 %v3655
        %v3705 = vunpack.c.l.b16 %v3656
        %v3706 = vunpack.c.l.b16 %v3657
        %v3707 = vunpack.c.l.b16 %v3658
        %v3708 = vunpack.c.l.b16 %v3659
        %v3709 = vunpack.c.l.b16 %v3660
        %v3710 = vunpack.c.l.b16 %v3661
        %v3711 = vunpack.c.l.b16 %v3662
        %v3712 = vunpack.c.l.b16 %v3663
        %v3713 = vunpack.c.l.b16 %v3664
        %v3714 = vunpack.c.l.b16 %v3665
        %v3715 = vunpack.c.l.b16 %v3666
        %v3716 = vunpack.c.l.b16 %v3667
        %v3717 = vpack.c.b16 %v3702, %v3701
        %v3718 = vpack.c.b16 %v3704, %v3703
        %v3719 = vpack.c.b16 %v3706, %v3705
        %v3720 = vpack.c.b16 %v3708, %v3707
        %v3721 = vpack.c.b16 %v3710, %v3709
        %v3722 = vpack.c.b16 %v3712, %v3711
        %v3723 = vpack.c.b16 %v3714, %v3713
        %v3724 = vpack.c.b16 %v3716, %v3715
        %3733 = vmatprep.subr.bf16.mxu0 0
        %3734 = vmatpush1.bf16.msra.mxu0 %v3717
        %3735 = vmatprep.subr.bf16.mxu0 0
        %3736 = vmatpush1.bf16.msra.mxu0 %v3718
        %3737 = vmatprep.subr.bf16.mxu0 0
        %3738 = vmatpush1.bf16.msra.mxu0 %v3719
        %3739 = vmatprep.subr.bf16.mxu0 0
        %3740 = vmatpush1.bf16.msra.mxu0 %v3720
        %3741 = vmatprep.subr.bf16.mxu0 0
        %3742 = vmatpush1.bf16.msra.mxu0 %v3721
        %3743 = vmatprep.subr.bf16.mxu0 0
        %3744 = vmatpush1.bf16.msra.mxu0 %v3722
        %3745 = vmatprep.subr.bf16.mxu0 0
        %3746 = vmatpush1.bf16.msra.mxu0 %v3723
        %3747 = vmatprep.subr.bf16.mxu0 0
        %3748 = vmatpush1.bf16.msra.mxu0 %v3724
        %3749 = vmatprep.subr.bf16.mxu0 0
        %3750 = vmatpush1.bf16.msra.mxu0 0
        %3751 = vmatprep.subr.bf16.mxu0 0
        %3752 = vmatpush1.bf16.msra.mxu0 0
        %3753 = vmatprep.subr.bf16.mxu0 0
        %3754 = vmatpush1.bf16.msra.mxu0 0
        %3755 = vmatprep.subr.bf16.mxu0 0
        %3756 = vmatpush1.bf16.msra.mxu0 0
        %3757 = vmatprep.subr.bf16.mxu0 0
        %3758 = vmatpush1.bf16.msra.mxu0 0
        %3759 = vmatprep.subr.bf16.mxu0 0
        %3760 = vmatpush1.bf16.msra.mxu0 0
        %3761 = vmatprep.subr.bf16.mxu0 0
        %3762 = vmatpush1.bf16.msra.mxu0 0
        %3763 = vmatprep.subr.bf16.mxu0 0
        %3764 = vmatpush1.bf16.msra.mxu0 0
        %3765 = vmatprep.mubr.bf16.mxu0 0
        %3766 = vmatmul.mubr.bf16.gmra.mrb[0].mxu0 %v3668
        %v3767 = vpop.f32.mrb[0].mxu0
        %v3768 = vadd.f32 %v3683, %v3767
        %v3769 = vpop.f32.mrb[0].mxu0
        %v3770 = vpop.f32.mrb[0].mxu0
        %v3771 = vadd.f32 %v3683, %v3770
        %v3772 = vpop.f32.mrb[0].mxu0
        %3773 = vmatprep.mubr.bf16.mxu0 0
        %3774 = vmatmul.mubr.bf16.gmra.mrb[0].mxu0 %v3669
        %v3775 = vpop.f32.mrb[0].mxu0
        %v3776 = vadd.f32 %v3683, %v3775
        %v3777 = vpop.f32.mrb[0].mxu0
        %v3778 = vpop.f32.mrb[0].mxu0
        %v3779 = vadd.f32 %v3683, %v3778
        %v3780 = vpop.f32.mrb[0].mxu0
        %3781 = vmatprep.mubr.bf16.mxu0 0
        %3782 = vmatmul.mubr.bf16.gmra.mrb[0].mxu0 %v3670
        %v3783 = vpop.f32.mrb[0].mxu0
        %v3784 = vadd.f32 %v3683, %v3783
        %v3785 = vpop.f32.mrb[0].mxu0
        %v3786 = vpop.f32.mrb[0].mxu0
        %v3787 = vadd.f32 %v3683, %v3786
        %v3788 = vpop.f32.mrb[0].mxu0
        %3789 = vmatprep.mubr.bf16.mxu0 0
        %3790 = vmatmul.mubr.bf16.gmra.mrb[0].mxu0 %v3671
        %v3791 = vpop.f32.mrb[0].mxu0
        %v3792 = vadd.f32 %v3683, %v3791
        %v3793 = vpop.f32.mrb[0].mxu0
        %v3794 = vpop.f32.mrb[0].mxu0
        %v3795 = vadd.f32 %v3683, %v3794
        %v3796 = vpop.f32.mrb[0].mxu0
        %3797 = vmatprep.mubr.bf16.mxu0 0
        %3798 = vmatmul.mubr.bf16.gmra.mrb[0].mxu0 %v3672
        %v3799 = vpop.f32.mrb[0].mxu0
        %v3800 = vadd.f32 %v3683, %v3799
        %v3801 = vpop.f32.mrb[0].mxu0
        %v3802 = vpop.f32.mrb[0].mxu0
        %v3803 = vadd.f32 %v3683, %v3802
        %v3804 = vpop.f32.mrb[0].mxu0
        %3805 = vmatprep.mubr.bf16.mxu0 0
        %3806 = vmatmul.mubr.bf16.gmra.mrb[0].mxu0 %v3673
        %v3807 = vpop.f32.mrb[0].mxu0
        %v3808 = vadd.f32 %v3683, %v3807
        %v3809 = vpop.f32.mrb[0].mxu0
        %v3810 = vpop.f32.mrb[0].mxu0
        %v3811 = vadd.f32 %v3683, %v3810
        %v3812 = vpop.f32.mrb[0].mxu0
        %3813 = vmatprep.mubr.bf16.mxu0 0
        %3814 = vmatmul.mubr.bf16.gmra.mrb[0].mxu0 %v3674
        %v3815 = vpop.f32.mrb[0].mxu0
        %v3816 = vadd.f32 %v3683, %v3815
        %v3817 = vpop.f32.mrb[0].mxu0
        %v3818 = vpop.f32.mrb[0].mxu0
        %v3819 = vadd.f32 %v3683, %v3818
        %v3820 = vpop.f32.mrb[0].mxu0
        %3821 = vmatprep.mubr.bf16.mxu0 0
        %3822 = vmatmul.mubr.bf16.gmra.mrb[0].mxu0 %v3675
        %v3823 = vpop.f32.mrb[0].mxu0
        %v3824 = vadd.f32 %v3683, %v3823
        %v3825 = vpop.f32.mrb[0].mxu0
        %v3826 = vpop.f32.mrb[0].mxu0
        %v3827 = vadd.f32 %v3683, %v3826
        %v3828 = vpop.f32.mrb[0].mxu0
        %3829 = vmatprep.mubr.bf16.mxu0 0
        %3830 = vmatmul.mubr.bf16.gmra.mrb[0].mxu0 %v3676
        %v3831 = vpop.f32.mrb[0].mxu0
        %v3832 = vadd.f32 %v3683, %v3831
        %v3833 = vpop.f32.mrb[0].mxu0
        %v3834 = vpop.f32.mrb[0].mxu0
        %v3835 = vadd.f32 %v3683, %v3834
        %v3836 = vpop.f32.mrb[0].mxu0
        %3837 = vmatprep.mubr.bf16.mxu0 0
        %3838 = vmatmul.mubr.bf16.gmra.mrb[0].mxu0 %v3677
        %v3839 = vpop.f32.mrb[0].mxu0
        %v3840 = vadd.f32 %v3683, %v3839
        %v3841 = vpop.f32.mrb[0].mxu0
        %v3842 = vpop.f32.mrb[0].mxu0
        %v3843 = vadd.f32 %v3683, %v3842
        %v3844 = vpop.f32.mrb[0].mxu0
        %3845 = vdwg.mxu0
        %v3846 = vmax.f32 %v3768, 0.0
        %v3847 = vmax.f32 %v3771, 0.0
        %v3848 = vmax.f32 %v3776, 0.0
        %v3849 = vmax.f32 %v3779, 0.0
        %v3850 = vmax.f32 %v3784, 0.0
        %v3851 = vmax.f32 %v3787, 0.0
        %v3852 = vmax.f32 %v3792, 0.0
        %v3853 = vmax.f32 %v3795, 0.0
        %v3854 = vmax.f32 %v3800, 0.0
        %v3855 = vmax.f32 %v3803, 0.0
        %v3856 = vmax.f32 %v3808, 0.0
        %v3857 = vmax.f32 %v3811, 0.0
        %v3858 = vmax.f32 %v3816, 0.0
        %v3859 = vmax.f32 %v3819, 0.0
        %v3860 = vmax.f32 %v3824, 0.0
        %v3861 = vmax.f32 %v3827, 0.0
        %v3862 = vmax.f32 %v3832, 0.0
        %v3863 = vmax.f32 %v3835, 0.0
        %v3864 = vmax.f32 %v3840, 0.0
        %v3865 = vmax.f32 %v3843, 0.0
        %vm3886 = vcmask 1041408
        %v3887 = vrot.slane %v2726, 6
        %v3888 = vrot.slane %v2727, 6
        %v3889 = vsel %vm3886, %v3887, %v3888
        %v3890 = vrot.slane %v2728, 6
        %v3891 = vsel %vm3886, %v3888, %v3890
        %v3892 = vrot.slane %v2729, 6
        %v3893 = vsel %vm3886, %v3890, %v3892
        %v3894 = vrot.slane %v2730, 6
        %v3895 = vsel %vm3886, %v3892, %v3894
        %v3896 = vrot.slane %v2731, 6
        %v3897 = vsel %vm3886, %v3894, %v3896
        %v3898 = vrot.slane %v2732, 6
        %v3899 = vsel %vm3886, %v3896, %v3898
        %v3900 = vrot.slane %v2733, 6
        %v3901 = vsel %vm3886, %v3898, %v3900
        %v3902 = vrot.slane %v2734, 6
        %v3903 = vsel %vm3886, %v3900, %v3902
        %v3904 = vrot.slane %v2735, 6
        %v3905 = vsel %vm3886, %v3902, %v3904
        %v3906 = vrot.slane %v2736, 6
        %v3907 = vsel %vm3886, %v3904, %v3906
        %v3908 = vrot.slane %v2737, 6
        %v3909 = vsel %vm3886, %v3906, %v3908
        %v3910 = vrot.slane %v2738, 6
        %v3911 = vsel %vm3886, %v3908, %v3910
        %v3912 = vrot.slane %v2739, 6
        %v3913 = vsel %vm3886, %v3910, %v3912
        %v3914 = vrot.slane %v2740, 6
        %v3915 = vsel %vm3886, %v3912, %v3914
        %v3916 = vrot.slane %v2741, 6
        %v3917 = vsel %vm3886, %v3914, %v3916
        %v3918 = vrot.slane %v2742, 6
        %v3919 = vsel %vm3886, %v3916, %v3918
        %v3920 = vrot.slane %v2743, 6
        %v3921 = vsel %vm3886, %v3918, %v3920
        %v3922 = vrot.slane %v2744, 6
        %v3923 = vsel %vm3886, %v3920, %v3922
        %v3924 = vrot.slane %v2745, 6
        %v3925 = vsel %vm3886, %v3922, %v3924
        %v3947 = vadd.f32 %v1296, %v3887
        %v3948 = vadd.f32 %v1299, %v3889
        %v3949 = vadd.f32 %v1302, %v3891
        %v3950 = vadd.f32 %v1305, %v3893
        %v3951 = vadd.f32 %v1308, %v3895
        %v3952 = vadd.f32 %v1311, %v3897
        %v3953 = vadd.f32 %v1314, %v3899
        %v3954 = vadd.f32 %v1317, %v3901
        %v3955 = vadd.f32 %v1320, %v3903
        %v3956 = vadd.f32 %v1323, %v3905
        %v3957 = vadd.f32 %v1326, %v3907
        %v3958 = vadd.f32 %v1329, %v3909
        %v3959 = vadd.f32 %v1332, %v3911
        %v3960 = vadd.f32 %v1335, %v3913
        %v3961 = vadd.f32 %v1338, %v3915
        %v3962 = vadd.f32 %v1341, %v3917
        %v3963 = vadd.f32 %v1344, %v3919
        %v3964 = vadd.f32 %v1347, %v3921
        %v3965 = vadd.f32 %v1350, %v3923
        %v3966 = vadd.f32 %v1353, %v3925
        %v3967 = vadd.f32 %v1356, %v3924
        %v3988 = vrot.slane %v3846, 6
        %v3989 = vrot.slane %v3847, 6
        %v3990 = vsel %vm3886, %v3988, %v3989
        %v3991 = vrot.slane %v3848, 6
        %v3992 = vsel %vm3886, %v3989, %v3991
        %v3993 = vrot.slane %v3849, 6
        %v3994 = vsel %vm3886, %v3991, %v3993
        %v3995 = vrot.slane %v3850, 6
        %v3996 = vsel %vm3886, %v3993, %v3995
        %v3997 = vrot.slane %v3851, 6
        %v3998 = vsel %vm3886, %v3995, %v3997
        %v3999 = vrot.slane %v3852, 6
        %v4000 = vsel %vm3886, %v3997, %v3999
        %v4001 = vrot.slane %v3853, 6
        %v4002 = vsel %vm3886, %v3999, %v4001
        %v4003 = vrot.slane %v3854, 6
        %v4004 = vsel %vm3886, %v4001, %v4003
        %v4005 = vrot.slane %v3855, 6
        %v4006 = vsel %vm3886, %v4003, %v4005
        %v4007 = vrot.slane %v3856, 6
        %v4008 = vsel %vm3886, %v4005, %v4007
        %v4009 = vrot.slane %v3857, 6
        %v4010 = vsel %vm3886, %v4007, %v4009
        %v4011 = vrot.slane %v3858, 6
        %v4012 = vsel %vm3886, %v4009, %v4011
        %v4013 = vrot.slane %v3859, 6
        %v4014 = vsel %vm3886, %v4011, %v4013
        %v4015 = vrot.slane %v3860, 6
        %v4016 = vsel %vm3886, %v4013, %v4015
        %v4017 = vrot.slane %v3861, 6
        %v4018 = vsel %vm3886, %v4015, %v4017
        %v4019 = vrot.slane %v3862, 6
        %v4020 = vsel %vm3886, %v4017, %v4019
        %v4021 = vrot.slane %v3863, 6
        %v4022 = vsel %vm3886, %v4019, %v4021
        %v4023 = vrot.slane %v3864, 6
        %v4024 = vsel %vm3886, %v4021, %v4023
        %v4025 = vrot.slane %v3865, 6
        %v4026 = vsel %vm3886, %v4023, %v4025
        %v4048 = vadd.f32 %v3947, %v3988
        %v4049 = vadd.f32 %v3948, %v3990
        %v4050 = vadd.f32 %v3949, %v3992
        %v4051 = vadd.f32 %v3950, %v3994
        %v4052 = vadd.f32 %v3951, %v3996
        %v4053 = vadd.f32 %v3952, %v3998
        %v4054 = vadd.f32 %v3953, %v4000
        %v4055 = vadd.f32 %v3954, %v4002
        %v4056 = vadd.f32 %v3955, %v4004
        %v4057 = vadd.f32 %v3956, %v4006
        %v4058 = vadd.f32 %v3957, %v4008
        %v4059 = vadd.f32 %v3958, %v4010
        %v4060 = vadd.f32 %v3959, %v4012
        %v4061 = vadd.f32 %v3960, %v4014
        %v4062 = vadd.f32 %v3961, %v4016
        %v4063 = vadd.f32 %v3962, %v4018
        %v4064 = vadd.f32 %v3963, %v4020
        %v4065 = vadd.f32 %v3964, %v4022
        %v4066 = vadd.f32 %v3965, %v4024
        %v4067 = vadd.f32 %v3966, %v4026
        %v4068 = vadd.f32 %v3967, %v4025
        %v4069 = vld [vmem:[%s4] sm:$0xff]
        %v4070 = vld [vmem:[%s4 + $0x8] sm:$0xff]
        %v4071 = vld [vmem:[%s4 + $0x10] sm:$0xff]
        %v4072 = vld [vmem:[%s4 + $0x18] sm:$0xff]
        %v4073 = vld [vmem:[%s4 + $0x20] sm:$0xff]
        %v4074 = vld [vmem:[%s4 + $0x28] sm:$0xff]
        %v4075 = vld [vmem:[%s4 + $0x30] sm:$0xff]
        %v4076 = vld [vmem:[%s4 + $0x38] sm:$0xff]
        %v4077 = vld [vmem:[%s4 + $0x40] sm:$0xff]
        %v4078 = vld [vmem:[%s4 + $0x48] sm:$0xff]
        %v4079 = vld [vmem:[%s4 + $0x50] sm:$0xff]
        %v4080 = vld [vmem:[%s4 + $0x58] sm:$0xff]
        %v4081 = vld [vmem:[%s4 + $0x60] sm:$0xff]
        %v4082 = vld [vmem:[%s4 + $0x68] sm:$0xff]
        %v4083 = vld [vmem:[%s4 + $0x70] sm:$0xff]
        %v4084 = vld [vmem:[%s4 + $0x78] sm:$0xff]
        %v4085 = vld [vmem:[%s4 + $0x80] sm:$0xff]
        %v4086 = vld [vmem:[%s4 + $0x88] sm:$0xff]
        %v4087 = vld [vmem:[%s4 + $0x90] sm:$0xff]
        %v4088 = vld [vmem:[%s4 + $0x98] sm:$0xff]
        %4090 = vset.pattern.permute.xlu0 0
        %4091 = vperm.xlu0 %4090, %v4069
        %v4092 = vpop.permute.xlu0 %4091
        %4094 = vset.pattern.permute.xlu0 0
        %4095 = vperm.xlu0 %4094, %v4070
        %v4096 = vpop.permute.xlu0 %4095
        %4098 = vset.pattern.permute.xlu0 0
        %4099 = vperm.xlu0 %4098, %v4071
        %v4100 = vpop.permute.xlu0 %4099
        %4102 = vset.pattern.permute.xlu0 0
        %4103 = vperm.xlu0 %4102, %v4072
        %v4104 = vpop.permute.xlu0 %4103
        %4106 = vset.pattern.permute.xlu0 0
        %4107 = vperm.xlu0 %4106, %v4073
        %v4108 = vpop.permute.xlu0 %4107
        %4110 = vset.pattern.permute.xlu0 0
        %4111 = vperm.xlu0 %4110, %v4074
        %v4112 = vpop.permute.xlu0 %4111
        %4114 = vset.pattern.permute.xlu0 0
        %4115 = vperm.xlu0 %4114, %v4075
        %v4116 = vpop.permute.xlu0 %4115
        %4118 = vset.pattern.permute.xlu0 0
        %4119 = vperm.xlu0 %4118, %v4076
        %v4120 = vpop.permute.xlu0 %4119
        %4122 = vset.pattern.permute.xlu0 0
        %4123 = vperm.xlu0 %4122, %v4077
        %v4124 = vpop.permute.xlu0 %4123
        %4126 = vset.pattern.permute.xlu0 0
        %4127 = vperm.xlu0 %4126, %v4078
        %v4128 = vpop.permute.xlu0 %4127
        %4130 = vset.pattern.permute.xlu0 0
        %4131 = vperm.xlu0 %4130, %v4079
        %v4132 = vpop.permute.xlu0 %4131
        %4134 = vset.pattern.permute.xlu0 0
        %4135 = vperm.xlu0 %4134, %v4080
        %v4136 = vpop.permute.xlu0 %4135
        %4138 = vset.pattern.permute.xlu0 0
        %4139 = vperm.xlu0 %4138, %v4081
        %v4140 = vpop.permute.xlu0 %4139
        %4142 = vset.pattern.permute.xlu0 0
        %4143 = vperm.xlu0 %4142, %v4082
        %v4144 = vpop.permute.xlu0 %4143
        %4146 = vset.pattern.permute.xlu0 0
        %4147 = vperm.xlu0 %4146, %v4083
        %v4148 = vpop.permute.xlu0 %4147
        %4150 = vset.pattern.permute.xlu0 0
        %4151 = vperm.xlu0 %4150, %v4084
        %v4152 = vpop.permute.xlu0 %4151
        %4154 = vset.pattern.permute.xlu0 0
        %4155 = vperm.xlu0 %4154, %v4085
        %v4156 = vpop.permute.xlu0 %4155
        %4158 = vset.pattern.permute.xlu0 0
        %4159 = vperm.xlu0 %4158, %v4086
        %v4160 = vpop.permute.xlu0 %4159
        %4162 = vset.pattern.permute.xlu0 0
        %4163 = vperm.xlu0 %4162, %v4087
        %v4164 = vpop.permute.xlu0 %4163
        %4166 = vset.pattern.permute.xlu0 0
        %4167 = vperm.xlu0 %4166, %v4088
        %v4168 = vpop.permute.xlu0 %4167
        %v4169 = vrot.slane %v4092, 6
        %v4170 = vrot.slane %v4096, 6
        %v4171 = vsel %vm3886, %v4169, %v4170
        %v4172 = vrot.slane %v4100, 6
        %v4173 = vsel %vm3886, %v4170, %v4172
        %v4174 = vrot.slane %v4104, 6
        %v4175 = vsel %vm3886, %v4172, %v4174
        %v4176 = vrot.slane %v4108, 6
        %v4177 = vsel %vm3886, %v4174, %v4176
        %v4178 = vrot.slane %v4112, 6
        %v4179 = vsel %vm3886, %v4176, %v4178
        %v4180 = vrot.slane %v4116, 6
        %v4181 = vsel %vm3886, %v4178, %v4180
        %v4182 = vrot.slane %v4120, 6
        %v4183 = vsel %vm3886, %v4180, %v4182
        %v4184 = vrot.slane %v4124, 6
        %v4185 = vsel %vm3886, %v4182, %v4184
        %v4186 = vrot.slane %v4128, 6
        %v4187 = vsel %vm3886, %v4184, %v4186
        %v4188 = vrot.slane %v4132, 6
        %v4189 = vsel %vm3886, %v4186, %v4188
        %v4190 = vrot.slane %v4136, 6
        %v4191 = vsel %vm3886, %v4188, %v4190
        %v4192 = vrot.slane %v4140, 6
        %v4193 = vsel %vm3886, %v4190, %v4192
        %v4194 = vrot.slane %v4144, 6
        %v4195 = vsel %vm3886, %v4192, %v4194
        %v4196 = vrot.slane %v4148, 6
        %v4197 = vsel %vm3886, %v4194, %v4196
        %v4198 = vrot.slane %v4152, 6
        %v4199 = vsel %vm3886, %v4196, %v4198
        %v4200 = vrot.slane %v4156, 6
        %v4201 = vsel %vm3886, %v4198, %v4200
        %v4202 = vrot.slane %v4160, 6
        %v4203 = vsel %vm3886, %v4200, %v4202
        %v4204 = vrot.slane %v4164, 6
        %v4205 = vsel %vm3886, %v4202, %v4204
        %v4206 = vrot.slane %v4168, 6
        %v4207 = vsel %vm3886, %v4204, %v4206
        %v4229 = vmul.f32 %v4048, %v4169
        %v4230 = vmul.f32 %v4049, %v4171
        %v4231 = vmul.f32 %v4050, %v4173
        %v4232 = vmul.f32 %v4051, %v4175
        %v4233 = vmul.f32 %v4052, %v4177
        %v4234 = vmul.f32 %v4053, %v4179
        %v4235 = vmul.f32 %v4054, %v4181
        %v4236 = vmul.f32 %v4055, %v4183
        %v4237 = vmul.f32 %v4056, %v4185
        %v4238 = vmul.f32 %v4057, %v4187
        %v4239 = vmul.f32 %v4058, %v4189
        %v4240 = vmul.f32 %v4059, %v4191
        %v4241 = vmul.f32 %v4060, %v4193
        %v4242 = vmul.f32 %v4061, %v4195
        %v4243 = vmul.f32 %v4062, %v4197
        %v4244 = vmul.f32 %v4063, %v4199
        %v4245 = vmul.f32 %v4064, %v4201
        %v4246 = vmul.f32 %v4065, %v4203
        %v4247 = vmul.f32 %v4066, %v4205
        %v4248 = vmul.f32 %v4067, %v4207
        %v4249 = vmul.f32 %v4068, %v4206
        %v4271 = vrot.slane %v4229, 1
        %v4272 = vrot.slane %v4230, 1
        %v4273 = vsel %vm1548, %v4271, %v4272
        %v4274 = vrot.slane %v4231, 1
        %v4275 = vsel %vm1548, %v4272, %v4274
        %v4276 = vrot.slane %v4232, 1
        %v4277 = vsel %vm1548, %v4274, %v4276
        %v4278 = vrot.slane %v4233, 1
        %v4279 = vsel %vm1548, %v4276, %v4278
        %v4280 = vrot.slane %v4234, 1
        %v4281 = vsel %vm1548, %v4278, %v4280
        %v4282 = vrot.slane %v4235, 1
        %v4283 = vsel %vm1548, %v4280, %v4282
        %v4284 = vrot.slane %v4236, 1
        %v4285 = vsel %vm1548, %v4282, %v4284
        %v4286 = vrot.slane %v4237, 1
        %v4287 = vsel %vm1548, %v4284, %v4286
        %v4288 = vrot.slane %v4238, 1
        %v4289 = vsel %vm1548, %v4286, %v4288
        %v4290 = vrot.slane %v4239, 1
        %v4291 = vsel %vm1548, %v4288, %v4290
        %v4292 = vrot.slane %v4240, 1
        %v4293 = vsel %vm1548, %v4290, %v4292
        %v4294 = vrot.slane %v4241, 1
        %v4295 = vsel %vm1548, %v4292, %v4294
        %v4296 = vrot.slane %v4242, 1
        %v4297 = vsel %vm1548, %v4294, %v4296
        %v4298 = vrot.slane %v4243, 1
        %v4299 = vsel %vm1548, %v4296, %v4298
        %v4300 = vrot.slane %v4244, 1
        %v4301 = vsel %vm1548, %v4298, %v4300
        %v4302 = vrot.slane %v4245, 1
        %v4303 = vsel %vm1548, %v4300, %v4302
        %v4304 = vrot.slane %v4246, 1
        %v4305 = vsel %vm1548, %v4302, %v4304
        %v4306 = vrot.slane %v4247, 1
        %v4307 = vsel %vm1548, %v4304, %v4306
        %v4308 = vrot.slane %v4248, 1
        %v4309 = vsel %vm1548, %v4306, %v4308
        %v4310 = vrot.slane %v4249, 1
        %v4311 = vsel %vm1548, %v4308, %v4310
        %vm4332 = vcmask 1040384
        %v4333 = vsel %vm4332, 0.0, %v4273
        %v4334 = vrot.slane %v4229, 2
        %v4335 = vrot.slane %v4230, 2
        %v4336 = vsel %vm1610, %v4334, %v4335
        %v4337 = vrot.slane %v4231, 2
        %v4338 = vsel %vm1610, %v4335, %v4337
        %v4339 = vrot.slane %v4232, 2
        %v4340 = vsel %vm1610, %v4337, %v4339
        %v4341 = vrot.slane %v4233, 2
        %v4342 = vsel %vm1610, %v4339, %v4341
        %v4343 = vrot.slane %v4234, 2
        %v4344 = vsel %vm1610, %v4341, %v4343
        %v4345 = vrot.slane %v4235, 2
        %v4346 = vsel %vm1610, %v4343, %v4345
        %v4347 = vrot.slane %v4236, 2
        %v4348 = vsel %vm1610, %v4345, %v4347
        %v4349 = vrot.slane %v4237, 2
        %v4350 = vsel %vm1610, %v4347, %v4349
        %v4351 = vrot.slane %v4238, 2
        %v4352 = vsel %vm1610, %v4349, %v4351
        %v4353 = vrot.slane %v4239, 2
        %v4354 = vsel %vm1610, %v4351, %v4353
        %v4355 = vrot.slane %v4240, 2
        %v4356 = vsel %vm1610, %v4353, %v4355
        %v4357 = vrot.slane %v4241, 2
        %v4358 = vsel %vm1610, %v4355, %v4357
        %v4359 = vrot.slane %v4242, 2
        %v4360 = vsel %vm1610, %v4357, %v4359
        %v4361 = vrot.slane %v4243, 2
        %v4362 = vsel %vm1610, %v4359, %v4361
        %v4363 = vrot.slane %v4244, 2
        %v4364 = vsel %vm1610, %v4361, %v4363
        %v4365 = vrot.slane %v4245, 2
        %v4366 = vsel %vm1610, %v4363, %v4365
        %v4367 = vrot.slane %v4246, 2
        %v4368 = vsel %vm1610, %v4365, %v4367
        %v4369 = vrot.slane %v4247, 2
        %v4370 = vsel %vm1610, %v4367, %v4369
        %v4371 = vrot.slane %v4248, 2
        %v4372 = vsel %vm1610, %v4369, %v4371
        %v4373 = vrot.slane %v4249, 2
        %v4374 = vsel %vm1610, %v4371, %v4373
        %v4395 = vld [vmem:[#allocation16] sm:$0xff]
        %v4396 = vld [vmem:[#allocation16 + $0x8] sm:$0xff]
        %v4397 = vld [vmem:[#allocation16 + $0x10] sm:$0xff]
        %v4398 = vld [vmem:[#allocation16 + $0x18] sm:$0xff]
        %v4399 = vld [vmem:[#allocation16 + $0x20] sm:$0xff]
        %v4400 = vld [vmem:[#allocation16 + $0x28] sm:$0xff]
        %v4401 = vld [vmem:[#allocation16 + $0x30] sm:$0xff]
        %v4402 = vld [vmem:[#allocation16 + $0x38] sm:$0xff]
        %v4403 = vld [vmem:[#allocation16 + $0x40] sm:$0xff]
        %v4404 = vld [vmem:[#allocation16 + $0x48] sm:$0xff]
        %v4405 = vld [vmem:[#allocation16 + $0x50] sm:$0xff]
        %v4406 = vld [vmem:[#allocation16 + $0x58] sm:$0xff]
        %v4407 = vld [vmem:[#allocation16 + $0x60] sm:$0xff]
        %v4408 = vld [vmem:[#allocation16 + $0x68] sm:$0xff]
        %v4409 = vld [vmem:[#allocation16 + $0x70] sm:$0xff]
        %v4410 = vld [vmem:[#allocation16 + $0x78] sm:$0xff]
        %v4411 = vld [vmem:[#allocation16 + $0x80] sm:$0xff]
        %v4412 = vld [vmem:[#allocation16 + $0x88] sm:$0xff]
        %v4413 = vld [vmem:[#allocation16 + $0x90] sm:$0xff]
        %v4414 = vld [vmem:[#allocation16 + $0x98] sm:$0xff]
        %v4415 = vld [vmem:[#allocation16 + $0xa0] sm:$0xff]
        %v4416 = vld [vmem:[#allocation16 + $0xa8] sm:$0xff]
        %v4417 = vld [vmem:[#allocation16 + $0xb0] sm:$0xff]
        %v4418 = vld [vmem:[#allocation16 + $0xb8] sm:$0xff]
        %v4419 = vld [vmem:[#allocation16 + $0xc0] sm:$0xff]
        %v4420 = vld [vmem:[#allocation16 + $0xc8] sm:$0xff]
        %v4421 = vld [vmem:[#allocation16 + $0xd0] sm:$0xff]
        %v4422 = vld [vmem:[#allocation16 + $0xd8] sm:$0xff]
        %v4423 = vld [vmem:[#allocation16 + $0xe0] sm:$0xff]
        %v4424 = vld [vmem:[#allocation16 + $0xe8] sm:$0xff]
        %v4425 = vld [vmem:[#allocation16 + $0xf0] sm:$0xff]
        %v4426 = vld [vmem:[#allocation16 + $0xf8] sm:$0xff]
        %v4427 = vpack.c.bf16 %v4275, %v4333
        %v4428 = vpack.c.bf16 %v4338, %v4336
        %v4429 = vpack.c.bf16 %v4279, %v4277
        %v4430 = vpack.c.bf16 %v4342, %v4340
        %v4431 = vpack.c.bf16 %v4283, %v4281
        %v4432 = vpack.c.bf16 %v4346, %v4344
        %v4433 = vpack.c.bf16 %v4287, %v4285
        %v4434 = vpack.c.bf16 %v4350, %v4348
        %v4435 = vpack.c.bf16 %v4291, %v4289
        %v4436 = vpack.c.bf16 %v4354, %v4352
        %v4437 = vpack.c.bf16 %v4295, %v4293
        %v4438 = vpack.c.bf16 %v4358, %v4356
        %v4439 = vpack.c.bf16 %v4299, %v4297
        %v4440 = vpack.c.bf16 %v4362, %v4360
        %v4441 = vpack.c.bf16 %v4303, %v4301
        %v4442 = vpack.c.bf16 %v4366, %v4364
        %v4443 = vpack.c.bf16 %v4307, %v4305
        %v4444 = vpack.c.bf16 %v4370, %v4368
        %v4445 = vpack.c.bf16 %v4311, %v4309
        %v4446 = vpack.c.bf16 %v4374, %v4372
        %v4447 = vld [vmem:[#allocation17] sm:$0x3]
        %v4449 = vlaneseq
        %v4450 = vshrl.u32 %v4449, 7
        %v4451 = vsub.s32 0, %v4450
        %v4452 = vrot.slane %v4447, %v4451
        %v4453 = vlaneseq
        %v4454 = vshrl.u32 %v4453, 7
        %v4455 = vsub.s32 1, %v4454
        %v4456 = vrot.slane %v4447, %v4455
        %v4491 = vunpack.c.l.b16 %v4395
        %v4492 = vunpack.c.h.b16 %v4395
        %v4493 = vunpack.c.l.b16 %v4396
        %v4494 = vunpack.c.h.b16 %v4396
        %v4495 = vunpack.c.l.b16 %v4397
        %v4496 = vunpack.c.h.b16 %v4397
        %v4497 = vunpack.c.l.b16 %v4398
        %v4498 = vunpack.c.h.b16 %v4398
        %v4499 = vunpack.c.l.b16 %v4399
        %v4500 = vunpack.c.h.b16 %v4399
        %v4501 = vunpack.c.l.b16 %v4400
        %v4502 = vunpack.c.h.b16 %v4400
        %v4503 = vunpack.c.l.b16 %v4401
        %v4504 = vunpack.c.h.b16 %v4401
        %v4505 = vunpack.c.l.b16 %v4402
        %v4506 = vunpack.c.h.b16 %v4402
        %v4507 = vunpack.c.l.b16 %v4403
        %v4508 = vunpack.c.h.b16 %v4403
        %v4509 = vunpack.c.l.b16 %v4404
        %v4510 = vunpack.c.h.b16 %v4404
        %v4511 = vunpack.c.l.b16 %v4405
        %v4512 = vunpack.c.h.b16 %v4405
        %v4513 = vunpack.c.l.b16 %v4406
        %v4514 = vunpack.c.h.b16 %v4406
        %v4515 = vunpack.c.l.b16 %v4407
        %v4516 = vunpack.c.h.b16 %v4407
        %v4517 = vunpack.c.l.b16 %v4408
        %v4518 = vunpack.c.h.b16 %v4408
        %v4519 = vunpack.c.l.b16 %v4409
        %v4520 = vunpack.c.h.b16 %v4409
        %v4521 = vunpack.c.l.b16 %v4410
        %v4522 = vunpack.c.h.b16 %v4410
        %v4523 = vunpack.c.l.b16 %v4411
        %v4524 = vunpack.c.h.b16 %v4411
        %v4525 = vunpack.c.l.b16 %v4412
        %v4526 = vunpack.c.h.b16 %v4412
        %v4527 = vunpack.c.l.b16 %v4413
        %v4528 = vunpack.c.h.b16 %v4413
        %v4529 = vunpack.c.l.b16 %v4414
        %v4530 = vunpack.c.h.b16 %v4414
        %v4531 = vunpack.c.l.b16 %v4415
        %v4532 = vunpack.c.h.b16 %v4415
        %v4533 = vunpack.c.l.b16 %v4416
        %v4534 = vunpack.c.h.b16 %v4416
        %v4535 = vunpack.c.l.b16 %v4417
        %v4536 = vunpack.c.h.b16 %v4417
        %v4537 = vunpack.c.l.b16 %v4418
        %v4538 = vunpack.c.h.b16 %v4418
        %v4539 = vunpack.c.l.b16 %v4419
        %v4540 = vunpack.c.h.b16 %v4419
        %v4541 = vunpack.c.l.b16 %v4420
        %v4542 = vunpack.c.h.b16 %v4420
        %v4543 = vunpack.c.l.b16 %v4421
        %v4544 = vunpack.c.h.b16 %v4421
        %v4545 = vunpack.c.l.b16 %v4422
        %v4546 = vunpack.c.h.b16 %v4422
        %v4547 = vunpack.c.l.b16 %v4423
        %v4548 = vunpack.c.h.b16 %v4423
        %v4549 = vunpack.c.l.b16 %v4424
        %v4550 = vunpack.c.h.b16 %v4424
        %v4551 = vunpack.c.l.b16 %v4425
        %v4552 = vunpack.c.h.b16 %v4425
        %v4553 = vunpack.c.l.b16 %v4426
        %v4554 = vunpack.c.h.b16 %v4426
        %v4555 = vpack.c.b16 %v4493, %v4491
        %v4556 = vpack.c.b16 %v4494, %v4492
        %v4557 = vpack.c.b16 %v4497, %v4495
        %v4558 = vpack.c.b16 %v4498, %v4496
        %v4559 = vpack.c.b16 %v4501, %v4499
        %v4560 = vpack.c.b16 %v4502, %v4500
        %v4561 = vpack.c.b16 %v4505, %v4503
        %v4562 = vpack.c.b16 %v4506, %v4504
        %v4563 = vpack.c.b16 %v4509, %v4507
        %v4564 = vpack.c.b16 %v4510, %v4508
        %v4565 = vpack.c.b16 %v4513, %v4511
        %v4566 = vpack.c.b16 %v4514, %v4512
        %v4567 = vpack.c.b16 %v4517, %v4515
        %v4568 = vpack.c.b16 %v4518, %v4516
        %v4569 = vpack.c.b16 %v4521, %v4519
        %v4570 = vpack.c.b16 %v4522, %v4520
        %v4571 = vpack.c.b16 %v4525, %v4523
        %v4572 = vpack.c.b16 %v4526, %v4524
        %v4573 = vpack.c.b16 %v4529, %v4527
        %v4574 = vpack.c.b16 %v4530, %v4528
        %v4575 = vpack.c.b16 %v4533, %v4531
        %v4576 = vpack.c.b16 %v4534, %v4532
        %v4577 = vpack.c.b16 %v4537, %v4535
        %v4578 = vpack.c.b16 %v4538, %v4536
        %v4579 = vpack.c.b16 %v4541, %v4539
        %v4580 = vpack.c.b16 %v4542, %v4540
        %v4581 = vpack.c.b16 %v4545, %v4543
        %v4582 = vpack.c.b16 %v4546, %v4544
        %v4583 = vpack.c.b16 %v4549, %v4547
        %v4584 = vpack.c.b16 %v4550, %v4548
        %v4585 = vpack.c.b16 %v4553, %v4551
        %v4586 = vpack.c.b16 %v4554, %v4552
        %4619 = vmatprep.subr.bf16.mxu0 %v4556
        %4620 = vmatpush1.bf16.msra.mxu0 %v4555
        %4621 = vmatprep.subr.bf16.mxu0 %v4558
        %4622 = vmatpush1.bf16.msra.mxu0 %v4557
        %4623 = vmatprep.subr.bf16.mxu0 %v4560
        %4624 = vmatpush1.bf16.msra.mxu0 %v4559
        %4625 = vmatprep.subr.bf16.mxu0 %v4562
        %4626 = vmatpush1.bf16.msra.mxu0 %v4561
        %4627 = vmatprep.subr.bf16.mxu0 %v4564
        %4628 = vmatpush1.bf16.msra.mxu0 %v4563
        %4629 = vmatprep.subr.bf16.mxu0 %v4566
        %4630 = vmatpush1.bf16.msra.mxu0 %v4565
        %4631 = vmatprep.subr.bf16.mxu0 %v4568
        %4632 = vmatpush1.bf16.msra.mxu0 %v4567
        %4633 = vmatprep.subr.bf16.mxu0 %v4570
        %4634 = vmatpush1.bf16.msra.mxu0 %v4569
        %4635 = vmatprep.subr.bf16.mxu0 %v4572
        %4636 = vmatpush1.bf16.msra.mxu0 %v4571
        %4637 = vmatprep.subr.bf16.mxu0 %v4574
        %4638 = vmatpush1.bf16.msra.mxu0 %v4573
        %4639 = vmatprep.subr.bf16.mxu0 %v4576
        %4640 = vmatpush1.bf16.msra.mxu0 %v4575
        %4641 = vmatprep.subr.bf16.mxu0 %v4578
        %4642 = vmatpush1.bf16.msra.mxu0 %v4577
        %4643 = vmatprep.subr.bf16.mxu0 %v4580
        %4644 = vmatpush1.bf16.msra.mxu0 %v4579
        %4645 = vmatprep.subr.bf16.mxu0 %v4582
        %4646 = vmatpush1.bf16.msra.mxu0 %v4581
        %4647 = vmatprep.subr.bf16.mxu0 %v4584
        %4648 = vmatpush1.bf16.msra.mxu0 %v4583
        %4649 = vmatprep.subr.bf16.mxu0 %v4586
        %4650 = vmatpush1.bf16.msra.mxu0 %v4585
        %4651 = vmatprep.mubr.bf16.mxu0 %v4428
        %4652 = vmatmul.mubr.bf16.gmra.mrb[0].mxu0 %v4427
        %v4653 = vpop.f32.mrb[0].mxu0
        %v4654 = vadd.f32 %v4452, %v4653
        %v4655 = vpop.f32.mrb[0].mxu0
        %v4656 = vadd.f32 %v4456, %v4655
        %v4657 = vpop.f32.mrb[0].mxu0
        %v4658 = vadd.f32 %v4452, %v4657
        %v4659 = vpop.f32.mrb[0].mxu0
        %v4660 = vadd.f32 %v4456, %v4659
        %4661 = vmatprep.mubr.bf16.mxu0 %v4430
        %4662 = vmatmul.mubr.bf16.gmra.mrb[0].mxu0 %v4429
        %v4663 = vpop.f32.mrb[0].mxu0
        %v4664 = vadd.f32 %v4452, %v4663
        %v4665 = vpop.f32.mrb[0].mxu0
        %v4666 = vadd.f32 %v4456, %v4665
        %v4667 = vpop.f32.mrb[0].mxu0
        %v4668 = vadd.f32 %v4452, %v4667
        %v4669 = vpop.f32.mrb[0].mxu0
        %v4670 = vadd.f32 %v4456, %v4669
        %4671 = vmatprep.mubr.bf16.mxu0 %v4432
        %4672 = vmatmul.mubr.bf16.gmra.mrb[0].mxu0 %v4431
        %v4673 = vpop.f32.mrb[0].mxu0
        %v4674 = vadd.f32 %v4452, %v4673
        %v4675 = vpop.f32.mrb[0].mxu0
        %v4676 = vadd.f32 %v4456, %v4675
        %v4677 = vpop.f32.mrb[0].mxu0
        %v4678 = vadd.f32 %v4452, %v4677
        %v4679 = vpop.f32.mrb[0].mxu0
        %v4680 = vadd.f32 %v4456, %v4679
        %4681 = vmatprep.mubr.bf16.mxu0 %v4434
        %4682 = vmatmul.mubr.bf16.gmra.mrb[0].mxu0 %v4433
        %v4683 = vpop.f32.mrb[0].mxu0
        %v4684 = vadd.f32 %v4452, %v4683
        %v4685 = vpop.f32.mrb[0].mxu0
        %v4686 = vadd.f32 %v4456, %v4685
        %v4687 = vpop.f32.mrb[0].mxu0
        %v4688 = vadd.f32 %v4452, %v4687
        %v4689 = vpop.f32.mrb[0].mxu0
        %v4690 = vadd.f32 %v4456, %v4689
        %4691 = vmatprep.mubr.bf16.mxu0 %v4436
        %4692 = vmatmul.mubr.bf16.gmra.mrb[0].mxu0 %v4435
        %v4693 = vpop.f32.mrb[0].mxu0
        %v4694 = vadd.f32 %v4452, %v4693
        %v4695 = vpop.f32.mrb[0].mxu0
        %v4696 = vadd.f32 %v4456, %v4695
        %v4697 = vpop.f32.mrb[0].mxu0
        %v4698 = vadd.f32 %v4452, %v4697
        %v4699 = vpop.f32.mrb[0].mxu0
        %v4700 = vadd.f32 %v4456, %v4699
        %4701 = vmatprep.mubr.bf16.mxu0 %v4438
        %4702 = vmatmul.mubr.bf16.gmra.mrb[0].mxu0 %v4437
        %v4703 = vpop.f32.mrb[0].mxu0
        %v4704 = vadd.f32 %v4452, %v4703
        %v4705 = vpop.f32.mrb[0].mxu0
        %v4706 = vadd.f32 %v4456, %v4705
        %v4707 = vpop.f32.mrb[0].mxu0
        %v4708 = vadd.f32 %v4452, %v4707
        %v4709 = vpop.f32.mrb[0].mxu0
        %v4710 = vadd.f32 %v4456, %v4709
        %4711 = vmatprep.mubr.bf16.mxu0 %v4440
        %4712 = vmatmul.mubr.bf16.gmra.mrb[0].mxu0 %v4439
        %v4713 = vpop.f32.mrb[0].mxu0
        %v4714 = vadd.f32 %v4452, %v4713
        %v4715 = vpop.f32.mrb[0].mxu0
        %v4716 = vadd.f32 %v4456, %v4715
        %v4717 = vpop.f32.mrb[0].mxu0
        %v4718 = vadd.f32 %v4452, %v4717
        %v4719 = vpop.f32.mrb[0].mxu0
        %v4720 = vadd.f32 %v4456, %v4719
        %4721 = vmatprep.mubr.bf16.mxu0 %v4442
        %4722 = vmatmul.mubr.bf16.gmra.mrb[0].mxu0 %v4441
        %v4723 = vpop.f32.mrb[0].mxu0
        %v4724 = vadd.f32 %v4452, %v4723
        %v4725 = vpop.f32.mrb[0].mxu0
        %v4726 = vadd.f32 %v4456, %v4725
        %v4727 = vpop.f32.mrb[0].mxu0
        %v4728 = vadd.f32 %v4452, %v4727
        %v4729 = vpop.f32.mrb[0].mxu0
        %v4730 = vadd.f32 %v4456, %v4729
        %4731 = vmatprep.mubr.bf16.mxu0 %v4444
        %4732 = vmatmul.mubr.bf16.gmra.mrb[0].mxu0 %v4443
        %v4733 = vpop.f32.mrb[0].mxu0
        %v4734 = vadd.f32 %v4452, %v4733
        %v4735 = vpop.f32.mrb[0].mxu0
        %v4736 = vadd.f32 %v4456, %v4735
        %v4737 = vpop.f32.mrb[0].mxu0
        %v4738 = vadd.f32 %v4452, %v4737
        %v4739 = vpop.f32.mrb[0].mxu0
        %v4740 = vadd.f32 %v4456, %v4739
        %4741 = vmatprep.mubr.bf16.mxu0 %v4446
        %4742 = vmatmul.mubr.bf16.gmra.mrb[0].mxu0 %v4445
        %v4743 = vpop.f32.mrb[0].mxu0
        %v4744 = vadd.f32 %v4452, %v4743
        %v4745 = vpop.f32.mrb[0].mxu0
        %v4746 = vadd.f32 %v4456, %v4745
        %v4747 = vpop.f32.mrb[0].mxu0
        %v4748 = vadd.f32 %v4452, %v4747
        %v4749 = vpop.f32.mrb[0].mxu0
        %v4750 = vadd.f32 %v4456, %v4749
        %4751 = vdwg.mxu0
        %v4752 = vmax.f32 %v4654, 0.0
        %v4753 = vmax.f32 %v4656, 0.0
        %v4754 = vmax.f32 %v4658, 0.0
        %v4755 = vmax.f32 %v4660, 0.0
        %v4756 = vmax.f32 %v4664, 0.0
        %v4757 = vmax.f32 %v4666, 0.0
        %v4758 = vmax.f32 %v4668, 0.0
        %v4759 = vmax.f32 %v4670, 0.0
        %v4760 = vmax.f32 %v4674, 0.0
        %v4761 = vmax.f32 %v4676, 0.0
        %v4762 = vmax.f32 %v4678, 0.0
        %v4763 = vmax.f32 %v4680, 0.0
        %v4764 = vmax.f32 %v4684, 0.0
        %v4765 = vmax.f32 %v4686, 0.0
        %v4766 = vmax.f32 %v4688, 0.0
        %v4767 = vmax.f32 %v4690, 0.0
        %v4768 = vmax.f32 %v4694, 0.0
        %v4769 = vmax.f32 %v4696, 0.0
        %v4770 = vmax.f32 %v4698, 0.0
        %v4771 = vmax.f32 %v4700, 0.0
        %v4772 = vmax.f32 %v4704, 0.0
        %v4773 = vmax.f32 %v4706, 0.0
        %v4774 = vmax.f32 %v4708, 0.0
        %v4775 = vmax.f32 %v4710, 0.0
        %v4776 = vmax.f32 %v4714, 0.0
        %v4777 = vmax.f32 %v4716, 0.0
        %v4778 = vmax.f32 %v4718, 0.0
        %v4779 = vmax.f32 %v4720, 0.0
        %v4780 = vmax.f32 %v4724, 0.0
        %v4781 = vmax.f32 %v4726, 0.0
        %v4782 = vmax.f32 %v4728, 0.0
        %v4783 = vmax.f32 %v4730, 0.0
        %v4784 = vmax.f32 %v4734, 0.0
        %v4785 = vmax.f32 %v4736, 0.0
        %v4786 = vmax.f32 %v4738, 0.0
        %v4787 = vmax.f32 %v4740, 0.0
        %v4788 = vmax.f32 %v4744, 0.0
        %v4789 = vmax.f32 %v4746, 0.0
        %v4790 = vmax.f32 %v4748, 0.0
        %v4791 = vmax.f32 %v4750, 0.0
        %v4792 = vld [vmem:[#allocation19] sm:$0xff]
        %v4793 = vld [vmem:[#allocation19 + $0x8] sm:$0xff]
        %v4794 = vld [vmem:[#allocation19 + $0x10] sm:$0xff]
        %v4795 = vld [vmem:[#allocation19 + $0x18] sm:$0xff]
        %v4796 = vld [vmem:[#allocation19 + $0x20] sm:$0xff]
        %v4797 = vld [vmem:[#allocation19 + $0x28] sm:$0xff]
        %v4798 = vld [vmem:[#allocation19 + $0x30] sm:$0xff]
        %v4799 = vld [vmem:[#allocation19 + $0x38] sm:$0xff]
        %v4800 = vld [vmem:[#allocation19 + $0x40] sm:$0xff]
        %v4801 = vld [vmem:[#allocation19 + $0x48] sm:$0xff]
        %v4802 = vpack.c.bf16 %v4754, %v4752
        %v4803 = vpack.c.bf16 %v4755, %v4753
        %v4804 = vpack.c.bf16 %v4758, %v4756
        %v4805 = vpack.c.bf16 %v4759, %v4757
        %v4806 = vpack.c.bf16 %v4762, %v4760
        %v4807 = vpack.c.bf16 %v4763, %v4761
        %v4808 = vpack.c.bf16 %v4766, %v4764
        %v4809 = vpack.c.bf16 %v4767, %v4765
        %v4810 = vpack.c.bf16 %v4770, %v4768
        %v4811 = vpack.c.bf16 %v4771, %v4769
        %v4812 = vpack.c.bf16 %v4774, %v4772
        %v4813 = vpack.c.bf16 %v4775, %v4773
        %v4814 = vpack.c.bf16 %v4778, %v4776
        %v4815 = vpack.c.bf16 %v4779, %v4777
        %v4816 = vpack.c.bf16 %v4782, %v4780
        %v4817 = vpack.c.bf16 %v4783, %v4781
        %v4818 = vpack.c.bf16 %v4786, %v4784
        %v4819 = vpack.c.bf16 %v4787, %v4785
        %v4820 = vpack.c.bf16 %v4790, %v4788
        %v4821 = vpack.c.bf16 %v4791, %v4789
        %v4832 = vunpack.c.l.b16 %v4792
        %v4833 = vunpack.c.h.b16 %v4792
        %v4834 = vunpack.c.l.b16 %v4793
        %v4835 = vunpack.c.h.b16 %v4793
        %v4836 = vunpack.c.l.b16 %v4794
        %v4837 = vunpack.c.h.b16 %v4794
        %v4838 = vunpack.c.l.b16 %v4795
        %v4839 = vunpack.c.h.b16 %v4795
        %v4840 = vunpack.c.l.b16 %v4796
        %v4841 = vunpack.c.h.b16 %v4796
        %v4842 = vunpack.c.l.b16 %v4797
        %v4843 = vunpack.c.h.b16 %v4797
        %v4844 = vunpack.c.l.b16 %v4798
        %v4845 = vunpack.c.h.b16 %v4798
        %v4846 = vunpack.c.l.b16 %v4799
        %v4847 = vunpack.c.h.b16 %v4799
        %v4848 = vunpack.c.l.b16 %v4800
        %v4849 = vunpack.c.h.b16 %v4800
        %v4850 = vunpack.c.l.b16 %v4801
        %v4851 = vunpack.c.h.b16 %v4801
        %v4852 = vpack.c.b16 %v4834, %v4832
        %v4853 = vpack.c.b16 %v4835, %v4833
        %v4854 = vpack.c.b16 %v4838, %v4836
        %v4855 = vpack.c.b16 %v4839, %v4837
        %v4856 = vpack.c.b16 %v4842, %v4840
        %v4857 = vpack.c.b16 %v4843, %v4841
        %v4858 = vpack.c.b16 %v4846, %v4844
        %v4859 = vpack.c.b16 %v4847, %v4845
        %v4860 = vpack.c.b16 %v4850, %v4848
        %v4861 = vpack.c.b16 %v4851, %v4849
        %v4868 = vsel %vm1001, %v4853, 0
        %v4871 = vsel %vm1001, %v4855, 0
        %v4874 = vsel %vm1001, %v4857, 0
        %v4877 = vsel %vm1001, %v4859, 0
        %v4880 = vsel %vm1001, %v4861, 0
        %4882 = vmatprep.subr.bf16.mxu0 %v4803
        %4883 = vmatpush1.bf16.msra.mxu0 %v4802
        %4884 = vmatprep.subr.bf16.mxu0 %v4805
        %4885 = vmatpush1.bf16.msra.mxu0 %v4804
        %4886 = vmatprep.subr.bf16.mxu0 %v4807
        %4887 = vmatpush1.bf16.msra.mxu0 %v4806
        %4888 = vmatprep.subr.bf16.mxu0 %v4809
        %4889 = vmatpush1.bf16.msra.mxu0 %v4808
        %4890 = vmatprep.subr.bf16.mxu0 %v4811
        %4891 = vmatpush1.bf16.msra.mxu0 %v4810
        %4892 = vmatprep.subr.bf16.mxu0 %v4813
        %4893 = vmatpush1.bf16.msra.mxu0 %v4812
        %4894 = vmatprep.subr.bf16.mxu0 %v4815
        %4895 = vmatpush1.bf16.msra.mxu0 %v4814
        %4896 = vmatprep.subr.bf16.mxu0 %v4817
        %4897 = vmatpush1.bf16.msra.mxu0 %v4816
        %4898 = vmatprep.subr.bf16.mxu0 %v4819
        %4899 = vmatpush1.bf16.msra.mxu0 %v4818
        %4900 = vmatprep.subr.bf16.mxu0 %v4821
        %4901 = vmatpush1.bf16.msra.mxu0 %v4820
        %4902 = vmatprep.subr.bf16.mxu0 0
        %4903 = vmatpush1.bf16.msra.mxu0 0
        %4904 = vmatprep.subr.bf16.mxu0 0
        %4905 = vmatpush1.bf16.msra.mxu0 0
        %4906 = vmatprep.subr.bf16.mxu0 0
        %4907 = vmatpush1.bf16.msra.mxu0 0
        %4908 = vmatprep.subr.bf16.mxu0 0
        %4909 = vmatpush1.bf16.msra.mxu0 0
        %4910 = vmatprep.subr.bf16.mxu0 0
        %4911 = vmatpush1.bf16.msra.mxu0 0
        %4912 = vmatprep.subr.bf16.mxu0 0
        %4913 = vmatpush1.bf16.msra.mxu0 0
        %4914 = vmatprep.mubr.bf16.mxu0 %v4868
        %4915 = vmatmul.mubr.bf16.gmra.mrb[0].mxu0 %v4852
        %v4916 = vpop.f32.mrb[0].mxu0
        %v4917 = vadd.f32 0.0, %v4916
        %v4918 = vpop.f32.mrb[0].mxu0
        %v4919 = vadd.f32 0.0, %v4918
        %v4920 = vpop.f32.mrb[0].mxu0
        %v4921 = vadd.f32 0.0, %v4920
        %v4922 = vpop.f32.mrb[0].mxu0
        %v4923 = vadd.f32 0.0, %v4922
        %4924 = vmatprep.mubr.bf16.mxu0 %v4871
        %4925 = vmatmul.mubr.bf16.gmra.mrb[0].mxu0 %v4854
        %v4926 = vpop.f32.mrb[0].mxu0
        %v4927 = vadd.f32 0.0, %v4926
        %v4928 = vpop.f32.mrb[0].mxu0
        %v4929 = vadd.f32 0.0, %v4928
        %v4930 = vpop.f32.mrb[0].mxu0
        %v4931 = vadd.f32 0.0, %v4930
        %v4932 = vpop.f32.mrb[0].mxu0
        %v4933 = vadd.f32 0.0, %v4932
        %4934 = vmatprep.mubr.bf16.mxu0 %v4874
        %4935 = vmatmul.mubr.bf16.gmra.mrb[0].mxu0 %v4856
        %v4936 = vpop.f32.mrb[0].mxu0
        %v4937 = vadd.f32 0.0, %v4936
        %v4938 = vpop.f32.mrb[0].mxu0
        %v4939 = vadd.f32 0.0, %v4938
        %v4940 = vpop.f32.mrb[0].mxu0
        %v4941 = vadd.f32 0.0, %v4940
        %v4942 = vpop.f32.mrb[0].mxu0
        %v4943 = vadd.f32 0.0, %v4942
        %4944 = vmatprep.mubr.bf16.mxu0 %v4877
        %4945 = vmatmul.mubr.bf16.gmra.mrb[0].mxu0 %v4858
        %v4946 = vpop.f32.mrb[0].mxu0
        %v4947 = vadd.f32 0.0, %v4946
        %v4948 = vpop.f32.mrb[0].mxu0
        %v4949 = vadd.f32 0.0, %v4948
        %v4950 = vpop.f32.mrb[0].mxu0
        %v4951 = vadd.f32 0.0, %v4950
        %v4952 = vpop.f32.mrb[0].mxu0
        %v4953 = vadd.f32 0.0, %v4952
        %4954 = vmatprep.mubr.bf16.mxu0 %v4880
        %4955 = vmatmul.mubr.bf16.gmra.mrb[0].mxu0 %v4860
        %v4956 = vpop.f32.mrb[0].mxu0
        %v4957 = vadd.f32 0.0, %v4956
        %v4958 = vpop.f32.mrb[0].mxu0
        %v4959 = vadd.f32 0.0, %v4958
        %v4960 = vpop.f32.mrb[0].mxu0
        %v4961 = vadd.f32 0.0, %v4960
        %v4962 = vpop.f32.mrb[0].mxu0
        %v4963 = vadd.f32 0.0, %v4962
        %4964 = vdwg.mxu0
        %v4985 = vrot.slane %v4917, 1
        %v4986 = vrot.slane %v4921, 1
        %v4987 = vsel %vm1548, %v4985, %v4986
        %v4988 = vrot.slane %v4919, 1
        %v4989 = vrot.slane %v4923, 1
        %v4990 = vsel %vm1548, %v4988, %v4989
        %v4991 = vrot.slane %v4927, 1
        %v4992 = vsel %vm1548, %v4986, %v4991
        %v4993 = vrot.slane %v4929, 1
        %v4994 = vsel %vm1548, %v4989, %v4993
        %v4995 = vrot.slane %v4931, 1
        %v4996 = vsel %vm1548, %v4991, %v4995
        %v4997 = vrot.slane %v4933, 1
        %v4998 = vsel %vm1548, %v4993, %v4997
        %v4999 = vrot.slane %v4937, 1
        %v5000 = vsel %vm1548, %v4995, %v4999
        %v5001 = vrot.slane %v4939, 1
        %v5002 = vsel %vm1548, %v4997, %v5001
        %v5003 = vrot.slane %v4941, 1
        %v5004 = vsel %vm1548, %v4999, %v5003
        %v5005 = vrot.slane %v4943, 1
        %v5006 = vsel %vm1548, %v5001, %v5005
        %v5007 = vrot.slane %v4947, 1
        %v5008 = vsel %vm1548, %v5003, %v5007
        %v5009 = vrot.slane %v4949, 1
        %v5010 = vsel %vm1548, %v5005, %v5009
        %v5011 = vrot.slane %v4951, 1
        %v5012 = vsel %vm1548, %v5007, %v5011
        %v5013 = vrot.slane %v4953, 1
        %v5014 = vsel %vm1548, %v5009, %v5013
        %v5015 = vrot.slane %v4957, 1
        %v5016 = vsel %vm1548, %v5011, %v5015
        %v5017 = vrot.slane %v4959, 1
        %v5018 = vsel %vm1548, %v5013, %v5017
        %v5019 = vrot.slane %v4961, 1
        %v5020 = vsel %vm1548, %v5015, %v5019
        %v5021 = vrot.slane %v4963, 1
        %v5022 = vsel %vm1548, %v5017, %v5021
        %v5043 = vsel %vm1548, %v5019, 0.0
        %v5044 = vsel %vm1548, %v5021, 0.0
        %v5045 = vld [vmem:[%s16] sm:$0xff]
        %v5046 = vld [vmem:[%s16 + $0x8] sm:$0xff]
        %v5047 = vld [vmem:[%s16 + $0x10] sm:$0xff]
        %v5048 = vld [vmem:[%s16 + $0x18] sm:$0xff]
        %v5049 = vld [vmem:[%s16 + $0x20] sm:$0xff]
        %v5050 = vld [vmem:[%s16 + $0x28] sm:$0xff]
        %v5051 = vld [vmem:[%s16 + $0x30] sm:$0xff]
        %v5052 = vld [vmem:[%s16 + $0x38] sm:$0xff]
        %v5053 = vld [vmem:[%s16 + $0x40] sm:$0xff]
        %v5054 = vld [vmem:[%s16 + $0x48] sm:$0xff]
        %v5055 = vld [vmem:[%s16 + $0x50] sm:$0xff]
        %v5056 = vld [vmem:[%s16 + $0x58] sm:$0xff]
        %v5057 = vld [vmem:[%s16 + $0x60] sm:$0xff]
        %v5058 = vld [vmem:[%s16 + $0x68] sm:$0xff]
        %v5059 = vld [vmem:[%s16 + $0x70] sm:$0xff]
        %v5060 = vld [vmem:[%s16 + $0x78] sm:$0xff]
        %v5061 = vld [vmem:[%s16 + $0x80] sm:$0xff]
        %v5062 = vld [vmem:[%s16 + $0x88] sm:$0xff]
        %v5063 = vld [vmem:[%s16 + $0x90] sm:$0xff]
        %v5064 = vld [vmem:[%s16 + $0x98] sm:$0xff]
        %v5065 = vld [vmem:[%s16 + $0xa0] sm:$0xff]
        %v5066 = vld [vmem:[%s16 + $0xa8] sm:$0xff]
        %v5067 = vld [vmem:[%s16 + $0xb0] sm:$0xff]
        %v5068 = vld [vmem:[%s16 + $0xb8] sm:$0xff]
        %v5069 = vld [vmem:[%s16 + $0xc0] sm:$0xff]
        %v5070 = vld [vmem:[%s16 + $0xc8] sm:$0xff]
        %v5071 = vld [vmem:[%s16 + $0xd0] sm:$0xff]
        %v5072 = vld [vmem:[%s16 + $0xd8] sm:$0xff]
        %v5073 = vld [vmem:[%s16 + $0xe0] sm:$0xff]
        %v5074 = vld [vmem:[%s16 + $0xe8] sm:$0xff]
        %v5075 = vld [vmem:[%s16 + $0xf0] sm:$0xff]
        %v5076 = vld [vmem:[%s16 + $0xf8] sm:$0xff]
        %v5077 = vld [vmem:[%s16 + $0x100] sm:$0xff]
        %v5078 = vld [vmem:[%s16 + $0x108] sm:$0xff]
        %v5079 = vld [vmem:[%s16 + $0x110] sm:$0xff]
        %v5080 = vld [vmem:[%s16 + $0x118] sm:$0xff]
        %v5081 = vld [vmem:[%s16 + $0x120] sm:$0xff]
        %v5082 = vld [vmem:[%s16 + $0x128] sm:$0xff]
        %v5083 = vld [vmem:[%s16 + $0x130] sm:$0xff]
        %v5084 = vld [vmem:[%s16 + $0x138] sm:$0xff]
        %v5085 = vld [vmem:[%s16 + $0x140] sm:$0xff]
        %v5086 = vld [vmem:[%s16 + $0x148] sm:$0xff]
        %v5087 = vld [vmem:[%s16 + $0x150] sm:$0xff]
        %v5088 = vld [vmem:[%s16 + $0x158] sm:$0xff]
        %v5089 = vld [vmem:[%s16 + $0x160] sm:$0xff]
        %v5090 = vld [vmem:[%s16 + $0x168] sm:$0xff]
        %v5091 = vld [vmem:[%s16 + $0x170] sm:$0xff]
        %v5092 = vld [vmem:[%s16 + $0x178] sm:$0xff]
        %v5093 = vld [vmem:[%s16 + $0x180] sm:$0xff]
        %v5094 = vld [vmem:[%s16 + $0x188] sm:$0xff]
        %v5095 = vld [vmem:[%s16 + $0x190] sm:$0xff]
        %v5096 = vld [vmem:[%s16 + $0x198] sm:$0xff]
        %v5097 = vld [vmem:[%s16 + $0x1a0] sm:$0xff]
        %v5098 = vld [vmem:[%s16 + $0x1a8] sm:$0xff]
        %v5099 = vld [vmem:[%s16 + $0x1b0] sm:$0xff]
        %v5100 = vld [vmem:[%s16 + $0x1b8] sm:$0xff]
        %v5101 = vld [vmem:[%s16 + $0x1c0] sm:$0xff]
        %v5102 = vld [vmem:[%s16 + $0x1c8] sm:$0xff]
        %v5103 = vld [vmem:[%s16 + $0x1d0] sm:$0xff]
        %v5104 = vld [vmem:[%s16 + $0x1d8] sm:$0xff]
        %v5105 = vld [vmem:[%s16 + $0x1e0] sm:$0xff]
        %v5106 = vld [vmem:[%s16 + $0x1e8] sm:$0xff]
        %v5107 = vld [vmem:[%s16 + $0x1f0] sm:$0xff]
        %v5108 = vld [vmem:[%s16 + $0x1f8] sm:$0xff]
        %v5109 = vpack.c.bf16 %v4921, %v4917
        %v5110 = vpack.c.bf16 %v4923, %v4919
        %v5111 = vpack.c.bf16 %v4992, %v4987
        %v5112 = vpack.c.bf16 %v4994, %v4990
        %v5113 = vpack.c.bf16 %v4931, %v4927
        %v5114 = vpack.c.bf16 %v4933, %v4929
        %v5115 = vpack.c.bf16 %v5000, %v4996
        %v5116 = vpack.c.bf16 %v5002, %v4998
        %v5117 = vpack.c.bf16 %v4941, %v4937
        %v5118 = vpack.c.bf16 %v4943, %v4939
        %v5119 = vpack.c.bf16 %v5008, %v5004
        %v5120 = vpack.c.bf16 %v5010, %v5006
        %v5121 = vpack.c.bf16 %v4951, %v4947
        %v5122 = vpack.c.bf16 %v4953, %v4949
        %v5123 = vpack.c.bf16 %v5016, %v5012
        %v5124 = vpack.c.bf16 %v5018, %v5014
        %v5125 = vpack.c.bf16 %v4961, %v4957
        %v5126 = vpack.c.bf16 %v4963, %v4959
        %v5127 = vpack.c.bf16 %v5043, %v5020
        %v5128 = vpack.c.bf16 %v5044, %v5022
        %v5129 = vld [vmem:[#allocation20] sm:$0x3]
        %v5131 = vlaneseq
        %v5132 = vshrl.u32 %v5131, 7
        %v5133 = vsub.s32 0, %v5132
        %v5134 = vrot.slane %v5129, %v5133
        %v5135 = vlaneseq
        %v5136 = vshrl.u32 %v5135, 7
        %v5137 = vsub.s32 1, %v5136
        %v5138 = vrot.slane %v5129, %v5137
        %v5205 = vunpack.c.l.b16 %v5045
        %v5206 = vunpack.c.h.b16 %v5045
        %v5207 = vunpack.c.l.b16 %v5046
        %v5208 = vunpack.c.h.b16 %v5046
        %v5209 = vunpack.c.l.b16 %v5047
        %v5210 = vunpack.c.h.b16 %v5047
        %v5211 = vunpack.c.l.b16 %v5048
        %v5212 = vunpack.c.h.b16 %v5048
        %v5213 = vunpack.c.l.b16 %v5049
        %v5214 = vunpack.c.h.b16 %v5049
        %v5215 = vunpack.c.l.b16 %v5050
        %v5216 = vunpack.c.h.b16 %v5050
        %v5217 = vunpack.c.l.b16 %v5051
        %v5218 = vunpack.c.h.b16 %v5051
        %v5219 = vunpack.c.l.b16 %v5052
        %v5220 = vunpack.c.h.b16 %v5052
        %v5221 = vunpack.c.l.b16 %v5053
        %v5222 = vunpack.c.h.b16 %v5053
        %v5223 = vunpack.c.l.b16 %v5054
        %v5224 = vunpack.c.h.b16 %v5054
        %v5225 = vunpack.c.l.b16 %v5055
        %v5226 = vunpack.c.h.b16 %v5055
        %v5227 = vunpack.c.l.b16 %v5056
        %v5228 = vunpack.c.h.b16 %v5056
        %v5229 = vunpack.c.l.b16 %v5057
        %v5230 = vunpack.c.h.b16 %v5057
        %v5231 = vunpack.c.l.b16 %v5058
        %v5232 = vunpack.c.h.b16 %v5058
        %v5233 = vunpack.c.l.b16 %v5059
        %v5234 = vunpack.c.h.b16 %v5059
        %v5235 = vunpack.c.l.b16 %v5060
        %v5236 = vunpack.c.h.b16 %v5060
        %v5237 = vunpack.c.l.b16 %v5061
        %v5238 = vunpack.c.h.b16 %v5061
        %v5239 = vunpack.c.l.b16 %v5062
        %v5240 = vunpack.c.h.b16 %v5062
        %v5241 = vunpack.c.l.b16 %v5063
        %v5242 = vunpack.c.h.b16 %v5063
        %v5243 = vunpack.c.l.b16 %v5064
        %v5244 = vunpack.c.h.b16 %v5064
        %v5245 = vunpack.c.l.b16 %v5065
        %v5246 = vunpack.c.h.b16 %v5065
        %v5247 = vunpack.c.l.b16 %v5066
        %v5248 = vunpack.c.h.b16 %v5066
        %v5249 = vunpack.c.l.b16 %v5067
        %v5250 = vunpack.c.h.b16 %v5067
        %v5251 = vunpack.c.l.b16 %v5068
        %v5252 = vunpack.c.h.b16 %v5068
        %v5253 = vunpack.c.l.b16 %v5069
        %v5254 = vunpack.c.h.b16 %v5069
        %v5255 = vunpack.c.l.b16 %v5070
        %v5256 = vunpack.c.h.b16 %v5070
        %v5257 = vunpack.c.l.b16 %v5071
        %v5258 = vunpack.c.h.b16 %v5071
        %v5259 = vunpack.c.l.b16 %v5072
        %v5260 = vunpack.c.h.b16 %v5072
        %v5261 = vunpack.c.l.b16 %v5073
        %v5262 = vunpack.c.h.b16 %v5073
        %v5263 = vunpack.c.l.b16 %v5074
        %v5264 = vunpack.c.h.b16 %v5074
        %v5265 = vunpack.c.l.b16 %v5075
        %v5266 = vunpack.c.h.b16 %v5075
        %v5267 = vunpack.c.l.b16 %v5076
        %v5268 = vunpack.c.h.b16 %v5076
        %v5269 = vunpack.c.l.b16 %v5077
        %v5270 = vunpack.c.h.b16 %v5077
        %v5271 = vunpack.c.l.b16 %v5078
        %v5272 = vunpack.c.h.b16 %v5078
        %v5273 = vunpack.c.l.b16 %v5079
        %v5274 = vunpack.c.h.b16 %v5079
        %v5275 = vunpack.c.l.b16 %v5080
        %v5276 = vunpack.c.h.b16 %v5080
        %v5277 = vunpack.c.l.b16 %v5081
        %v5278 = vunpack.c.h.b16 %v5081
        %v5279 = vunpack.c.l.b16 %v5082
        %v5280 = vunpack.c.h.b16 %v5082
        %v5281 = vunpack.c.l.b16 %v5083
        %v5282 = vunpack.c.h.b16 %v5083
        %v5283 = vunpack.c.l.b16 %v5084
        %v5284 = vunpack.c.h.b16 %v5084
        %v5285 = vunpack.c.l.b16 %v5085
        %v5286 = vunpack.c.h.b16 %v5085
        %v5287 = vunpack.c.l.b16 %v5086
        %v5288 = vunpack.c.h.b16 %v5086
        %v5289 = vunpack.c.l.b16 %v5087
        %v5290 = vunpack.c.h.b16 %v5087
        %v5291 = vunpack.c.l.b16 %v5088
        %v5292 = vunpack.c.h.b16 %v5088
        %v5293 = vunpack.c.l.b16 %v5089
        %v5294 = vunpack.c.h.b16 %v5089
        %v5295 = vunpack.c.l.b16 %v5090
        %v5296 = vunpack.c.h.b16 %v5090
        %v5297 = vunpack.c.l.b16 %v5091
        %v5298 = vunpack.c.h.b16 %v5091
        %v5299 = vunpack.c.l.b16 %v5092
        %v5300 = vunpack.c.h.b16 %v5092
        %v5301 = vunpack.c.l.b16 %v5093
        %v5302 = vunpack.c.h.b16 %v5093
        %v5303 = vunpack.c.l.b16 %v5094
        %v5304 = vunpack.c.h.b16 %v5094
        %v5305 = vunpack.c.l.b16 %v5095
        %v5306 = vunpack.c.h.b16 %v5095
        %v5307 = vunpack.c.l.b16 %v5096
        %v5308 = vunpack.c.h.b16 %v5096
        %v5309 = vunpack.c.l.b16 %v5097
        %v5310 = vunpack.c.h.b16 %v5097
        %v5311 = vunpack.c.l.b16 %v5098
        %v5312 = vunpack.c.h.b16 %v5098
        %v5313 = vunpack.c.l.b16 %v5099
        %v5314 = vunpack.c.h.b16 %v5099
        %v5315 = vunpack.c.l.b16 %v5100
        %v5316 = vunpack.c.h.b16 %v5100
        %v5317 = vunpack.c.l.b16 %v5101
        %v5318 = vunpack.c.h.b16 %v5101
        %v5319 = vunpack.c.l.b16 %v5102
        %v5320 = vunpack.c.h.b16 %v5102
        %v5321 = vunpack.c.l.b16 %v5103
        %v5322 = vunpack.c.h.b16 %v5103
        %v5323 = vunpack.c.l.b16 %v5104
        %v5324 = vunpack.c.h.b16 %v5104
        %v5325 = vunpack.c.l.b16 %v5105
        %v5326 = vunpack.c.h.b16 %v5105
        %v5327 = vunpack.c.l.b16 %v5106
        %v5328 = vunpack.c.h.b16 %v5106
        %v5329 = vunpack.c.l.b16 %v5107
        %v5330 = vunpack.c.h.b16 %v5107
        %v5331 = vunpack.c.l.b16 %v5108
        %v5332 = vunpack.c.h.b16 %v5108
        %v5333 = vpack.c.b16 %v5207, %v5205
        %v5334 = vpack.c.b16 %v5208, %v5206
        %v5335 = vpack.c.b16 %v5211, %v5209
        %v5336 = vpack.c.b16 %v5212, %v5210
        %v5337 = vpack.c.b16 %v5215, %v5213
        %v5338 = vpack.c.b16 %v5216, %v5214
        %v5339 = vpack.c.b16 %v5219, %v5217
        %v5340 = vpack.c.b16 %v5220, %v5218
        %v5341 = vpack.c.b16 %v5223, %v5221
        %v5342 = vpack.c.b16 %v5224, %v5222
        %v5343 = vpack.c.b16 %v5227, %v5225
        %v5344 = vpack.c.b16 %v5228, %v5226
        %v5345 = vpack.c.b16 %v5231, %v5229
        %v5346 = vpack.c.b16 %v5232, %v5230
        %v5347 = vpack.c.b16 %v5235, %v5233
        %v5348 = vpack.c.b16 %v5236, %v5234
        %v5349 = vpack.c.b16 %v5239, %v5237
        %v5350 = vpack.c.b16 %v5240, %v5238
        %v5351 = vpack.c.b16 %v5243, %v5241
        %v5352 = vpack.c.b16 %v5244, %v5242
        %v5353 = vpack.c.b16 %v5247, %v5245
        %v5354 = vpack.c.b16 %v5248, %v5246
        %v5355 = vpack.c.b16 %v5251, %v5249
        %v5356 = vpack.c.b16 %v5252, %v5250
        %v5357 = vpack.c.b16 %v5255, %v5253
        %v5358 = vpack.c.b16 %v5256, %v5254
        %v5359 = vpack.c.b16 %v5259, %v5257
        %v5360 = vpack.c.b16 %v5260, %v5258
        %v5361 = vpack.c.b16 %v5263, %v5261
        %v5362 = vpack.c.b16 %v5264, %v5262
        %v5363 = vpack.c.b16 %v5267, %v5265
        %v5364 = vpack.c.b16 %v5268, %v5266
        %v5365 = vpack.c.b16 %v5271, %v5269
        %v5366 = vpack.c.b16 %v5272, %v5270
        %v5367 = vpack.c.b16 %v5275, %v5273
        %v5368 = vpack.c.b16 %v5276, %v5274
        %v5369 = vpack.c.b16 %v5279, %v5277
        %v5370 = vpack.c.b16 %v5280, %v5278
        %v5371 = vpack.c.b16 %v5283, %v5281
        %v5372 = vpack.c.b16 %v5284, %v5282
        %v5373 = vpack.c.b16 %v5287, %v5285
        %v5374 = vpack.c.b16 %v5288, %v5286
        %v5375 = vpack.c.b16 %v5291, %v5289
        %v5376 = vpack.c.b16 %v5292, %v5290
        %v5377 = vpack.c.b16 %v5295, %v5293
        %v5378 = vpack.c.b16 %v5296, %v5294
        %v5379 = vpack.c.b16 %v5299, %v5297
        %v5380 = vpack.c.b16 %v5300, %v5298
        %v5381 = vpack.c.b16 %v5303, %v5301
        %v5382 = vpack.c.b16 %v5304, %v5302
        %v5383 = vpack.c.b16 %v5307, %v5305
        %v5384 = vpack.c.b16 %v5308, %v5306
        %v5385 = vpack.c.b16 %v5311, %v5309
        %v5386 = vpack.c.b16 %v5312, %v5310
        %v5387 = vpack.c.b16 %v5315, %v5313
        %v5388 = vpack.c.b16 %v5316, %v5314
        %v5389 = vpack.c.b16 %v5319, %v5317
        %v5390 = vpack.c.b16 %v5320, %v5318
        %v5391 = vpack.c.b16 %v5323, %v5321
        %v5392 = vpack.c.b16 %v5324, %v5322
        %v5393 = vpack.c.b16 %v5327, %v5325
        %v5394 = vpack.c.b16 %v5328, %v5326
        %v5395 = vpack.c.b16 %v5331, %v5329
        %v5396 = vpack.c.b16 %v5332, %v5330
        %5461 = vmatprep.subr.bf16.mxu0 %v5334
        %5462 = vmatpush1.bf16.msra.mxu0 %v5333
        %5463 = vmatprep.subr.bf16.mxu0 %v5336
        %5464 = vmatpush1.bf16.msra.mxu0 %v5335
        %5465 = vmatprep.subr.bf16.mxu0 %v5338
        %5466 = vmatpush1.bf16.msra.mxu0 %v5337
        %5467 = vmatprep.subr.bf16.mxu0 %v5340
        %5468 = vmatpush1.bf16.msra.mxu0 %v5339
        %5469 = vmatprep.subr.bf16.mxu0 %v5342
        %5470 = vmatpush1.bf16.msra.mxu0 %v5341
        %5471 = vmatprep.subr.bf16.mxu0 %v5344
        %5472 = vmatpush1.bf16.msra.mxu0 %v5343
        %5473 = vmatprep.subr.bf16.mxu0 %v5346
        %5474 = vmatpush1.bf16.msra.mxu0 %v5345
        %5475 = vmatprep.subr.bf16.mxu0 %v5348
        %5476 = vmatpush1.bf16.msra.mxu0 %v5347
        %5477 = vmatprep.subr.bf16.mxu0 %v5350
        %5478 = vmatpush1.bf16.msra.mxu0 %v5349
        %5479 = vmatprep.subr.bf16.mxu0 %v5352
        %5480 = vmatpush1.bf16.msra.mxu0 %v5351
        %5481 = vmatprep.subr.bf16.mxu0 %v5354
        %5482 = vmatpush1.bf16.msra.mxu0 %v5353
        %5483 = vmatprep.subr.bf16.mxu0 %v5356
        %5484 = vmatpush1.bf16.msra.mxu0 %v5355
        %5485 = vmatprep.subr.bf16.mxu0 %v5358
        %5486 = vmatpush1.bf16.msra.mxu0 %v5357
        %5487 = vmatprep.subr.bf16.mxu0 %v5360
        %5488 = vmatpush1.bf16.msra.mxu0 %v5359
        %5489 = vmatprep.subr.bf16.mxu0 %v5362
        %5490 = vmatpush1.bf16.msra.mxu0 %v5361
        %5491 = vmatprep.subr.bf16.mxu0 %v5364
        %5492 = vmatpush1.bf16.msra.mxu0 %v5363
        %5493 = vmatprep.mubr.bf16.mxu0 %v5110
        %5494 = vmatmul.mubr.bf16.gmra.mrb[0].mxu0 %v5109
        %v5495 = vpop.f32.mrb[0].mxu0
        %v5496 = vadd.f32 %v5134, %v5495
        %v5497 = vpop.f32.mrb[0].mxu0
        %v5498 = vadd.f32 %v5138, %v5497
        %v5499 = vpop.f32.mrb[0].mxu0
        %v5500 = vadd.f32 %v5134, %v5499
        %v5501 = vpop.f32.mrb[0].mxu0
        %v5502 = vadd.f32 %v5138, %v5501
        %5503 = vmatprep.mubr.bf16.mxu0 %v5114
        %5504 = vmatmul.mubr.bf16.gmra.mrb[0].mxu0 %v5113
        %v5505 = vpop.f32.mrb[0].mxu0
        %v5506 = vadd.f32 %v5134, %v5505
        %v5507 = vpop.f32.mrb[0].mxu0
        %v5508 = vadd.f32 %v5138, %v5507
        %v5509 = vpop.f32.mrb[0].mxu0
        %v5510 = vadd.f32 %v5134, %v5509
        %v5511 = vpop.f32.mrb[0].mxu0
        %v5512 = vadd.f32 %v5138, %v5511
        %5513 = vmatprep.mubr.bf16.mxu0 %v5118
        %5514 = vmatmul.mubr.bf16.gmra.mrb[0].mxu0 %v5117
        %v5515 = vpop.f32.mrb[0].mxu0
        %v5516 = vadd.f32 %v5134, %v5515
        %v5517 = vpop.f32.mrb[0].mxu0
        %v5518 = vadd.f32 %v5138, %v5517
        %v5519 = vpop.f32.mrb[0].mxu0
        %v5520 = vadd.f32 %v5134, %v5519
        %v5521 = vpop.f32.mrb[0].mxu0
        %v5522 = vadd.f32 %v5138, %v5521
        %5523 = vmatprep.mubr.bf16.mxu0 %v5122
        %5524 = vmatmul.mubr.bf16.gmra.mrb[0].mxu0 %v5121
        %v5525 = vpop.f32.mrb[0].mxu0
        %v5526 = vadd.f32 %v5134, %v5525
        %v5527 = vpop.f32.mrb[0].mxu0
        %v5528 = vadd.f32 %v5138, %v5527
        %v5529 = vpop.f32.mrb[0].mxu0
        %v5530 = vadd.f32 %v5134, %v5529
        %v5531 = vpop.f32.mrb[0].mxu0
        %v5532 = vadd.f32 %v5138, %v5531
        %5533 = vmatprep.mubr.bf16.mxu0 %v5126
        %5534 = vmatmul.mubr.bf16.gmra.mrb[0].mxu0 %v5125
        %v5535 = vpop.f32.mrb[0].mxu0
        %v5536 = vadd.f32 %v5134, %v5535
        %v5537 = vpop.f32.mrb[0].mxu0
        %v5538 = vadd.f32 %v5138, %v5537
        %v5539 = vpop.f32.mrb[0].mxu0
        %v5540 = vadd.f32 %v5134, %v5539
        %v5541 = vpop.f32.mrb[0].mxu0
        %v5542 = vadd.f32 %v5138, %v5541
        %5543 = vdwg.mxu0
        %5544 = vmatprep.subr.bf16.mxu0 %v5366
        %5545 = vmatpush1.bf16.msra.mxu0 %v5365
        %5546 = vmatprep.subr.bf16.mxu0 %v5368
        %5547 = vmatpush1.bf16.msra.mxu0 %v5367
        %5548 = vmatprep.subr.bf16.mxu0 %v5370
        %5549 = vmatpush1.bf16.msra.mxu0 %v5369
        %5550 = vmatprep.subr.bf16.mxu0 %v5372
        %5551 = vmatpush1.bf16.msra.mxu0 %v5371
        %5552 = vmatprep.subr.bf16.mxu0 %v5374
        %5553 = vmatpush1.bf16.msra.mxu0 %v5373
        %5554 = vmatprep.subr.bf16.mxu0 %v5376
        %5555 = vmatpush1.bf16.msra.mxu0 %v5375
        %5556 = vmatprep.subr.bf16.mxu0 %v5378
        %5557 = vmatpush1.bf16.msra.mxu0 %v5377
        %5558 = vmatprep.subr.bf16.mxu0 %v5380
        %5559 = vmatpush1.bf16.msra.mxu0 %v5379
        %5560 = vmatprep.subr.bf16.mxu0 %v5382
        %5561 = vmatpush1.bf16.msra.mxu0 %v5381
        %5562 = vmatprep.subr.bf16.mxu0 %v5384
        %5563 = vmatpush1.bf16.msra.mxu0 %v5383
        %5564 = vmatprep.subr.bf16.mxu0 %v5386
        %5565 = vmatpush1.bf16.msra.mxu0 %v5385
        %5566 = vmatprep.subr.bf16.mxu0 %v5388
        %5567 = vmatpush1.bf16.msra.mxu0 %v5387
        %5568 = vmatprep.subr.bf16.mxu0 %v5390
        %5569 = vmatpush1.bf16.msra.mxu0 %v5389
        %5570 = vmatprep.subr.bf16.mxu0 %v5392
        %5571 = vmatpush1.bf16.msra.mxu0 %v5391
        %5572 = vmatprep.subr.bf16.mxu0 %v5394
        %5573 = vmatpush1.bf16.msra.mxu0 %v5393
        %5574 = vmatprep.subr.bf16.mxu0 %v5396
        %5575 = vmatpush1.bf16.msra.mxu0 %v5395
        %5576 = vmatprep.mubr.bf16.mxu0 %v5112
        %5577 = vmatmul.mubr.bf16.gmra.mrb[0].mxu0 %v5111
        %v5578 = vpop.f32.mrb[0].mxu0
        %v5579 = vadd.f32 %v5496, %v5578
        %v5580 = vpop.f32.mrb[0].mxu0
        %v5581 = vadd.f32 %v5498, %v5580
        %v5582 = vpop.f32.mrb[0].mxu0
        %v5583 = vadd.f32 %v5500, %v5582
        %v5584 = vpop.f32.mrb[0].mxu0
        %v5585 = vadd.f32 %v5502, %v5584
        %5586 = vmatprep.mubr.bf16.mxu0 %v5116
        %5587 = vmatmul.mubr.bf16.gmra.mrb[0].mxu0 %v5115
        %v5588 = vpop.f32.mrb[0].mxu0
        %v5589 = vadd.f32 %v5506, %v5588
        %v5590 = vpop.f32.mrb[0].mxu0
        %v5591 = vadd.f32 %v5508, %v5590
        %v5592 = vpop.f32.mrb[0].mxu0
        %v5593 = vadd.f32 %v5510, %v5592
        %v5594 = vpop.f32.mrb[0].mxu0
        %v5595 = vadd.f32 %v5512, %v5594
        %5596 = vmatprep.mubr.bf16.mxu0 %v5120
        %5597 = vmatmul.mubr.bf16.gmra.mrb[0].mxu0 %v5119
        %v5598 = vpop.f32.mrb[0].mxu0
        %v5599 = vadd.f32 %v5516, %v5598
        %v5600 = vpop.f32.mrb[0].mxu0
        %v5601 = vadd.f32 %v5518, %v5600
        %v5602 = vpop.f32.mrb[0].mxu0
        %v5603 = vadd.f32 %v5520, %v5602
        %v5604 = vpop.f32.mrb[0].mxu0
        %v5605 = vadd.f32 %v5522, %v5604
        %5606 = vmatprep.mubr.bf16.mxu0 %v5124
        %5607 = vmatmul.mubr.bf16.gmra.mrb[0].mxu0 %v5123
        %v5608 = vpop.f32.mrb[0].mxu0
        %v5609 = vadd.f32 %v5526, %v5608
        %v5610 = vpop.f32.mrb[0].mxu0
        %v5611 = vadd.f32 %v5528, %v5610
        %v5612 = vpop.f32.mrb[0].mxu0
        %v5613 = vadd.f32 %v5530, %v5612
        %v5614 = vpop.f32.mrb[0].mxu0
        %v5615 = vadd.f32 %v5532, %v5614
        %5616 = vmatprep.mubr.bf16.mxu0 %v5128
        %5617 = vmatmul.mubr.bf16.gmra.mrb[0].mxu0 %v5127
        %v5618 = vpop.f32.mrb[0].mxu0
        %v5619 = vadd.f32 %v5536, %v5618
        %v5620 = vpop.f32.mrb[0].mxu0
        %v5621 = vadd.f32 %v5538, %v5620
        %v5622 = vpop.f32.mrb[0].mxu0
        %v5623 = vadd.f32 %v5540, %v5622
        %v5624 = vpop.f32.mrb[0].mxu0
        %v5625 = vadd.f32 %v5542, %v5624
        %5626 = vdwg.mxu0
        %v5627 = vmax.f32 %v5579, 0.0
        %v5628 = vmax.f32 %v5581, 0.0
        %v5629 = vmax.f32 %v5583, 0.0
        %v5630 = vmax.f32 %v5585, 0.0
        %v5631 = vmax.f32 %v5589, 0.0
        %v5632 = vmax.f32 %v5591, 0.0
        %v5633 = vmax.f32 %v5593, 0.0
        %v5634 = vmax.f32 %v5595, 0.0
        %v5635 = vmax.f32 %v5599, 0.0
        %v5636 = vmax.f32 %v5601, 0.0
        %v5637 = vmax.f32 %v5603, 0.0
        %v5638 = vmax.f32 %v5605, 0.0
        %v5639 = vmax.f32 %v5609, 0.0
        %v5640 = vmax.f32 %v5611, 0.0
        %v5641 = vmax.f32 %v5613, 0.0
        %v5642 = vmax.f32 %v5615, 0.0
        %v5643 = vmax.f32 %v5619, 0.0
        %v5644 = vmax.f32 %v5621, 0.0
        %v5645 = vmax.f32 %v5623, 0.0
        %v5646 = vmax.f32 %v5625, 0.0
        %v5647 = vld [vmem:[#allocation22] sm:$0xf]
        %v5648 = vld [vmem:[#allocation22 + $0x4] sm:$0xf]
        %v5649 = vld [vmem:[#allocation22 + $0x8] sm:$0xf]
        %v5650 = vld [vmem:[#allocation22 + $0xc] sm:$0xf]
        %v5651 = vld [vmem:[#allocation22 + $0x10] sm:$0xf]
        %v5672 = vrot.slane %v5627, 1
        %v5673 = vrot.slane %v5629, 1
        %v5674 = vsel %vm1548, %v5672, %v5673
        %v5675 = vrot.slane %v5628, 1
        %v5676 = vrot.slane %v5630, 1
        %v5677 = vsel %vm1548, %v5675, %v5676
        %v5678 = vrot.slane %v5631, 1
        %v5679 = vsel %vm1548, %v5673, %v5678
        %v5680 = vrot.slane %v5632, 1
        %v5681 = vsel %vm1548, %v5676, %v5680
        %v5682 = vrot.slane %v5633, 1
        %v5683 = vsel %vm1548, %v5678, %v5682
        %v5684 = vrot.slane %v5634, 1
        %v5685 = vsel %vm1548, %v5680, %v5684
        %v5686 = vrot.slane %v5635, 1
        %v5687 = vsel %vm1548, %v5682, %v5686
        %v5688 = vrot.slane %v5636, 1
        %v5689 = vsel %vm1548, %v5684, %v5688
        %v5690 = vrot.slane %v5637, 1
        %v5691 = vsel %vm1548, %v5686, %v5690
        %v5692 = vrot.slane %v5638, 1
        %v5693 = vsel %vm1548, %v5688, %v5692
        %v5694 = vrot.slane %v5639, 1
        %v5695 = vsel %vm1548, %v5690, %v5694
        %v5696 = vrot.slane %v5640, 1
        %v5697 = vsel %vm1548, %v5692, %v5696
        %v5698 = vrot.slane %v5641, 1
        %v5699 = vsel %vm1548, %v5694, %v5698
        %v5700 = vrot.slane %v5642, 1
        %v5701 = vsel %vm1548, %v5696, %v5700
        %v5702 = vrot.slane %v5643, 1
        %v5703 = vsel %vm1548, %v5698, %v5702
        %v5704 = vrot.slane %v5644, 1
        %v5705 = vsel %vm1548, %v5700, %v5704
        %v5706 = vrot.slane %v5645, 1
        %v5707 = vsel %vm1548, %v5702, %v5706
        %v5708 = vrot.slane %v5646, 1
        %v5709 = vsel %vm1548, %v5704, %v5708
        %v5730 = vsel %vm1548, %v5706, 0.0
        %v5731 = vsel %vm1548, %v5708, 0.0
        %v5732 = vmax.f32 %v5627, %v5674
        %v5733 = vmax.f32 %v5628, %v5677
        %v5734 = vmax.f32 %v5629, %v5679
        %v5735 = vmax.f32 %v5630, %v5681
        %v5736 = vmax.f32 %v5631, %v5683
        %v5737 = vmax.f32 %v5632, %v5685
        %v5738 = vmax.f32 %v5633, %v5687
        %v5739 = vmax.f32 %v5634, %v5689
        %v5740 = vmax.f32 %v5635, %v5691
        %v5741 = vmax.f32 %v5636, %v5693
        %v5742 = vmax.f32 %v5637, %v5695
        %v5743 = vmax.f32 %v5638, %v5697
        %v5744 = vmax.f32 %v5639, %v5699
        %v5745 = vmax.f32 %v5640, %v5701
        %v5746 = vmax.f32 %v5641, %v5703
        %v5747 = vmax.f32 %v5642, %v5705
        %v5748 = vmax.f32 %v5643, %v5707
        %v5749 = vmax.f32 %v5644, %v5709
        %v5750 = vmax.f32 %v5645, %v5730
        %v5751 = vmax.f32 %v5646, %v5731
        %v5752 = vpack.c.bf16 %v5734, %v5732
        %v5753 = vpack.c.bf16 %v5735, %v5733
        %v5754 = vpack.c.bf16 %v5738, %v5736
        %v5755 = vpack.c.bf16 %v5739, %v5737
        %v5756 = vpack.c.bf16 %v5742, %v5740
        %v5757 = vpack.c.bf16 %v5743, %v5741
        %v5758 = vpack.c.bf16 %v5746, %v5744
        %v5759 = vpack.c.bf16 %v5747, %v5745
        %v5760 = vpack.c.bf16 %v5750, %v5748
        %v5761 = vpack.c.bf16 %v5751, %v5749
        %v5767 = vunpack.c.l.b16 %v5647
        %v5768 = vunpack.c.l.b16 %v5648
        %v5769 = vunpack.c.l.b16 %v5649
        %v5770 = vunpack.c.l.b16 %v5650
        %v5771 = vunpack.c.l.b16 %v5651
        %v5772 = vpack.c.b16 %v5768, %v5767
        %v5773 = vpack.c.b16 %v5770, %v5769
        %v5774 = vpack.c.b16 %v5771, %v5771
        %vm5775 = vcmask 654336
        %v5777 = vsel %vm5775, %v5772, 0
        %v5780 = vsel %vm5775, %v5773, 0
        %v5783 = vsel %vm5775, %v5774, 0
        %5785 = vmatprep.subr.bf16.mxu0 %v5753
        %5786 = vmatpush1.bf16.msra.mxu0 %v5752
        %5787 = vmatprep.subr.bf16.mxu0 %v5755
        %5788 = vmatpush1.bf16.msra.mxu0 %v5754
        %5789 = vmatprep.subr.bf16.mxu0 %v5757
        %5790 = vmatpush1.bf16.msra.mxu0 %v5756
        %5791 = vmatprep.subr.bf16.mxu0 %v5759
        %5792 = vmatpush1.bf16.msra.mxu0 %v5758
        %5793 = vmatprep.subr.bf16.mxu0 %v5761
        %5794 = vmatpush1.bf16.msra.mxu0 %v5760
        %5795 = vmatprep.subr.bf16.mxu0 0
        %5796 = vmatpush1.bf16.msra.mxu0 0
        %5797 = vmatprep.subr.bf16.mxu0 0
        %5798 = vmatpush1.bf16.msra.mxu0 0
        %5799 = vmatprep.subr.bf16.mxu0 0
        %5800 = vmatpush1.bf16.msra.mxu0 0
        %5801 = vmatprep.subr.bf16.mxu0 0
        %5802 = vmatpush1.bf16.msra.mxu0 0
        %5803 = vmatprep.subr.bf16.mxu0 0
        %5804 = vmatpush1.bf16.msra.mxu0 0
        %5805 = vmatprep.subr.bf16.mxu0 0
        %5806 = vmatpush1.bf16.msra.mxu0 0
        %5807 = vmatprep.subr.bf16.mxu0 0
        %5808 = vmatpush1.bf16.msra.mxu0 0
        %5809 = vmatprep.subr.bf16.mxu0 0
        %5810 = vmatpush1.bf16.msra.mxu0 0
        %5811 = vmatprep.subr.bf16.mxu0 0
        %5812 = vmatpush1.bf16.msra.mxu0 0
        %5813 = vmatprep.subr.bf16.mxu0 0
        %5814 = vmatpush1.bf16.msra.mxu0 0
        %5815 = vmatprep.subr.bf16.mxu0 0
        %5816 = vmatpush1.bf16.msra.mxu0 0
        %5817 = vmatprep.mubr.bf16.mxu0 0
        %5818 = vmatmul.mubr.bf16.gmra.mrb[0].mxu0 %v5777
        %v5819 = vpop.f32.mrb[0].mxu0
        %v5820 = vadd.f32 0.0, %v5819
        %v5821 = vpop.f32.mrb[0].mxu0
        %v5822 = vadd.f32 0.0, %v5821
        %v5823 = vpop.f32.mrb[0].mxu0
        %v5824 = vadd.f32 0.0, %v5823
        %v5825 = vpop.f32.mrb[0].mxu0
        %v5826 = vadd.f32 0.0, %v5825
        %5827 = vmatprep.mubr.bf16.mxu0 0
        %5828 = vmatmul.mubr.bf16.gmra.mrb[0].mxu0 %v5780
        %v5829 = vpop.f32.mrb[0].mxu0
        %v5830 = vadd.f32 0.0, %v5829
        %v5831 = vpop.f32.mrb[0].mxu0
        %v5832 = vadd.f32 0.0, %v5831
        %v5833 = vpop.f32.mrb[0].mxu0
        %v5834 = vadd.f32 0.0, %v5833
        %v5835 = vpop.f32.mrb[0].mxu0
        %v5836 = vadd.f32 0.0, %v5835
        %5837 = vmatprep.mubr.bf16.mxu0 0
        %5838 = vmatmul.mubr.bf16.gmra.mrb[0].mxu0 %v5783
        %v5839 = vpop.f32.mrb[0].mxu0
        %v5840 = vadd.f32 0.0, %v5839
        %v5841 = vpop.f32.mrb[0].mxu0
        %v5842 = vadd.f32 0.0, %v5841
        %v5843 = vpop.f32.mrb[0].mxu0
        %v5844 = vpop.f32.mrb[0].mxu0
        %5845 = vdwg.mxu0
        %v5846 = vld [vmem:[%s19] sm:$0xf]
        %v5847 = vld [vmem:[%s19 + $0x4] sm:$0xf]
        %v5848 = vld [vmem:[%s19 + $0x8] sm:$0xf]
        %v5849 = vld [vmem:[%s19 + $0xc] sm:$0xf]
        %v5850 = vld [vmem:[%s19 + $0x10] sm:$0xf]
        %v5851 = vld [vmem:[%s19 + $0x14] sm:$0xf]
        %v5852 = vld [vmem:[%s19 + $0x18] sm:$0xf]
        %v5853 = vld [vmem:[%s19 + $0x1c] sm:$0xf]
        %v5854 = vld [vmem:[%s19 + $0x20] sm:$0xf]
        %v5855 = vld [vmem:[%s19 + $0x24] sm:$0xf]
        %v5856 = vld [vmem:[%s19 + $0x28] sm:$0xf]
        %v5857 = vld [vmem:[%s19 + $0x2c] sm:$0xf]
        %v5858 = vld [vmem:[%s19 + $0x30] sm:$0xf]
        %v5859 = vld [vmem:[%s19 + $0x34] sm:$0xf]
        %v5860 = vld [vmem:[%s19 + $0x38] sm:$0xf]
        %v5861 = vld [vmem:[%s19 + $0x3c] sm:$0xf]
        %v5862 = vld [vmem:[%s19 + $0x40] sm:$0xf]
        %v5863 = vld [vmem:[%s19 + $0x44] sm:$0xf]
        %v5864 = vld [vmem:[%s19 + $0x48] sm:$0xf]
        %v5865 = vld [vmem:[%s19 + $0x4c] sm:$0xf]
        %v5866 = vld [vmem:[%s19 + $0x50] sm:$0xf]
        %v5867 = vld [vmem:[%s19 + $0x54] sm:$0xf]
        %v5868 = vld [vmem:[%s19 + $0x58] sm:$0xf]
        %v5869 = vld [vmem:[%s19 + $0x5c] sm:$0xf]
        %v5870 = vld [vmem:[%s19 + $0x60] sm:$0xf]
        %v5871 = vld [vmem:[%s19 + $0x64] sm:$0xf]
        %v5872 = vld [vmem:[%s19 + $0x68] sm:$0xf]
        %v5873 = vld [vmem:[%s19 + $0x6c] sm:$0xf]
        %v5874 = vld [vmem:[%s19 + $0x70] sm:$0xf]
        %v5875 = vld [vmem:[%s19 + $0x74] sm:$0xf]
        %v5876 = vld [vmem:[%s19 + $0x78] sm:$0xf]
        %v5877 = vld [vmem:[%s19 + $0x7c] sm:$0xf]
        %v5878 = vpack.c.bf16 %v5824, %v5820
        %v5879 = vpack.c.bf16 %v5826, %v5822
        %v5880 = vpack.c.bf16 %v5834, %v5830
        %v5881 = vpack.c.bf16 %v5836, %v5832
        %v5882 = vpack.c.bf16 %v5840, %v5840
        %v5883 = vpack.c.bf16 %v5842, %v5842
        %v5916 = vunpack.c.l.b16 %v5846
        %v5917 = vunpack.c.l.b16 %v5847
        %v5918 = vunpack.c.l.b16 %v5848
        %v5919 = vunpack.c.l.b16 %v5849
        %v5920 = vunpack.c.l.b16 %v5850
        %v5921 = vunpack.c.l.b16 %v5851
        %v5922 = vunpack.c.l.b16 %v5852
        %v5923 = vunpack.c.l.b16 %v5853
        %v5924 = vunpack.c.l.b16 %v5854
        %v5925 = vunpack.c.l.b16 %v5855
        %v5926 = vunpack.c.l.b16 %v5856
        %v5927 = vunpack.c.l.b16 %v5857
        %v5928 = vunpack.c.l.b16 %v5858
        %v5929 = vunpack.c.l.b16 %v5859
        %v5930 = vunpack.c.l.b16 %v5860
        %v5931 = vunpack.c.l.b16 %v5861
        %v5932 = vunpack.c.l.b16 %v5862
        %v5933 = vunpack.c.l.b16 %v5863
        %v5934 = vunpack.c.l.b16 %v5864
        %v5935 = vunpack.c.l.b16 %v5865
        %v5936 = vunpack.c.l.b16 %v5866
        %v5937 = vunpack.c.l.b16 %v5867
        %v5938 = vunpack.c.l.b16 %v5868
        %v5939 = vunpack.c.l.b16 %v5869
        %v5940 = vunpack.c.l.b16 %v5870
        %v5941 = vunpack.c.l.b16 %v5871
        %v5942 = vunpack.c.l.b16 %v5872
        %v5943 = vunpack.c.l.b16 %v5873
        %v5944 = vunpack.c.l.b16 %v5874
        %v5945 = vunpack.c.l.b16 %v5875
        %v5946 = vunpack.c.l.b16 %v5876
        %v5947 = vunpack.c.l.b16 %v5877
        %v5948 = vpack.c.b16 %v5917, %v5916
        %v5949 = vpack.c.b16 %v5919, %v5918
        %v5950 = vpack.c.b16 %v5921, %v5920
        %v5951 = vpack.c.b16 %v5923, %v5922
        %v5952 = vpack.c.b16 %v5925, %v5924
        %v5953 = vpack.c.b16 %v5927, %v5926
        %v5954 = vpack.c.b16 %v5929, %v5928
        %v5955 = vpack.c.b16 %v5931, %v5930
        %v5956 = vpack.c.b16 %v5933, %v5932
        %v5957 = vpack.c.b16 %v5935, %v5934
        %v5958 = vpack.c.b16 %v5937, %v5936
        %v5959 = vpack.c.b16 %v5939, %v5938
        %v5960 = vpack.c.b16 %v5941, %v5940
        %v5961 = vpack.c.b16 %v5943, %v5942
        %v5962 = vpack.c.b16 %v5945, %v5944
        %v5963 = vpack.c.b16 %v5947, %v5946
        %5980 = vmatprep.subr.bf16.mxu0 0
        %5981 = vmatpush1.bf16.msra.mxu0 %v5948
        %5982 = vmatprep.subr.bf16.mxu0 0
        %5983 = vmatpush1.bf16.msra.mxu0 %v5949
        %5984 = vmatprep.subr.bf16.mxu0 0
        %5985 = vmatpush1.bf16.msra.mxu0 %v5950
        %5986 = vmatprep.subr.bf16.mxu0 0
        %5987 = vmatpush1.bf16.msra.mxu0 %v5951
        %5988 = vmatprep.subr.bf16.mxu0 0
        %5989 = vmatpush1.bf16.msra.mxu0 %v5952
        %5990 = vmatprep.subr.bf16.mxu0 0
        %5991 = vmatpush1.bf16.msra.mxu0 %v5953
        %5992 = vmatprep.subr.bf16.mxu0 0
        %5993 = vmatpush1.bf16.msra.mxu0 %v5954
        %5994 = vmatprep.subr.bf16.mxu0 0
        %5995 = vmatpush1.bf16.msra.mxu0 %v5955
        %5996 = vmatprep.subr.bf16.mxu0 0
        %5997 = vmatpush1.bf16.msra.mxu0 %v5956
        %5998 = vmatprep.subr.bf16.mxu0 0
        %5999 = vmatpush1.bf16.msra.mxu0 %v5957
        %6000 = vmatprep.subr.bf16.mxu0 0
        %6001 = vmatpush1.bf16.msra.mxu0 %v5958
        %6002 = vmatprep.subr.bf16.mxu0 0
        %6003 = vmatpush1.bf16.msra.mxu0 %v5959
        %6004 = vmatprep.subr.bf16.mxu0 0
        %6005 = vmatpush1.bf16.msra.mxu0 %v5960
        %6006 = vmatprep.subr.bf16.mxu0 0
        %6007 = vmatpush1.bf16.msra.mxu0 %v5961
        %6008 = vmatprep.subr.bf16.mxu0 0
        %6009 = vmatpush1.bf16.msra.mxu0 %v5962
        %6010 = vmatprep.subr.bf16.mxu0 0
        %6011 = vmatpush1.bf16.msra.mxu0 %v5963
        %6012 = vmatprep.mubr.bf16.mxu0 %v5879
        %6013 = vmatmul.mubr.bf16.gmra.mrb[0].mxu0 %v5878
        %v6014 = vpop.f32.mrb[0].mxu0
        %v6015 = vadd.f32 0.0, %v6014
        %v6016 = vpop.f32.mrb[0].mxu0
        %v6017 = vpop.f32.mrb[0].mxu0
        %v6018 = vadd.f32 0.0, %v6017
        %v6019 = vpop.f32.mrb[0].mxu0
        %6020 = vmatprep.mubr.bf16.mxu0 %v5881
        %6021 = vmatmul.mubr.bf16.gmra.mrb[0].mxu0 %v5880
        %v6022 = vpop.f32.mrb[0].mxu0
        %v6023 = vadd.f32 0.0, %v6022
        %v6024 = vpop.f32.mrb[0].mxu0
        %v6025 = vpop.f32.mrb[0].mxu0
        %v6026 = vadd.f32 0.0, %v6025
        %v6027 = vpop.f32.mrb[0].mxu0
        %6028 = vmatprep.mubr.bf16.mxu0 %v5883
        %6029 = vmatmul.mubr.bf16.gmra.mrb[0].mxu0 %v5882
        %v6030 = vpop.f32.mrb[0].mxu0
        %v6031 = vadd.f32 0.0, %v6030
        %v6032 = vpop.f32.mrb[0].mxu0
        %v6033 = vpop.f32.mrb[0].mxu0
        %v6034 = vpop.f32.mrb[0].mxu0
        %6035 = vdwg.mxu0
        %v6036 = vld [vmem:[%s20] sm:$0xff]
        %v6037 = vld [vmem:[%s20 + $0x8] sm:$0xff]
        %v6038 = vld [vmem:[%s20 + $0x10] sm:$0xff]
        %v6039 = vld [vmem:[%s20 + $0x18] sm:$0xff]
        %v6040 = vld [vmem:[%s20 + $0x20] sm:$0xff]
        %v6041 = vmul.f32 %v6015, %v6036
        %v6042 = vmul.f32 %v6018, %v6037
        %v6043 = vmul.f32 %v6023, %v6038
        %v6044 = vmul.f32 %v6026, %v6039
        %v6045 = vmul.f32 %v6031, %v6040
        %v6046 = vld [vmem:[%s21] sm:$0xf]
        %v6047 = vld [vmem:[%s21 + $0x4] sm:$0xf]
        %v6048 = vld [vmem:[%s21 + $0x8] sm:$0xf]
        %v6049 = vld [vmem:[%s21 + $0xc] sm:$0xf]
        %v6050 = vld [vmem:[%s21 + $0x10] sm:$0xf]
        %v6051 = vld [vmem:[%s21 + $0x14] sm:$0x7]
        %v6052 = vpack.c.bf16 %v6042, %v6041
        %v6053 = vpack.c.bf16 %v6044, %v6043
        %v6054 = vpack.c.bf16 %v6045, %v6045
        %v6061 = vunpack.c.l.b16 %v6046
        %v6062 = vunpack.c.l.b16 %v6047
        %v6063 = vunpack.c.l.b16 %v6048
        %v6064 = vunpack.c.l.b16 %v6049
        %v6065 = vunpack.c.l.b16 %v6050
        %v6066 = vunpack.c.l.b16 %v6051
        %v6067 = vpack.c.b16 %v6062, %v6061
        %v6068 = vpack.c.b16 %v6064, %v6063
        %v6069 = vpack.c.b16 %v6066, %v6065
        %vm6072 = vcmask 367616
        %v6074 = vsel %vm6072, %v6052, 0
        %v6077 = vsel %vm6072, %v6053, 0
        %v6080 = vsel %vm6072, %v6054, 0
        %v6082 = vsel %vm1610, 4294967295, 65535
        %v6083 = vsel %vm1548, %v6082, 0
        %v6085 = vand.u32 %v6069, %v6083
        %6087 = vmatprep.subr.bf16.mxu0 0
        %6088 = vmatpush1.bf16.msra.mxu0 %v6067
        %6089 = vmatprep.subr.bf16.mxu0 0
        %6090 = vmatpush1.bf16.msra.mxu0 %v6068
        %6091 = vmatprep.subr.bf16.mxu0 0
        %6092 = vmatpush1.bf16.msra.mxu0 %v6085
        %6093 = vmatprep.subr.bf16.mxu0 0
        %6094 = vmatpush1.bf16.msra.mxu0 0
        %6095 = vmatprep.subr.bf16.mxu0 0
        %6096 = vmatpush1.bf16.msra.mxu0 0
        %6097 = vmatprep.subr.bf16.mxu0 0
        %6098 = vmatpush1.bf16.msra.mxu0 0
        %6099 = vmatprep.subr.bf16.mxu0 0
        %6100 = vmatpush1.bf16.msra.mxu0 0
        %6101 = vmatprep.subr.bf16.mxu0 0
        %6102 = vmatpush1.bf16.msra.mxu0 0
        %6103 = vmatprep.subr.bf16.mxu0 0
        %6104 = vmatpush1.bf16.msra.mxu0 0
        %6105 = vmatprep.subr.bf16.mxu0 0
        %6106 = vmatpush1.bf16.msra.mxu0 0
        %6107 = vmatprep.subr.bf16.mxu0 0
        %6108 = vmatpush1.bf16.msra.mxu0 0
        %6109 = vmatprep.subr.bf16.mxu0 0
        %6110 = vmatpush1.bf16.msra.mxu0 0
        %6111 = vmatprep.subr.bf16.mxu0 0
        %6112 = vmatpush1.bf16.msra.mxu0 0
        %6113 = vmatprep.subr.bf16.mxu0 0
        %6114 = vmatpush1.bf16.msra.mxu0 0
        %6115 = vmatprep.subr.bf16.mxu0 0
        %6116 = vmatpush1.bf16.msra.mxu0 0
        %6117 = vmatprep.subr.bf16.mxu0 0
        %6118 = vmatpush1.bf16.msra.mxu0 0
        %6119 = vmatprep.mubr.bf16.mxu0 0
        %6120 = vmatmul.mubr.bf16.gmra.mrb[0].mxu0 %v6074
        %v6121 = vpop.f32.mrb[0].mxu0
        %v6122 = vadd.f32 0.0, %v6121
        %v6123 = vpop.f32.mrb[0].mxu0
        %v6124 = vpop.f32.mrb[0].mxu0
        %v6125 = vadd.f32 0.0, %v6124
        %v6126 = vpop.f32.mrb[0].mxu0
        %6127 = vmatprep.mubr.bf16.mxu0 0
        %6128 = vmatmul.mubr.bf16.gmra.mrb[0].mxu0 %v6077
        %v6129 = vpop.f32.mrb[0].mxu0
        %v6130 = vadd.f32 0.0, %v6129
        %v6131 = vpop.f32.mrb[0].mxu0
        %v6132 = vpop.f32.mrb[0].mxu0
        %v6133 = vadd.f32 0.0, %v6132
        %v6134 = vpop.f32.mrb[0].mxu0
        %6135 = vmatprep.mubr.bf16.mxu0 0
        %6136 = vmatmul.mubr.bf16.gmra.mrb[0].mxu0 %v6080
        %v6137 = vpop.f32.mrb[0].mxu0
        %v6138 = vadd.f32 0.0, %v6137
        %v6139 = vpop.f32.mrb[0].mxu0
        %v6140 = vpop.f32.mrb[0].mxu0
        %v6141 = vpop.f32.mrb[0].mxu0
        %6142 = vdwg.mxu0
        %v6143 = vld [vmem:[%s22] sm:$0x3]
        %v6144 = vpack.c.bf16 %v6125, %v6122
        %v6145 = vpack.c.bf16 %v6133, %v6130
        %v6146 = vpack.c.bf16 %v6138, %v6138
        %v6147 = vld [vmem:[%s23] sm:$0x1]
        %v6149 = vlaneseq
        %v6150 = vshrl.u32 %v6149, 7
        %v6151 = vsub.s32 0, %v6150
        %v6152 = vrot.slane %v6147, %v6151
        %vm6154 = vcmask 326656
        %v6156 = vsel %vm6154, %v6143, 0
        %v6159 = vsel %vm1734, %v6146, 0
        %6161 = vmatprep.subr.bf16.mxu0 0
        %6162 = vmatpush1.bf16.msra.mxu0 %v6144
        %6163 = vmatprep.subr.bf16.mxu0 0
        %6164 = vmatpush1.bf16.msra.mxu0 %v6145
        %6165 = vmatprep.subr.bf16.mxu0 0
        %6166 = vmatpush1.bf16.msra.mxu0 %v6159
        %6167 = vmatprep.subr.bf16.mxu0 0
        %6168 = vmatpush1.bf16.msra.mxu0 0
        %6169 = vmatprep.subr.bf16.mxu0 0
        %6170 = vmatpush1.bf16.msra.mxu0 0
        %6171 = vmatprep.subr.bf16.mxu0 0
        %6172 = vmatpush1.bf16.msra.mxu0 0
        %6173 = vmatprep.subr.bf16.mxu0 0
        %6174 = vmatpush1.bf16.msra.mxu0 0
        %6175 = vmatprep.subr.bf16.mxu0 0
        %6176 = vmatpush1.bf16.msra.mxu0 0
        %6177 = vmatprep.subr.bf16.mxu0 0
        %6178 = vmatpush1.bf16.msra.mxu0 0
        %6179 = vmatprep.subr.bf16.mxu0 0
        %6180 = vmatpush1.bf16.msra.mxu0 0
        %6181 = vmatprep.subr.bf16.mxu0 0
        %6182 = vmatpush1.bf16.msra.mxu0 0
        %6183 = vmatprep.subr.bf16.mxu0 0
        %6184 = vmatpush1.bf16.msra.mxu0 0
        %6185 = vmatprep.subr.bf16.mxu0 0
        %6186 = vmatpush1.bf16.msra.mxu0 0
        %6187 = vmatprep.subr.bf16.mxu0 0
        %6188 = vmatpush1.bf16.msra.mxu0 0
        %6189 = vmatprep.subr.bf16.mxu0 0
        %6190 = vmatpush1.bf16.msra.mxu0 0
        %6191 = vmatprep.subr.bf16.mxu0 0
        %6192 = vmatpush1.bf16.msra.mxu0 0
        %6193 = vmatprep.mubr.bf16.mxu0 0
        %6194 = vmatmul.mubr.bf16.gmra.mrb[0].mxu0 %v6156
        %v6195 = vpop.f32.mrb[0].mxu0
        %v6196 = vadd.f32 %v6152, %v6195
        %v6197 = vpop.f32.mrb[0].mxu0
        %v6198 = vpop.f32.mrb[0].mxu0
        %v6199 = vpop.f32.mrb[0].mxu0
        %6200 = vdwg.mxu0
        %vm6201 = vcmask 35840
        %6202 = vst.msk [vmem:[%s905] sm:$0xf] %vm6201, %v6196
        %s6203 = sand.u32 %s562, 1
        %s6204 = scalar_lea.sflag [#allocation4], %s6203
        %s6205 = sand.u32 %s562, 1
        %s6206 = smul.addr %s6205, 4
        %s6207 = scalar_lea.vmem [#allocation23], %s6206
        // Predicated region
        $region169: #{tpu_custom_call.1} parent=115 // pred_check
          %p6208 = pneg %p572
        $region170: #{tpu_custom_call.1} parent=115 // pred_check_branch
          %6210 = sbr.rel (%p6208) target = $region172
        $region171: #{tpu_custom_call.1} parent=115 // pred_region
          %s6212 = ssub.s32 64, 64
          %6213 = vsyncadd %s6204, %s6212
          %s6214 = smul.addr %s45, 64
          %s6215 = scalar_lea.hbm %s24, %s6214
          %s6217 = sshll.u32 %s6207, 4
          %s6218 = int_to_ptr.vmem [resolvable:$true] %s6217
          %6220 = dma.vmem_to_hbm [thread:$0]  %s6218, 64, %s6215, %s6204
        $region172: #{tpu_custom_call.1} parent=115 // pred_fallthru
          _
      $region116: #{tpu_custom_call.1} parent=5 // pred_fallthru
        _
      %p6221 = scmp.le.s32.totalorder 2, %s40
      // Predicated region
      $region173: #{tpu_custom_call.1} parent=5 // pred_check
        %p6222 = pneg %p6221
      $region174: #{tpu_custom_call.1} parent=5 // pred_check_branch
        %6224 = sbr.rel (%p6222) target = $region176
      $region175: #{tpu_custom_call.1} parent=5 // pred_region
        %s6225 = ssub.s32 %s40, 2
        // Predicated region
        $region177: #{tpu_custom_call.1} parent=175 // pred_check
          %p6226 = pneg %p578
        $region178: #{tpu_custom_call.1} parent=175 // pred_check_branch
          %6228 = sbr.rel (%p6226) target = $region180
        $region179: #{tpu_custom_call.1} parent=175 // pred_region
          %s6229 = sand.u32 %s563, 1
          %s6230 = scalar_lea.sflag [#allocation4], %s6229
          %s6231 = sand.u32 %s563, 1
          %s6232 = smul.addr %s6231, 4
          %s6233 = scalar_lea.vmem [#allocation23], %s6232
          %6234 = dma.done %s6230, 64
        $region180: #{tpu_custom_call.1} parent=175 // pred_fallthru
          _
      $region176: #{tpu_custom_call.1} parent=5 // pred_fallthru
        _
    $region6: #{tpu_custom_call.1} parent=1 // loop_footer
      %s44 = sadd.s32 1, %s40
    $region7: #{tpu_custom_call.1} parent=1 // loop_footer_branch
      %39 = sbr.rel target = $region3
    $region8: #{tpu_custom_call.1} parent=1 // loop_exit
      _
    %6235 = vsyncpa [#allocation3], 1
    %s6236 = scalar_lea.sflag [#allocation3], 1
    %6237 = vsyncpa %s6236, 1
    %6238 = vsyncpa [#allocation6], 1
    %6239 = vsyncpa [#allocation9], 1
    %6240 = vsyncpa [#allocation12], 1
    %6241 = vsyncpa [#allocation15], 1
    %6242 = vsyncpa [#allocation18], 1
    %6243 = vsyncpa [#allocation21], 1
    %6244 = vsyncpa [#allocation4], 1
    %s6245 = scalar_lea.sflag [#allocation4], 1
    %6246 = vsyncpa %s6245, 1

</llo_original>
